<compile_context>
chip_gen: v6e
topology: v6e:2x2x1
jax: 0.10.0
libtpu: 0.0.40
codegen_flags: <defaults>
</compile_context>

<pallas_src>
import jax
import jax.numpy as jnp
from jax.experimental import pallas as pl
from jax.experimental.pallas import tpu as pltpu


# ---------------------------------------------------------------------------
# Fused Pallas kernel (all layers + both directions + final linear)
# ---------------------------------------------------------------------------

def _make_birnn_kernel(num_layers, T, Bp, H):
    """Fused kernel for static (num_layers, T, padded batch Bp, H).

    Ref layout (all whole-array VMEM):
      x_tm_ref        : (T*Bp, D0)   time-major, batch-padded input
      per layer l     : wih (D_l, 8H), whh (2H, 8H), b (1, 8H)   (fused layout)
      lin_w_ref       : (2H, OUT_PAD) pre-transposed, zero-padded
      lin_b_ref       : (1, OUT_PAD)
      out_ref         : (Bp, OUT_PAD)
      hbuf (scratch)  : (T*Bp, 2H)   layer-handoff buffer
    """
    H2, H8 = 2 * H, 8 * H

    def kernel(*refs):
        x_ref = refs[0]
        layer_refs = [refs[1 + 3 * l: 4 + 3 * l] for l in range(num_layers)]
        lin_w_ref = refs[1 + 3 * num_layers]
        lin_b_ref = refs[2 + 3 * num_layers]
        out_ref = refs[3 + 3 * num_layers]
        hbuf = refs[4 + 3 * num_layers]

        # Constant lane mask (built once): True on forward-direction columns of
        # the interleaved gate layout [i_f,i_b,f_f,f_b,o_f,o_b,g_f,g_b].
        col = jax.lax.broadcasted_iota(jnp.int32, (Bp, H8), 1)
        fwd_col = col < H
        for k in range(1, 4):
            lo = 2 * k * H
            fwd_col = jnp.logical_or(
                fwd_col, jnp.logical_and(col >= lo, col < lo + H))

        def cell(gates, c_cat):
            """Fused bidirectional LSTM cell on interleaved gate columns.

            gates: (Bp, 8H) pre-activations; i/f/o columns were pre-scaled by
            0.5 at parameter-prep time so sigmoid(z) = 0.5*tanh(z/2) + 0.5.
            c_cat: (Bp, 2H) = [c_f | c_b]. Returns ([h_f|h_b], [c_f|c_b]).
            """
            t = jnp.tanh(gates)                      # ONE full-width EUP region
            s = t * 0.5 + 0.5                        # sigmoid for i/f/o columns
            i_cat = s[:, 0 * H2:1 * H2]
            f_cat = s[:, 1 * H2:2 * H2]
            o_cat = s[:, 2 * H2:3 * H2]
            g_cat = t[:, 3 * H2:4 * H2]
            c_new = f_cat * c_cat + i_cat * g_cat
            h_new = o_cat * jnp.tanh(c_new)          # second (small) EUP region
            return h_new, c_new

        h_fwd_last = None
        h_bwd_last = None

        for l in range(num_layers):
            wih_ref, whh_ref, b_ref = layer_refs[l]
            is_last = l == num_layers - 1

            x_in = x_ref[...] if l == 0 else hbuf[...]            # (T*Bp, D_l)

            # Hoisted, time-invariant input projection for BOTH directions in
            # a single MXU dot; bias folded in here (off the critical path).
            gin = (jnp.dot(x_in, wih_ref[...],
                           preferred_element_type=jnp.float32)
                   + b_ref[...])                                   # (T*Bp, 8H)

            h_cat = jnp.zeros((Bp, H2), jnp.float32)               # [h_f | h_b]
            c_cat = jnp.zeros((Bp, H2), jnp.float32)               # [c_f | c_b]

            for t in range(T):
                tb = T - 1 - t
                # ONE block-diagonal recurrent dot per step (both directions).
                rec = jnp.dot(h_cat, whh_ref[...],
                              preferred_element_type=jnp.float32)  # (Bp, 8H)
                # Forward gate columns come from timestep t, backward columns
                # from timestep tb; a single vreg-select aligns them.
                gin_t = jnp.where(fwd_col,
                                  gin[t * Bp:(t + 1) * Bp],
                                  gin[tb * Bp:(tb + 1) * Bp])
                h_cat, c_cat = cell(rec + gin_t, c_cat)

                if is_last:
                    if t == 0:
                        # Backward output at timestep T-1 == its first step.
                        h_bwd_last = h_cat[:, H:H2]
                else:
                    # Layer handoff via VMEM scratch at static row offsets:
                    # no concats, no long-lived per-step vregs.
                    hbuf[t * Bp:(t + 1) * Bp, 0:H] = h_cat[:, 0:H]
                    hbuf[tb * Bp:(tb + 1) * Bp, H:H2] = h_cat[:, H:H2]

            if is_last:
                h_fwd_last = h_cat[:, 0:H]

        # x[:, -1, :] -> Linear(2H, 1000) with a lane-dense padded store.
        feat = jnp.concatenate([h_fwd_last, h_bwd_last], axis=-1)  # (Bp, 2H)
        out_ref[...] = (jnp.dot(feat, lin_w_ref[...],
                                preferred_element_type=jnp.float32)
                        + lin_b_ref[...]).astype(out_ref.dtype)

    return kernel


# ---------------------------------------------------------------------------
# Wrapper
# ---------------------------------------------------------------------------

_VMEM_SPEC = pl.BlockSpec(memory_space=pltpu.MemorySpace.VMEM)


def birnn_forward(x, prep, num_layers):
    """x: (B, T, input_size) batch_first, like the PyTorch module."""
    B, T, D = x.shape
    H = prep["hidden_size"]
    out_features = prep["out_features"]
    out_pad = prep["lin_w"].shape[1]
    Bp = ((B + 7) // 8) * 8          # sublane-align the batch (pad rows sliced off)

    # Single fused pad + time-major rearrangement (one small XLA copy).
    xp = jnp.pad(x, ((0, Bp - B), (0, 0), (0, 0)))
    x_tm = jnp.transpose(xp, (1, 0, 2)).reshape(T * Bp, D)

    inputs = [x_tm]
    for l in range(num_layers):
        p = prep["lstm"][l]
        inputs += [p["wih"], p["whh"], p["b"]]
    inputs += [prep["lin_w"], prep["lin_b"]]

    out = pl.pallas_call(
        _make_birnn_kernel(num_layers, T, Bp, H),
        out_shape=jax.ShapeDtypeStruct((Bp, out_pad), jnp.float32),
        in_specs=[_VMEM_SPEC] * len(inputs),
        out_specs=_VMEM_SPEC,
        scratch_shapes=[pltpu.VMEM((T * Bp, 2 * H), jnp.float32)],
    )(*inputs)
    return out[:B, :out_features]


# ---------------------------------------------------------------------------
# One-time parameter preparation (transpose / reorder / scale / pad) — hoisted
# out of the forward pass.
# ---------------------------------------------------------------------------

def prepare_params(params, hidden_size):
    """Gate-column layout for every LSTM layer (8H wide, each block H lanes):
         [ i_f | i_b | f_f | f_b | o_f | o_b | g_f | g_b ]
    i/f/o columns pre-scaled by 0.5 (kernel evaluates sigmoid via one tanh).
    W_hh is block-diagonal over directions so ONE dot gives both recurrences.
    """
    H = hidden_size

    def split_reorder(wT):
        # wT: (..., 4H), PyTorch gate order [i, f, g, o] -> (i, f, o, g)
        i = wT[..., 0 * H:1 * H] * 0.5
        f = wT[..., 1 * H:2 * H] * 0.5
        g = wT[..., 2 * H:3 * H]
        o = wT[..., 3 * H:4 * H] * 0.5
        return i, f, o, g

    def interleave(fw, bw):
        fi, ff, fo, fg = split_reorder(fw)
        bi, bf, bo, bg = split_reorder(bw)
        return jnp.concatenate([fi, bi, ff, bf, fo, bo, fg, bg], axis=-1)

    lstm_prep = []
    for p in params["lstm"]:
        wih_f, wih_b = jnp.transpose(p["w_ih_f"]), jnp.transpose(p["w_ih_b"])
        whh_f, whh_b = jnp.transpose(p["w_hh_f"]), jnp.transpose(p["w_hh_b"])
        b_f = (p["b_ih_f"] + p["b_hh_f"]).reshape(1, 4 * H)
        b_b = (p["b_ih_b"] + p["b_hh_b"]).reshape(1, 4 * H)
        z = jnp.zeros_like(whh_f)
        lstm_prep.append({
            "wih": interleave(wih_f, wih_b),                     # (D_l, 8H)
            "whh": jnp.concatenate([interleave(whh_f, z),        # (2H, 8H)
                                    interleave(z, whh_b)], axis=0),
            "b": interleave(b_f, b_b),                           # (1, 8H)
        })

    w = params["linear_w"]                                       # (OUT, 2H)
    b = params["linear_b"]                                       # (OUT,)
    out_features = w.shape[0]
    out_pad = ((out_features + 127) // 128) * 128                # lane-dense
    w_t = jnp.pad(jnp.transpose(w), ((0, 0), (0, out_pad - out_features)))
    b_p = jnp.pad(b, (0, out_pad - out_features)).reshape(1, out_pad)
    return {"hidden_size": H, "out_features": out_features,
            "lstm": lstm_prep, "lin_w": w_t, "lin_b": b_p}


# ---------------------------------------------------------------------------
# Deterministic parameter construction (shapes from nn.LSTM / nn.Linear)
# ---------------------------------------------------------------------------

def make_params(key, input_size, hidden_size, num_layers):
    H = hidden_size

    def u(key, shape, scale=0.1):
        return jax.random.uniform(key, shape, jnp.float32, -scale, scale)

    lstm_params = []
    for layer in range(num_layers):
        d_in = input_size if layer == 0 else 2 * H
        key, *ks = jax.random.split(key, 9)
        lstm_params.append({
            "w_ih_f": u(ks[0], (4 * H, d_in)),
            "w_hh_f": u(ks[1], (4 * H, H)),
            "b_ih_f": u(ks[2], (4 * H,)),
            "b_hh_f": u(ks[3], (4 * H,)),
            "w_ih_b": u(ks[4], (4 * H, d_in)),
            "w_hh_b": u(ks[5], (4 * H, H)),
            "b_ih_b": u(ks[6], (4 * H,)),
            "b_hh_b": u(ks[7], (4 * H,)),
        })
    key, k_w, k_b = jax.random.split(key, 3)
    return {
        "lstm": lstm_params,
        "linear_w": u(k_w, (1000, 2 * H)),
        "linear_b": u(k_b, (1000,)),
    }


if __name__ == "__main__":
    INPUT_SIZE = 32
    HIDDEN_SIZE = 32
    NUM_LAYERS = 2
    BATCH = 2
    SEQ = 8

    key = jax.random.PRNGKey(0)
    key, k_x, k_p = jax.random.split(key, 3)
    x = jax.random.normal(k_x, (BATCH, SEQ, INPUT_SIZE), jnp.float32)
    params = make_params(k_p, INPUT_SIZE, HIDDEN_SIZE, NUM_LAYERS)
    prep = prepare_params(params, HIDDEN_SIZE)

    fwd = jax.jit(lambda inp: birnn_forward(inp, prep, NUM_LAYERS))
    y = jax.block_until_ready(fwd(x))
    assert y.shape == (BATCH, 1000), y.shape
    print("KERNEL_OK")
</pallas_src>

<mosaic_0001>
module attributes {stable_mosaic.version = 11 : i64} {
  func.func @kernel(%arg0: memref<64x32xf32, #tpu.memory_space<vmem>>, %arg1: memref<32x256xf32, #tpu.memory_space<vmem>>, %arg2: memref<64x256xf32, #tpu.memory_space<vmem>>, %arg3: memref<1x256xf32, #tpu.memory_space<vmem>>, %arg4: memref<64x256xf32, #tpu.memory_space<vmem>>, %arg5: memref<64x256xf32, #tpu.memory_space<vmem>>, %arg6: memref<1x256xf32, #tpu.memory_space<vmem>>, %arg7: memref<64x1024xf32, #tpu.memory_space<vmem>>, %arg8: memref<1x1024xf32, #tpu.memory_space<vmem>>, %arg9: memref<8x1024xf32, #tpu.memory_space<vmem>>, %arg10: memref<64x64xf32, #tpu.memory_space<vmem>>) attributes {dimension_semantics = [], scalar_prefetch = 0 : i64, scratch_operands = 1 : i64, tpu.core_type = #tpu.core_type<tc>} {
    %0 = tpu.iota {dimensions = array<i32: 1>} : vector<8x256xi32>
    %c32_i32 = arith.constant 32 : i32
    %1 = vector.broadcast %c32_i32 : i32 to vector<8x256xi32>
    %2 = arith.cmpi slt, %0, %1 : vector<8x256xi32>
    %c64_i32 = arith.constant 64 : i32
    %3 = vector.broadcast %c64_i32 : i32 to vector<8x256xi32>
    %4 = arith.cmpi sge, %0, %3 : vector<8x256xi32>
    %c96_i32 = arith.constant 96 : i32
    %5 = vector.broadcast %c96_i32 : i32 to vector<8x256xi32>
    %6 = arith.cmpi slt, %0, %5 : vector<8x256xi32>
    %7 = arith.andi %4, %6 : vector<8x256xi1>
    %8 = arith.ori %2, %7 : vector<8x256xi1>
    %c128_i32 = arith.constant 128 : i32
    %9 = vector.broadcast %c128_i32 : i32 to vector<8x256xi32>
    %10 = arith.cmpi sge, %0, %9 : vector<8x256xi32>
    %c160_i32 = arith.constant 160 : i32
    %11 = vector.broadcast %c160_i32 : i32 to vector<8x256xi32>
    %12 = arith.cmpi slt, %0, %11 : vector<8x256xi32>
    %13 = arith.andi %10, %12 : vector<8x256xi1>
    %14 = arith.ori %8, %13 : vector<8x256xi1>
    %c192_i32 = arith.constant 192 : i32
    %15 = vector.broadcast %c192_i32 : i32 to vector<8x256xi32>
    %16 = arith.cmpi sge, %0, %15 : vector<8x256xi32>
    %c224_i32 = arith.constant 224 : i32
    %17 = vector.broadcast %c224_i32 : i32 to vector<8x256xi32>
    %18 = arith.cmpi slt, %0, %17 : vector<8x256xi32>
    %19 = arith.andi %16, %18 : vector<8x256xi1>
    %20 = arith.ori %14, %19 : vector<8x256xi1>
    %c0 = arith.constant 0 : index
    %c0_0 = arith.constant 0 : index
    %21 = vector.load %arg0[%c0, %c0_0] : memref<64x32xf32, #tpu.memory_space<vmem>>, vector<64x32xf32>
    %c0_1 = arith.constant 0 : index
    %c0_2 = arith.constant 0 : index
    %22 = vector.load %arg1[%c0_1, %c0_2] : memref<32x256xf32, #tpu.memory_space<vmem>>, vector<32x256xf32>
    %cst = arith.constant dense<0.000000e+00> : vector<64x256xf32>
    %23 = tpu.matmul %21, %22, %cst {dimension_numbers = #tpu.dot_dimension_numbers<[1], [0], [0], [1], [0, 0, 1, 1], [], []>} : vector<64x32xf32>, vector<32x256xf32>, vector<64x256xf32> -> vector<64x256xf32>
    %c0_3 = arith.constant 0 : index
    %c0_4 = arith.constant 0 : index
    %24 = vector.load %arg3[%c0_3, %c0_4] : memref<1x256xf32, #tpu.memory_space<vmem>>, vector<1x256xf32>
    %25 = vector.broadcast %24 : vector<1x256xf32> to vector<64x256xf32>
    %26 = arith.addf %23, %25 : vector<64x256xf32>
    %cst_5 = arith.constant 0.000000e+00 : f32
    %27 = vector.broadcast %cst_5 : f32 to vector<8x64xf32>
    %cst_6 = arith.constant 0.000000e+00 : f32
    %28 = vector.broadcast %cst_6 : f32 to vector<8x64xf32>
    %c0_7 = arith.constant 0 : index
    %c0_8 = arith.constant 0 : index
    %29 = vector.load %arg2[%c0_7, %c0_8] : memref<64x256xf32, #tpu.memory_space<vmem>>, vector<64x256xf32>
    %cst_9 = arith.constant dense<0.000000e+00> : vector<8x256xf32>
    %30 = tpu.matmul %27, %29, %cst_9 {dimension_numbers = #tpu.dot_dimension_numbers<[1], [0], [0], [1], [0, 0, 1, 1], [], []>} : vector<8x64xf32>, vector<64x256xf32>, vector<8x256xf32> -> vector<8x256xf32>
    %31 = vector.extract_strided_slice %26 {offsets = [0, 0], sizes = [8, 256], strides = [1, 1]} : vector<64x256xf32> to vector<8x256xf32>
    %32 = vector.extract_strided_slice %26 {offsets = [56, 0], sizes = [8, 256], strides = [1, 1]} : vector<64x256xf32> to vector<8x256xf32>
    %33 = arith.select %20, %31, %32 : vector<8x256xi1>, vector<8x256xf32>
    %34 = arith.addf %30, %33 : vector<8x256xf32>
    %35 = math.tanh %34 : vector<8x256xf32>
    %cst_10 = arith.constant 5.000000e-01 : f32
    %36 = vector.broadcast %cst_10 : f32 to vector<8x256xf32>
    %37 = arith.mulf %35, %36 : vector<8x256xf32>
    %cst_11 = arith.constant 5.000000e-01 : f32
    %38 = vector.broadcast %cst_11 : f32 to vector<8x256xf32>
    %39 = arith.addf %37, %38 : vector<8x256xf32>
    %40 = vector.extract_strided_slice %39 {offsets = [0, 0], sizes = [8, 64], strides = [1, 1]} : vector<8x256xf32> to vector<8x64xf32>
    %41 = vector.extract_strided_slice %39 {offsets = [0, 64], sizes = [8, 64], strides = [1, 1]} : vector<8x256xf32> to vector<8x64xf32>
    %42 = vector.extract_strided_slice %39 {offsets = [0, 128], sizes = [8, 64], strides = [1, 1]} : vector<8x256xf32> to vector<8x64xf32>
    %43 = vector.extract_strided_slice %35 {offsets = [0, 192], sizes = [8, 64], strides = [1, 1]} : vector<8x256xf32> to vector<8x64xf32>
    %44 = arith.mulf %41, %28 : vector<8x64xf32>
    %45 = arith.mulf %40, %43 : vector<8x64xf32>
    %46 = arith.addf %44, %45 : vector<8x64xf32>
    %47 = math.tanh %46 : vector<8x64xf32>
    %48 = arith.mulf %42, %47 : vector<8x64xf32>
    %49 = vector.extract_strided_slice %48 {offsets = [0, 0], sizes = [8, 32], strides = [1, 1]} : vector<8x64xf32> to vector<8x32xf32>
    %c0_12 = arith.constant 0 : index
    %c0_13 = arith.constant 0 : index
    %50 = vector.load %arg10[%c0_12, %c0_13] : memref<64x64xf32, #tpu.memory_space<vmem>>, vector<8x32xf32>
    tpu.vector_store %arg10[%c0_12, %c0_13], %49 {strides = array<i32>} : memref<64x64xf32, #tpu.memory_space<vmem>>, vector<8x32xf32>,
    %51 = vector.extract_strided_slice %48 {offsets = [0, 32], sizes = [8, 32], strides = [1, 1]} : vector<8x64xf32> to vector<8x32xf32>
    %c56 = arith.constant 56 : index
    %c32 = arith.constant 32 : index
    %52 = vector.load %arg10[%c56, %c32] : memref<64x64xf32, #tpu.memory_space<vmem>>, vector<8x32xf32>
    tpu.vector_store %arg10[%c56, %c32], %51 {strides = array<i32>} : memref<64x64xf32, #tpu.memory_space<vmem>>, vector<8x32xf32>,
    %c0_14 = arith.constant 0 : index
    %c0_15 = arith.constant 0 : index
    %53 = vector.load %arg2[%c0_14, %c0_15] : memref<64x256xf32, #tpu.memory_space<vmem>>, vector<64x256xf32>
    %cst_16 = arith.constant dense<0.000000e+00> : vector<8x256xf32>
    %54 = tpu.matmul %48, %53, %cst_16 {dimension_numbers = #tpu.dot_dimension_numbers<[1], [0], [0], [1], [0, 0, 1, 1], [], []>} : vector<8x64xf32>, vector<64x256xf32>, vector<8x256xf32> -> vector<8x256xf32>
    %55 = vector.extract_strided_slice %26 {offsets = [8, 0], sizes = [8, 256], strides = [1, 1]} : vector<64x256xf32> to vector<8x256xf32>
    %56 = vector.extract_strided_slice %26 {offsets = [48, 0], sizes = [8, 256], strides = [1, 1]} : vector<64x256xf32> to vector<8x256xf32>
    %57 = arith.select %20, %55, %56 : vector<8x256xi1>, vector<8x256xf32>
    %58 = arith.addf %54, %57 : vector<8x256xf32>
    %59 = math.tanh %58 : vector<8x256xf32>
    %cst_17 = arith.constant 5.000000e-01 : f32
    %60 = vector.broadcast %cst_17 : f32 to vector<8x256xf32>
    %61 = arith.mulf %59, %60 : vector<8x256xf32>
    %cst_18 = arith.constant 5.000000e-01 : f32
    %62 = vector.broadcast %cst_18 : f32 to vector<8x256xf32>
    %63 = arith.addf %61, %62 : vector<8x256xf32>
    %64 = vector.extract_strided_slice %63 {offsets = [0, 0], sizes = [8, 64], strides = [1, 1]} : vector<8x256xf32> to vector<8x64xf32>
    %65 = vector.extract_strided_slice %63 {offsets = [0, 64], sizes = [8, 64], strides = [1, 1]} : vector<8x256xf32> to vector<8x64xf32>
    %66 = vector.extract_strided_slice %63 {offsets = [0, 128], sizes = [8, 64], strides = [1, 1]} : vector<8x256xf32> to vector<8x64xf32>
    %67 = vector.extract_strided_slice %59 {offsets = [0, 192], sizes = [8, 64], strides = [1, 1]} : vector<8x256xf32> to vector<8x64xf32>
    %68 = arith.mulf %65, %46 : vector<8x64xf32>
    %69 = arith.mulf %64, %67 : vector<8x64xf32>
    %70 = arith.addf %68, %69 : vector<8x64xf32>
    %71 = math.tanh %70 : vector<8x64xf32>
    %72 = arith.mulf %66, %71 : vector<8x64xf32>
    %73 = vector.extract_strided_slice %72 {offsets = [0, 0], sizes = [8, 32], strides = [1, 1]} : vector<8x64xf32> to vector<8x32xf32>
    %c8 = arith.constant 8 : index
    %c0_19 = arith.constant 0 : index
    %74 = vector.load %arg10[%c8, %c0_19] : memref<64x64xf32, #tpu.memory_space<vmem>>, vector<8x32xf32>
    tpu.vector_store %arg10[%c8, %c0_19], %73 {strides = array<i32>} : memref<64x64xf32, #tpu.memory_space<vmem>>, vector<8x32xf32>,
    %75 = vector.extract_strided_slice %72 {offsets = [0, 32], sizes = [8, 32], strides = [1, 1]} : vector<8x64xf32> to vector<8x32xf32>
    %c48 = arith.constant 48 : index
    %c32_20 = arith.constant 32 : index
    %76 = vector.load %arg10[%c48, %c32_20] : memref<64x64xf32, #tpu.memory_space<vmem>>, vector<8x32xf32>
    tpu.vector_store %arg10[%c48, %c32_20], %75 {strides = array<i32>} : memref<64x64xf32, #tpu.memory_space<vmem>>, vector<8x32xf32>,
    %c0_21 = arith.constant 0 : index
    %c0_22 = arith.constant 0 : index
    %77 = vector.load %arg2[%c0_21, %c0_22] : memref<64x256xf32, #tpu.memory_space<vmem>>, vector<64x256xf32>
    %cst_23 = arith.constant dense<0.000000e+00> : vector<8x256xf32>
    %78 = tpu.matmul %72, %77, %cst_23 {dimension_numbers = #tpu.dot_dimension_numbers<[1], [0], [0], [1], [0, 0, 1, 1], [], []>} : vector<8x64xf32>, vector<64x256xf32>, vector<8x256xf32> -> vector<8x256xf32>
    %79 = vector.extract_strided_slice %26 {offsets = [16, 0], sizes = [8, 256], strides = [1, 1]} : vector<64x256xf32> to vector<8x256xf32>
    %80 = vector.extract_strided_slice %26 {offsets = [40, 0], sizes = [8, 256], strides = [1, 1]} : vector<64x256xf32> to vector<8x256xf32>
    %81 = arith.select %20, %79, %80 : vector<8x256xi1>, vector<8x256xf32>
    %82 = arith.addf %78, %81 : vector<8x256xf32>
    %83 = math.tanh %82 : vector<8x256xf32>
    %cst_24 = arith.constant 5.000000e-01 : f32
    %84 = vector.broadcast %cst_24 : f32 to vector<8x256xf32>
    %85 = arith.mulf %83, %84 : vector<8x256xf32>
    %cst_25 = arith.constant 5.000000e-01 : f32
    %86 = vector.broadcast %cst_25 : f32 to vector<8x256xf32>
    %87 = arith.addf %85, %86 : vector<8x256xf32>
    %88 = vector.extract_strided_slice %87 {offsets = [0, 0], sizes = [8, 64], strides = [1, 1]} : vector<8x256xf32> to vector<8x64xf32>
    %89 = vector.extract_strided_slice %87 {offsets = [0, 64], sizes = [8, 64], strides = [1, 1]} : vector<8x256xf32> to vector<8x64xf32>
    %90 = vector.extract_strided_slice %87 {offsets = [0, 128], sizes = [8, 64], strides = [1, 1]} : vector<8x256xf32> to vector<8x64xf32>
    %91 = vector.extract_strided_slice %83 {offsets = [0, 192], sizes = [8, 64], strides = [1, 1]} : vector<8x256xf32> to vector<8x64xf32>
    %92 = arith.mulf %89, %70 : vector<8x64xf32>
    %93 = arith.mulf %88, %91 : vector<8x64xf32>
    %94 = arith.addf %92, %93 : vector<8x64xf32>
    %95 = math.tanh %94 : vector<8x64xf32>
    %96 = arith.mulf %90, %95 : vector<8x64xf32>
    %97 = vector.extract_strided_slice %96 {offsets = [0, 0], sizes = [8, 32], strides = [1, 1]} : vector<8x64xf32> to vector<8x32xf32>
    %c16 = arith.constant 16 : index
    %c0_26 = arith.constant 0 : index
    %98 = vector.load %arg10[%c16, %c0_26] : memref<64x64xf32, #tpu.memory_space<vmem>>, vector<8x32xf32>
    tpu.vector_store %arg10[%c16, %c0_26], %97 {strides = array<i32>} : memref<64x64xf32, #tpu.memory_space<vmem>>, vector<8x32xf32>,
    %99 = vector.extract_strided_slice %96 {offsets = [0, 32], sizes = [8, 32], strides = [1, 1]} : vector<8x64xf32> to vector<8x32xf32>
    %c40 = arith.constant 40 : index
    %c32_27 = arith.constant 32 : index
    %100 = vector.load %arg10[%c40, %c32_27] : memref<64x64xf32, #tpu.memory_space<vmem>>, vector<8x32xf32>
    tpu.vector_store %arg10[%c40, %c32_27], %99 {strides = array<i32>} : memref<64x64xf32, #tpu.memory_space<vmem>>, vector<8x32xf32>,
    %c0_28 = arith.constant 0 : index
    %c0_29 = arith.constant 0 : index
    %101 = vector.load %arg2[%c0_28, %c0_29] : memref<64x256xf32, #tpu.memory_space<vmem>>, vector<64x256xf32>
    %cst_30 = arith.constant dense<0.000000e+00> : vector<8x256xf32>
    %102 = tpu.matmul %96, %101, %cst_30 {dimension_numbers = #tpu.dot_dimension_numbers<[1], [0], [0], [1], [0, 0, 1, 1], [], []>} : vector<8x64xf32>, vector<64x256xf32>, vector<8x256xf32> -> vector<8x256xf32>
    %103 = vector.extract_strided_slice %26 {offsets = [24, 0], sizes = [8, 256], strides = [1, 1]} : vector<64x256xf32> to vector<8x256xf32>
    %104 = vector.extract_strided_slice %26 {offsets = [32, 0], sizes = [8, 256], strides = [1, 1]} : vector<64x256xf32> to vector<8x256xf32>
    %105 = arith.select %20, %103, %104 : vector<8x256xi1>, vector<8x256xf32>
    %106 = arith.addf %102, %105 : vector<8x256xf32>
    %107 = math.tanh %106 : vector<8x256xf32>
    %cst_31 = arith.constant 5.000000e-01 : f32
    %108 = vector.broadcast %cst_31 : f32 to vector<8x256xf32>
    %109 = arith.mulf %107, %108 : vector<8x256xf32>
    %cst_32 = arith.constant 5.000000e-01 : f32
    %110 = vector.broadcast %cst_32 : f32 to vector<8x256xf32>
    %111 = arith.addf %109, %110 : vector<8x256xf32>
    %112 = vector.extract_strided_slice %111 {offsets = [0, 0], sizes = [8, 64], strides = [1, 1]} : vector<8x256xf32> to vector<8x64xf32>
    %113 = vector.extract_strided_slice %111 {offsets = [0, 64], sizes = [8, 64], strides = [1, 1]} : vector<8x256xf32> to vector<8x64xf32>
    %114 = vector.extract_strided_slice %111 {offsets = [0, 128], sizes = [8, 64], strides = [1, 1]} : vector<8x256xf32> to vector<8x64xf32>
    %115 = vector.extract_strided_slice %107 {offsets = [0, 192], sizes = [8, 64], strides = [1, 1]} : vector<8x256xf32> to vector<8x64xf32>
    %116 = arith.mulf %113, %94 : vector<8x64xf32>
    %117 = arith.mulf %112, %115 : vector<8x64xf32>
    %118 = arith.addf %116, %117 : vector<8x64xf32>
    %119 = math.tanh %118 : vector<8x64xf32>
    %120 = arith.mulf %114, %119 : vector<8x64xf32>
    %121 = vector.extract_strided_slice %120 {offsets = [0, 0], sizes = [8, 32], strides = [1, 1]} : vector<8x64xf32> to vector<8x32xf32>
    %c24 = arith.constant 24 : index
    %c0_33 = arith.constant 0 : index
    %122 = vector.load %arg10[%c24, %c0_33] : memref<64x64xf32, #tpu.memory_space<vmem>>, vector<8x32xf32>
    tpu.vector_store %arg10[%c24, %c0_33], %121 {strides = array<i32>} : memref<64x64xf32, #tpu.memory_space<vmem>>, vector<8x32xf32>,
    %123 = vector.extract_strided_slice %120 {offsets = [0, 32], sizes = [8, 32], strides = [1, 1]} : vector<8x64xf32> to vector<8x32xf32>
    %c32_34 = arith.constant 32 : index
    %c32_35 = arith.constant 32 : index
    %124 = vector.load %arg10[%c32_34, %c32_35] : memref<64x64xf32, #tpu.memory_space<vmem>>, vector<8x32xf32>
    tpu.vector_store %arg10[%c32_34, %c32_35], %123 {strides = array<i32>} : memref<64x64xf32, #tpu.memory_space<vmem>>, vector<8x32xf32>,
    %c0_36 = arith.constant 0 : index
    %c0_37 = arith.constant 0 : index
    %125 = vector.load %arg2[%c0_36, %c0_37] : memref<64x256xf32, #tpu.memory_space<vmem>>, vector<64x256xf32>
    %cst_38 = arith.constant dense<0.000000e+00> : vector<8x256xf32>
    %126 = tpu.matmul %120, %125, %cst_38 {dimension_numbers = #tpu.dot_dimension_numbers<[1], [0], [0], [1], [0, 0, 1, 1], [], []>} : vector<8x64xf32>, vector<64x256xf32>, vector<8x256xf32> -> vector<8x256xf32>
    %127 = vector.extract_strided_slice %26 {offsets = [32, 0], sizes = [8, 256], strides = [1, 1]} : vector<64x256xf32> to vector<8x256xf32>
    %128 = vector.extract_strided_slice %26 {offsets = [24, 0], sizes = [8, 256], strides = [1, 1]} : vector<64x256xf32> to vector<8x256xf32>
    %129 = arith.select %20, %127, %128 : vector<8x256xi1>, vector<8x256xf32>
    %130 = arith.addf %126, %129 : vector<8x256xf32>
    %131 = math.tanh %130 : vector<8x256xf32>
    %cst_39 = arith.constant 5.000000e-01 : f32
    %132 = vector.broadcast %cst_39 : f32 to vector<8x256xf32>
    %133 = arith.mulf %131, %132 : vector<8x256xf32>
    %cst_40 = arith.constant 5.000000e-01 : f32
    %134 = vector.broadcast %cst_40 : f32 to vector<8x256xf32>
    %135 = arith.addf %133, %134 : vector<8x256xf32>
    %136 = vector.extract_strided_slice %135 {offsets = [0, 0], sizes = [8, 64], strides = [1, 1]} : vector<8x256xf32> to vector<8x64xf32>
    %137 = vector.extract_strided_slice %135 {offsets = [0, 64], sizes = [8, 64], strides = [1, 1]} : vector<8x256xf32> to vector<8x64xf32>
    %138 = vector.extract_strided_slice %135 {offsets = [0, 128], sizes = [8, 64], strides = [1, 1]} : vector<8x256xf32> to vector<8x64xf32>
    %139 = vector.extract_strided_slice %131 {offsets = [0, 192], sizes = [8, 64], strides = [1, 1]} : vector<8x256xf32> to vector<8x64xf32>
    %140 = arith.mulf %137, %118 : vector<8x64xf32>
    %141 = arith.mulf %136, %139 : vector<8x64xf32>
    %142 = arith.addf %140, %141 : vector<8x64xf32>
    %143 = math.tanh %142 : vector<8x64xf32>
    %144 = arith.mulf %138, %143 : vector<8x64xf32>
    %145 = vector.extract_strided_slice %144 {offsets = [0, 0], sizes = [8, 32], strides = [1, 1]} : vector<8x64xf32> to vector<8x32xf32>
    %c32_41 = arith.constant 32 : index
    %c0_42 = arith.constant 0 : index
    %146 = vector.load %arg10[%c32_41, %c0_42] : memref<64x64xf32, #tpu.memory_space<vmem>>, vector<8x32xf32>
    tpu.vector_store %arg10[%c32_41, %c0_42], %145 {strides = array<i32>} : memref<64x64xf32, #tpu.memory_space<vmem>>, vector<8x32xf32>,
    %147 = vector.extract_strided_slice %144 {offsets = [0, 32], sizes = [8, 32], strides = [1, 1]} : vector<8x64xf32> to vector<8x32xf32>
    %c24_43 = arith.constant 24 : index
    %c32_44 = arith.constant 32 : index
    %148 = vector.load %arg10[%c24_43, %c32_44] : memref<64x64xf32, #tpu.memory_space<vmem>>, vector<8x32xf32>
    tpu.vector_store %arg10[%c24_43, %c32_44], %147 {strides = array<i32>} : memref<64x64xf32, #tpu.memory_space<vmem>>, vector<8x32xf32>,
    %c0_45 = arith.constant 0 : index
    %c0_46 = arith.constant 0 : index
    %149 = vector.load %arg2[%c0_45, %c0_46] : memref<64x256xf32, #tpu.memory_space<vmem>>, vector<64x256xf32>
    %cst_47 = arith.constant dense<0.000000e+00> : vector<8x256xf32>
    %150 = tpu.matmul %144, %149, %cst_47 {dimension_numbers = #tpu.dot_dimension_numbers<[1], [0], [0], [1], [0, 0, 1, 1], [], []>} : vector<8x64xf32>, vector<64x256xf32>, vector<8x256xf32> -> vector<8x256xf32>
    %151 = vector.extract_strided_slice %26 {offsets = [40, 0], sizes = [8, 256], strides = [1, 1]} : vector<64x256xf32> to vector<8x256xf32>
    %152 = vector.extract_strided_slice %26 {offsets = [16, 0], sizes = [8, 256], strides = [1, 1]} : vector<64x256xf32> to vector<8x256xf32>
    %153 = arith.select %20, %151, %152 : vector<8x256xi1>, vector<8x256xf32>
    %154 = arith.addf %150, %153 : vector<8x256xf32>
    %155 = math.tanh %154 : vector<8x256xf32>
    %cst_48 = arith.constant 5.000000e-01 : f32
    %156 = vector.broadcast %cst_48 : f32 to vector<8x256xf32>
    %157 = arith.mulf %155, %156 : vector<8x256xf32>
    %cst_49 = arith.constant 5.000000e-01 : f32
    %158 = vector.broadcast %cst_49 : f32 to vector<8x256xf32>
    %159 = arith.addf %157, %158 : vector<8x256xf32>
    %160 = vector.extract_strided_slice %159 {offsets = [0, 0], sizes = [8, 64], strides = [1, 1]} : vector<8x256xf32> to vector<8x64xf32>
    %161 = vector.extract_strided_slice %159 {offsets = [0, 64], sizes = [8, 64], strides = [1, 1]} : vector<8x256xf32> to vector<8x64xf32>
    %162 = vector.extract_strided_slice %159 {offsets = [0, 128], sizes = [8, 64], strides = [1, 1]} : vector<8x256xf32> to vector<8x64xf32>
    %163 = vector.extract_strided_slice %155 {offsets = [0, 192], sizes = [8, 64], strides = [1, 1]} : vector<8x256xf32> to vector<8x64xf32>
    %164 = arith.mulf %161, %142 : vector<8x64xf32>
    %165 = arith.mulf %160, %163 : vector<8x64xf32>
    %166 = arith.addf %164, %165 : vector<8x64xf32>
    %167 = math.tanh %166 : vector<8x64xf32>
    %168 = arith.mulf %162, %167 : vector<8x64xf32>
    %169 = vector.extract_strided_slice %168 {offsets = [0, 0], sizes = [8, 32], strides = [1, 1]} : vector<8x64xf32> to vector<8x32xf32>
    %c40_50 = arith.constant 40 : index
    %c0_51 = arith.constant 0 : index
    %170 = vector.load %arg10[%c40_50, %c0_51] : memref<64x64xf32, #tpu.memory_space<vmem>>, vector<8x32xf32>
    tpu.vector_store %arg10[%c40_50, %c0_51], %169 {strides = array<i32>} : memref<64x64xf32, #tpu.memory_space<vmem>>, vector<8x32xf32>,
    %171 = vector.extract_strided_slice %168 {offsets = [0, 32], sizes = [8, 32], strides = [1, 1]} : vector<8x64xf32> to vector<8x32xf32>
    %c16_52 = arith.constant 16 : index
    %c32_53 = arith.constant 32 : index
    %172 = vector.load %arg10[%c16_52, %c32_53] : memref<64x64xf32, #tpu.memory_space<vmem>>, vector<8x32xf32>
    tpu.vector_store %arg10[%c16_52, %c32_53], %171 {strides = array<i32>} : memref<64x64xf32, #tpu.memory_space<vmem>>, vector<8x32xf32>,
    %c0_54 = arith.constant 0 : index
    %c0_55 = arith.constant 0 : index
    %173 = vector.load %arg2[%c0_54, %c0_55] : memref<64x256xf32, #tpu.memory_space<vmem>>, vector<64x256xf32>
    %cst_56 = arith.constant dense<0.000000e+00> : vector<8x256xf32>
    %174 = tpu.matmul %168, %173, %cst_56 {dimension_numbers = #tpu.dot_dimension_numbers<[1], [0], [0], [1], [0, 0, 1, 1], [], []>} : vector<8x64xf32>, vector<64x256xf32>, vector<8x256xf32> -> vector<8x256xf32>
    %175 = vector.extract_strided_slice %26 {offsets = [48, 0], sizes = [8, 256], strides = [1, 1]} : vector<64x256xf32> to vector<8x256xf32>
    %176 = vector.extract_strided_slice %26 {offsets = [8, 0], sizes = [8, 256], strides = [1, 1]} : vector<64x256xf32> to vector<8x256xf32>
    %177 = arith.select %20, %175, %176 : vector<8x256xi1>, vector<8x256xf32>
    %178 = arith.addf %174, %177 : vector<8x256xf32>
    %179 = math.tanh %178 : vector<8x256xf32>
    %cst_57 = arith.constant 5.000000e-01 : f32
    %180 = vector.broadcast %cst_57 : f32 to vector<8x256xf32>
    %181 = arith.mulf %179, %180 : vector<8x256xf32>
    %cst_58 = arith.constant 5.000000e-01 : f32
    %182 = vector.broadcast %cst_58 : f32 to vector<8x256xf32>
    %183 = arith.addf %181, %182 : vector<8x256xf32>
    %184 = vector.extract_strided_slice %183 {offsets = [0, 0], sizes = [8, 64], strides = [1, 1]} : vector<8x256xf32> to vector<8x64xf32>
    %185 = vector.extract_strided_slice %183 {offsets = [0, 64], sizes = [8, 64], strides = [1, 1]} : vector<8x256xf32> to vector<8x64xf32>
    %186 = vector.extract_strided_slice %183 {offsets = [0, 128], sizes = [8, 64], strides = [1, 1]} : vector<8x256xf32> to vector<8x64xf32>
    %187 = vector.extract_strided_slice %179 {offsets = [0, 192], sizes = [8, 64], strides = [1, 1]} : vector<8x256xf32> to vector<8x64xf32>
    %188 = arith.mulf %185, %166 : vector<8x64xf32>
    %189 = arith.mulf %184, %187 : vector<8x64xf32>
    %190 = arith.addf %188, %189 : vector<8x64xf32>
    %191 = math.tanh %190 : vector<8x64xf32>
    %192 = arith.mulf %186, %191 : vector<8x64xf32>
    %193 = vector.extract_strided_slice %192 {offsets = [0, 0], sizes = [8, 32], strides = [1, 1]} : vector<8x64xf32> to vector<8x32xf32>
    %c48_59 = arith.constant 48 : index
    %c0_60 = arith.constant 0 : index
    %194 = vector.load %arg10[%c48_59, %c0_60] : memref<64x64xf32, #tpu.memory_space<vmem>>, vector<8x32xf32>
    tpu.vector_store %arg10[%c48_59, %c0_60], %193 {strides = array<i32>} : memref<64x64xf32, #tpu.memory_space<vmem>>, vector<8x32xf32>,
    %195 = vector.extract_strided_slice %192 {offsets = [0, 32], sizes = [8, 32], strides = [1, 1]} : vector<8x64xf32> to vector<8x32xf32>
    %c8_61 = arith.constant 8 : index
    %c32_62 = arith.constant 32 : index
    %196 = vector.load %arg10[%c8_61, %c32_62] : memref<64x64xf32, #tpu.memory_space<vmem>>, vector<8x32xf32>
    tpu.vector_store %arg10[%c8_61, %c32_62], %195 {strides = array<i32>} : memref<64x64xf32, #tpu.memory_space<vmem>>, vector<8x32xf32>,
    %c0_63 = arith.constant 0 : index
    %c0_64 = arith.constant 0 : index
    %197 = vector.load %arg2[%c0_63, %c0_64] : memref<64x256xf32, #tpu.memory_space<vmem>>, vector<64x256xf32>
    %cst_65 = arith.constant dense<0.000000e+00> : vector<8x256xf32>
    %198 = tpu.matmul %192, %197, %cst_65 {dimension_numbers = #tpu.dot_dimension_numbers<[1], [0], [0], [1], [0, 0, 1, 1], [], []>} : vector<8x64xf32>, vector<64x256xf32>, vector<8x256xf32> -> vector<8x256xf32>
    %199 = vector.extract_strided_slice %26 {offsets = [56, 0], sizes = [8, 256], strides = [1, 1]} : vector<64x256xf32> to vector<8x256xf32>
    %200 = vector.extract_strided_slice %26 {offsets = [0, 0], sizes = [8, 256], strides = [1, 1]} : vector<64x256xf32> to vector<8x256xf32>
    %201 = arith.select %20, %199, %200 : vector<8x256xi1>, vector<8x256xf32>
    %202 = arith.addf %198, %201 : vector<8x256xf32>
    %203 = math.tanh %202 : vector<8x256xf32>
    %cst_66 = arith.constant 5.000000e-01 : f32
    %204 = vector.broadcast %cst_66 : f32 to vector<8x256xf32>
    %205 = arith.mulf %203, %204 : vector<8x256xf32>
    %cst_67 = arith.constant 5.000000e-01 : f32
    %206 = vector.broadcast %cst_67 : f32 to vector<8x256xf32>
    %207 = arith.addf %205, %206 : vector<8x256xf32>
    %208 = vector.extract_strided_slice %207 {offsets = [0, 0], sizes = [8, 64], strides = [1, 1]} : vector<8x256xf32> to vector<8x64xf32>
    %209 = vector.extract_strided_slice %207 {offsets = [0, 64], sizes = [8, 64], strides = [1, 1]} : vector<8x256xf32> to vector<8x64xf32>
    %210 = vector.extract_strided_slice %207 {offsets = [0, 128], sizes = [8, 64], strides = [1, 1]} : vector<8x256xf32> to vector<8x64xf32>
    %211 = vector.extract_strided_slice %203 {offsets = [0, 192], sizes = [8, 64], strides = [1, 1]} : vector<8x256xf32> to vector<8x64xf32>
    %212 = arith.mulf %209, %190 : vector<8x64xf32>
    %213 = arith.mulf %208, %211 : vector<8x64xf32>
    %214 = arith.addf %212, %213 : vector<8x64xf32>
    %215 = math.tanh %214 : vector<8x64xf32>
    %216 = arith.mulf %210, %215 : vector<8x64xf32>
    %217 = vector.extract_strided_slice %216 {offsets = [0, 0], sizes = [8, 32], strides = [1, 1]} : vector<8x64xf32> to vector<8x32xf32>
    %c56_68 = arith.constant 56 : index
    %c0_69 = arith.constant 0 : index
    %218 = vector.load %arg10[%c56_68, %c0_69] : memref<64x64xf32, #tpu.memory_space<vmem>>, vector<8x32xf32>
    tpu.vector_store %arg10[%c56_68, %c0_69], %217 {strides = array<i32>} : memref<64x64xf32, #tpu.memory_space<vmem>>, vector<8x32xf32>,
    %219 = vector.extract_strided_slice %216 {offsets = [0, 32], sizes = [8, 32], strides = [1, 1]} : vector<8x64xf32> to vector<8x32xf32>
    %c0_70 = arith.constant 0 : index
    %c32_71 = arith.constant 32 : index
    %220 = vector.load %arg10[%c0_70, %c32_71] : memref<64x64xf32, #tpu.memory_space<vmem>>, vector<8x32xf32>
    tpu.vector_store %arg10[%c0_70, %c32_71], %219 {strides = array<i32>} : memref<64x64xf32, #tpu.memory_space<vmem>>, vector<8x32xf32>,
    %c0_72 = arith.constant 0 : index
    %c0_73 = arith.constant 0 : index
    %221 = vector.load %arg10[%c0_72, %c0_73] : memref<64x64xf32, #tpu.memory_space<vmem>>, vector<64x64xf32>
    %c0_74 = arith.constant 0 : index
    %c0_75 = arith.constant 0 : index
    %222 = vector.load %arg4[%c0_74, %c0_75] : memref<64x256xf32, #tpu.memory_space<vmem>>, vector<64x256xf32>
    %cst_76 = arith.constant dense<0.000000e+00> : vector<64x256xf32>
    %223 = tpu.matmul %221, %222, %cst_76 {dimension_numbers = #tpu.dot_dimension_numbers<[1], [0], [0], [1], [0, 0, 1, 1], [], []>} : vector<64x64xf32>, vector<64x256xf32>, vector<64x256xf32> -> vector<64x256xf32>
    %c0_77 = arith.constant 0 : index
    %c0_78 = arith.constant 0 : index
    %224 = vector.load %arg6[%c0_77, %c0_78] : memref<1x256xf32, #tpu.memory_space<vmem>>, vector<1x256xf32>
    %225 = vector.broadcast %224 : vector<1x256xf32> to vector<64x256xf32>
    %226 = arith.addf %223, %225 : vector<64x256xf32>
    %cst_79 = arith.constant 0.000000e+00 : f32
    %227 = vector.broadcast %cst_79 : f32 to vector<8x64xf32>
    %cst_80 = arith.constant 0.000000e+00 : f32
    %228 = vector.broadcast %cst_80 : f32 to vector<8x64xf32>
    %c0_81 = arith.constant 0 : index
    %c0_82 = arith.constant 0 : index
    %229 = vector.load %arg5[%c0_81, %c0_82] : memref<64x256xf32, #tpu.memory_space<vmem>>, vector<64x256xf32>
    %cst_83 = arith.constant dense<0.000000e+00> : vector<8x256xf32>
    %230 = tpu.matmul %227, %229, %cst_83 {dimension_numbers = #tpu.dot_dimension_numbers<[1], [0], [0], [1], [0, 0, 1, 1], [], []>} : vector<8x64xf32>, vector<64x256xf32>, vector<8x256xf32> -> vector<8x256xf32>
    %231 = vector.extract_strided_slice %226 {offsets = [0, 0], sizes = [8, 256], strides = [1, 1]} : vector<64x256xf32> to vector<8x256xf32>
    %232 = vector.extract_strided_slice %226 {offsets = [56, 0], sizes = [8, 256], strides = [1, 1]} : vector<64x256xf32> to vector<8x256xf32>
    %233 = arith.select %20, %231, %232 : vector<8x256xi1>, vector<8x256xf32>
    %234 = arith.addf %230, %233 : vector<8x256xf32>
    %235 = math.tanh %234 : vector<8x256xf32>
    %cst_84 = arith.constant 5.000000e-01 : f32
    %236 = vector.broadcast %cst_84 : f32 to vector<8x256xf32>
    %237 = arith.mulf %235, %236 : vector<8x256xf32>
    %cst_85 = arith.constant 5.000000e-01 : f32
    %238 = vector.broadcast %cst_85 : f32 to vector<8x256xf32>
    %239 = arith.addf %237, %238 : vector<8x256xf32>
    %240 = vector.extract_strided_slice %239 {offsets = [0, 0], sizes = [8, 64], strides = [1, 1]} : vector<8x256xf32> to vector<8x64xf32>
    %241 = vector.extract_strided_slice %239 {offsets = [0, 64], sizes = [8, 64], strides = [1, 1]} : vector<8x256xf32> to vector<8x64xf32>
    %242 = vector.extract_strided_slice %239 {offsets = [0, 128], sizes = [8, 64], strides = [1, 1]} : vector<8x256xf32> to vector<8x64xf32>
    %243 = vector.extract_strided_slice %235 {offsets = [0, 192], sizes = [8, 64], strides = [1, 1]} : vector<8x256xf32> to vector<8x64xf32>
    %244 = arith.mulf %241, %228 : vector<8x64xf32>
    %245 = arith.mulf %240, %243 : vector<8x64xf32>
    %246 = arith.addf %244, %245 : vector<8x64xf32>
    %247 = math.tanh %246 : vector<8x64xf32>
    %248 = arith.mulf %242, %247 : vector<8x64xf32>
    %249 = vector.extract_strided_slice %248 {offsets = [0, 32], sizes = [8, 32], strides = [1, 1]} : vector<8x64xf32> to vector<8x32xf32>
    %c0_86 = arith.constant 0 : index
    %c0_87 = arith.constant 0 : index
    %250 = vector.load %arg5[%c0_86, %c0_87] : memref<64x256xf32, #tpu.memory_space<vmem>>, vector<64x256xf32>
    %cst_88 = arith.constant dense<0.000000e+00> : vector<8x256xf32>
    %251 = tpu.matmul %248, %250, %cst_88 {dimension_numbers = #tpu.dot_dimension_numbers<[1], [0], [0], [1], [0, 0, 1, 1], [], []>} : vector<8x64xf32>, vector<64x256xf32>, vector<8x256xf32> -> vector<8x256xf32>
    %252 = vector.extract_strided_slice %226 {offsets = [8, 0], sizes = [8, 256], strides = [1, 1]} : vector<64x256xf32> to vector<8x256xf32>
    %253 = vector.extract_strided_slice %226 {offsets = [48, 0], sizes = [8, 256], strides = [1, 1]} : vector<64x256xf32> to vector<8x256xf32>
    %254 = arith.select %20, %252, %253 : vector<8x256xi1>, vector<8x256xf32>
    %255 = arith.addf %251, %254 : vector<8x256xf32>
    %256 = math.tanh %255 : vector<8x256xf32>
    %cst_89 = arith.constant 5.000000e-01 : f32
    %257 = vector.broadcast %cst_89 : f32 to vector<8x256xf32>
    %258 = arith.mulf %256, %257 : vector<8x256xf32>
    %cst_90 = arith.constant 5.000000e-01 : f32
    %259 = vector.broadcast %cst_90 : f32 to vector<8x256xf32>
    %260 = arith.addf %258, %259 : vector<8x256xf32>
    %261 = vector.extract_strided_slice %260 {offsets = [0, 0], sizes = [8, 64], strides = [1, 1]} : vector<8x256xf32> to vector<8x64xf32>
    %262 = vector.extract_strided_slice %260 {offsets = [0, 64], sizes = [8, 64], strides = [1, 1]} : vector<8x256xf32> to vector<8x64xf32>
    %263 = vector.extract_strided_slice %260 {offsets = [0, 128], sizes = [8, 64], strides = [1, 1]} : vector<8x256xf32> to vector<8x64xf32>
    %264 = vector.extract_strided_slice %256 {offsets = [0, 192], sizes = [8, 64], strides = [1, 1]} : vector<8x256xf32> to vector<8x64xf32>
    %265 = arith.mulf %262, %246 : vector<8x64xf32>
    %266 = arith.mulf %261, %264 : vector<8x64xf32>
    %267 = arith.addf %265, %266 : vector<8x64xf32>
    %268 = math.tanh %267 : vector<8x64xf32>
    %269 = arith.mulf %263, %268 : vector<8x64xf32>
    %c0_91 = arith.constant 0 : index
    %c0_92 = arith.constant 0 : index
    %270 = vector.load %arg5[%c0_91, %c0_92] : memref<64x256xf32, #tpu.memory_space<vmem>>, vector<64x256xf32>
    %cst_93 = arith.constant dense<0.000000e+00> : vector<8x256xf32>
    %271 = tpu.matmul %269, %270, %cst_93 {dimension_numbers = #tpu.dot_dimension_numbers<[1], [0], [0], [1], [0, 0, 1, 1], [], []>} : vector<8x64xf32>, vector<64x256xf32>, vector<8x256xf32> -> vector<8x256xf32>
    %272 = vector.extract_strided_slice %226 {offsets = [16, 0], sizes = [8, 256], strides = [1, 1]} : vector<64x256xf32> to vector<8x256xf32>
    %273 = vector.extract_strided_slice %226 {offsets = [40, 0], sizes = [8, 256], strides = [1, 1]} : vector<64x256xf32> to vector<8x256xf32>
    %274 = arith.select %20, %272, %273 : vector<8x256xi1>, vector<8x256xf32>
    %275 = arith.addf %271, %274 : vector<8x256xf32>
    %276 = math.tanh %275 : vector<8x256xf32>
    %cst_94 = arith.constant 5.000000e-01 : f32
    %277 = vector.broadcast %cst_94 : f32 to vector<8x256xf32>
    %278 = arith.mulf %276, %277 : vector<8x256xf32>
    %cst_95 = arith.constant 5.000000e-01 : f32
    %279 = vector.broadcast %cst_95 : f32 to vector<8x256xf32>
    %280 = arith.addf %278, %279 : vector<8x256xf32>
    %281 = vector.extract_strided_slice %280 {offsets = [0, 0], sizes = [8, 64], strides = [1, 1]} : vector<8x256xf32> to vector<8x64xf32>
    %282 = vector.extract_strided_slice %280 {offsets = [0, 64], sizes = [8, 64], strides = [1, 1]} : vector<8x256xf32> to vector<8x64xf32>
    %283 = vector.extract_strided_slice %280 {offsets = [0, 128], sizes = [8, 64], strides = [1, 1]} : vector<8x256xf32> to vector<8x64xf32>
    %284 = vector.extract_strided_slice %276 {offsets = [0, 192], sizes = [8, 64], strides = [1, 1]} : vector<8x256xf32> to vector<8x64xf32>
    %285 = arith.mulf %282, %267 : vector<8x64xf32>
    %286 = arith.mulf %281, %284 : vector<8x64xf32>
    %287 = arith.addf %285, %286 : vector<8x64xf32>
    %288 = math.tanh %287 : vector<8x64xf32>
    %289 = arith.mulf %283, %288 : vector<8x64xf32>
    %c0_96 = arith.constant 0 : index
    %c0_97 = arith.constant 0 : index
    %290 = vector.load %arg5[%c0_96, %c0_97] : memref<64x256xf32, #tpu.memory_space<vmem>>, vector<64x256xf32>
    %cst_98 = arith.constant dense<0.000000e+00> : vector<8x256xf32>
    %291 = tpu.matmul %289, %290, %cst_98 {dimension_numbers = #tpu.dot_dimension_numbers<[1], [0], [0], [1], [0, 0, 1, 1], [], []>} : vector<8x64xf32>, vector<64x256xf32>, vector<8x256xf32> -> vector<8x256xf32>
    %292 = vector.extract_strided_slice %226 {offsets = [24, 0], sizes = [8, 256], strides = [1, 1]} : vector<64x256xf32> to vector<8x256xf32>
    %293 = vector.extract_strided_slice %226 {offsets = [32, 0], sizes = [8, 256], strides = [1, 1]} : vector<64x256xf32> to vector<8x256xf32>
    %294 = arith.select %20, %292, %293 : vector<8x256xi1>, vector<8x256xf32>
    %295 = arith.addf %291, %294 : vector<8x256xf32>
    %296 = math.tanh %295 : vector<8x256xf32>
    %cst_99 = arith.constant 5.000000e-01 : f32
    %297 = vector.broadcast %cst_99 : f32 to vector<8x256xf32>
    %298 = arith.mulf %296, %297 : vector<8x256xf32>
    %cst_100 = arith.constant 5.000000e-01 : f32
    %299 = vector.broadcast %cst_100 : f32 to vector<8x256xf32>
    %300 = arith.addf %298, %299 : vector<8x256xf32>
    %301 = vector.extract_strided_slice %300 {offsets = [0, 0], sizes = [8, 64], strides = [1, 1]} : vector<8x256xf32> to vector<8x64xf32>
    %302 = vector.extract_strided_slice %300 {offsets = [0, 64], sizes = [8, 64], strides = [1, 1]} : vector<8x256xf32> to vector<8x64xf32>
    %303 = vector.extract_strided_slice %300 {offsets = [0, 128], sizes = [8, 64], strides = [1, 1]} : vector<8x256xf32> to vector<8x64xf32>
    %304 = vector.extract_strided_slice %296 {offsets = [0, 192], sizes = [8, 64], strides = [1, 1]} : vector<8x256xf32> to vector<8x64xf32>
    %305 = arith.mulf %302, %287 : vector<8x64xf32>
    %306 = arith.mulf %301, %304 : vector<8x64xf32>
    %307 = arith.addf %305, %306 : vector<8x64xf32>
    %308 = math.tanh %307 : vector<8x64xf32>
    %309 = arith.mulf %303, %308 : vector<8x64xf32>
    %c0_101 = arith.constant 0 : index
    %c0_102 = arith.constant 0 : index
    %310 = vector.load %arg5[%c0_101, %c0_102] : memref<64x256xf32, #tpu.memory_space<vmem>>, vector<64x256xf32>
    %cst_103 = arith.constant dense<0.000000e+00> : vector<8x256xf32>
    %311 = tpu.matmul %309, %310, %cst_103 {dimension_numbers = #tpu.dot_dimension_numbers<[1], [0], [0], [1], [0, 0, 1, 1], [], []>} : vector<8x64xf32>, vector<64x256xf32>, vector<8x256xf32> -> vector<8x256xf32>
    %312 = vector.extract_strided_slice %226 {offsets = [32, 0], sizes = [8, 256], strides = [1, 1]} : vector<64x256xf32> to vector<8x256xf32>
    %313 = vector.extract_strided_slice %226 {offsets = [24, 0], sizes = [8, 256], strides = [1, 1]} : vector<64x256xf32> to vector<8x256xf32>
    %314 = arith.select %20, %312, %313 : vector<8x256xi1>, vector<8x256xf32>
    %315 = arith.addf %311, %314 : vector<8x256xf32>
    %316 = math.tanh %315 : vector<8x256xf32>
    %cst_104 = arith.constant 5.000000e-01 : f32
    %317 = vector.broadcast %cst_104 : f32 to vector<8x256xf32>
    %318 = arith.mulf %316, %317 : vector<8x256xf32>
    %cst_105 = arith.constant 5.000000e-01 : f32
    %319 = vector.broadcast %cst_105 : f32 to vector<8x256xf32>
    %320 = arith.addf %318, %319 : vector<8x256xf32>
    %321 = vector.extract_strided_slice %320 {offsets = [0, 0], sizes = [8, 64], strides = [1, 1]} : vector<8x256xf32> to vector<8x64xf32>
    %322 = vector.extract_strided_slice %320 {offsets = [0, 64], sizes = [8, 64], strides = [1, 1]} : vector<8x256xf32> to vector<8x64xf32>
    %323 = vector.extract_strided_slice %320 {offsets = [0, 128], sizes = [8, 64], strides = [1, 1]} : vector<8x256xf32> to vector<8x64xf32>
    %324 = vector.extract_strided_slice %316 {offsets = [0, 192], sizes = [8, 64], strides = [1, 1]} : vector<8x256xf32> to vector<8x64xf32>
    %325 = arith.mulf %322, %307 : vector<8x64xf32>
    %326 = arith.mulf %321, %324 : vector<8x64xf32>
    %327 = arith.addf %325, %326 : vector<8x64xf32>
    %328 = math.tanh %327 : vector<8x64xf32>
    %329 = arith.mulf %323, %328 : vector<8x64xf32>
    %c0_106 = arith.constant 0 : index
    %c0_107 = arith.constant 0 : index
    %330 = vector.load %arg5[%c0_106, %c0_107] : memref<64x256xf32, #tpu.memory_space<vmem>>, vector<64x256xf32>
    %cst_108 = arith.constant dense<0.000000e+00> : vector<8x256xf32>
    %331 = tpu.matmul %329, %330, %cst_108 {dimension_numbers = #tpu.dot_dimension_numbers<[1], [0], [0], [1], [0, 0, 1, 1], [], []>} : vector<8x64xf32>, vector<64x256xf32>, vector<8x256xf32> -> vector<8x256xf32>
    %332 = vector.extract_strided_slice %226 {offsets = [40, 0], sizes = [8, 256], strides = [1, 1]} : vector<64x256xf32> to vector<8x256xf32>
    %333 = vector.extract_strided_slice %226 {offsets = [16, 0], sizes = [8, 256], strides = [1, 1]} : vector<64x256xf32> to vector<8x256xf32>
    %334 = arith.select %20, %332, %333 : vector<8x256xi1>, vector<8x256xf32>
    %335 = arith.addf %331, %334 : vector<8x256xf32>
    %336 = math.tanh %335 : vector<8x256xf32>
    %cst_109 = arith.constant 5.000000e-01 : f32
    %337 = vector.broadcast %cst_109 : f32 to vector<8x256xf32>
    %338 = arith.mulf %336, %337 : vector<8x256xf32>
    %cst_110 = arith.constant 5.000000e-01 : f32
    %339 = vector.broadcast %cst_110 : f32 to vector<8x256xf32>
    %340 = arith.addf %338, %339 : vector<8x256xf32>
    %341 = vector.extract_strided_slice %340 {offsets = [0, 0], sizes = [8, 64], strides = [1, 1]} : vector<8x256xf32> to vector<8x64xf32>
    %342 = vector.extract_strided_slice %340 {offsets = [0, 64], sizes = [8, 64], strides = [1, 1]} : vector<8x256xf32> to vector<8x64xf32>
    %343 = vector.extract_strided_slice %340 {offsets = [0, 128], sizes = [8, 64], strides = [1, 1]} : vector<8x256xf32> to vector<8x64xf32>
    %344 = vector.extract_strided_slice %336 {offsets = [0, 192], sizes = [8, 64], strides = [1, 1]} : vector<8x256xf32> to vector<8x64xf32>
    %345 = arith.mulf %342, %327 : vector<8x64xf32>
    %346 = arith.mulf %341, %344 : vector<8x64xf32>
    %347 = arith.addf %345, %346 : vector<8x64xf32>
    %348 = math.tanh %347 : vector<8x64xf32>
    %349 = arith.mulf %343, %348 : vector<8x64xf32>
    %c0_111 = arith.constant 0 : index
    %c0_112 = arith.constant 0 : index
    %350 = vector.load %arg5[%c0_111, %c0_112] : memref<64x256xf32, #tpu.memory_space<vmem>>, vector<64x256xf32>
    %cst_113 = arith.constant dense<0.000000e+00> : vector<8x256xf32>
    %351 = tpu.matmul %349, %350, %cst_113 {dimension_numbers = #tpu.dot_dimension_numbers<[1], [0], [0], [1], [0, 0, 1, 1], [], []>} : vector<8x64xf32>, vector<64x256xf32>, vector<8x256xf32> -> vector<8x256xf32>
    %352 = vector.extract_strided_slice %226 {offsets = [48, 0], sizes = [8, 256], strides = [1, 1]} : vector<64x256xf32> to vector<8x256xf32>
    %353 = vector.extract_strided_slice %226 {offsets = [8, 0], sizes = [8, 256], strides = [1, 1]} : vector<64x256xf32> to vector<8x256xf32>
    %354 = arith.select %20, %352, %353 : vector<8x256xi1>, vector<8x256xf32>
    %355 = arith.addf %351, %354 : vector<8x256xf32>
    %356 = math.tanh %355 : vector<8x256xf32>
    %cst_114 = arith.constant 5.000000e-01 : f32
    %357 = vector.broadcast %cst_114 : f32 to vector<8x256xf32>
    %358 = arith.mulf %356, %357 : vector<8x256xf32>
    %cst_115 = arith.constant 5.000000e-01 : f32
    %359 = vector.broadcast %cst_115 : f32 to vector<8x256xf32>
    %360 = arith.addf %358, %359 : vector<8x256xf32>
    %361 = vector.extract_strided_slice %360 {offsets = [0, 0], sizes = [8, 64], strides = [1, 1]} : vector<8x256xf32> to vector<8x64xf32>
    %362 = vector.extract_strided_slice %360 {offsets = [0, 64], sizes = [8, 64], strides = [1, 1]} : vector<8x256xf32> to vector<8x64xf32>
    %363 = vector.extract_strided_slice %360 {offsets = [0, 128], sizes = [8, 64], strides = [1, 1]} : vector<8x256xf32> to vector<8x64xf32>
    %364 = vector.extract_strided_slice %356 {offsets = [0, 192], sizes = [8, 64], strides = [1, 1]} : vector<8x256xf32> to vector<8x64xf32>
    %365 = arith.mulf %362, %347 : vector<8x64xf32>
    %366 = arith.mulf %361, %364 : vector<8x64xf32>
    %367 = arith.addf %365, %366 : vector<8x64xf32>
    %368 = math.tanh %367 : vector<8x64xf32>
    %369 = arith.mulf %363, %368 : vector<8x64xf32>
    %c0_116 = arith.constant 0 : index
    %c0_117 = arith.constant 0 : index
    %370 = vector.load %arg5[%c0_116, %c0_117] : memref<64x256xf32, #tpu.memory_space<vmem>>, vector<64x256xf32>
    %cst_118 = arith.constant dense<0.000000e+00> : vector<8x256xf32>
    %371 = tpu.matmul %369, %370, %cst_118 {dimension_numbers = #tpu.dot_dimension_numbers<[1], [0], [0], [1], [0, 0, 1, 1], [], []>} : vector<8x64xf32>, vector<64x256xf32>, vector<8x256xf32> -> vector<8x256xf32>
    %372 = vector.extract_strided_slice %226 {offsets = [56, 0], sizes = [8, 256], strides = [1, 1]} : vector<64x256xf32> to vector<8x256xf32>
    %373 = vector.extract_strided_slice %226 {offsets = [0, 0], sizes = [8, 256], strides = [1, 1]} : vector<64x256xf32> to vector<8x256xf32>
    %374 = arith.select %20, %372, %373 : vector<8x256xi1>, vector<8x256xf32>
    %375 = arith.addf %371, %374 : vector<8x256xf32>
    %376 = math.tanh %375 : vector<8x256xf32>
    %cst_119 = arith.constant 5.000000e-01 : f32
    %377 = vector.broadcast %cst_119 : f32 to vector<8x256xf32>
    %378 = arith.mulf %376, %377 : vector<8x256xf32>
    %cst_120 = arith.constant 5.000000e-01 : f32
    %379 = vector.broadcast %cst_120 : f32 to vector<8x256xf32>
    %380 = arith.addf %378, %379 : vector<8x256xf32>
    %381 = vector.extract_strided_slice %380 {offsets = [0, 0], sizes = [8, 64], strides = [1, 1]} : vector<8x256xf32> to vector<8x64xf32>
    %382 = vector.extract_strided_slice %380 {offsets = [0, 64], sizes = [8, 64], strides = [1, 1]} : vector<8x256xf32> to vector<8x64xf32>
    %383 = vector.extract_strided_slice %380 {offsets = [0, 128], sizes = [8, 64], strides = [1, 1]} : vector<8x256xf32> to vector<8x64xf32>
    %384 = vector.extract_strided_slice %376 {offsets = [0, 192], sizes = [8, 64], strides = [1, 1]} : vector<8x256xf32> to vector<8x64xf32>
    %385 = arith.mulf %382, %367 : vector<8x64xf32>
    %386 = arith.mulf %381, %384 : vector<8x64xf32>
    %387 = arith.addf %385, %386 : vector<8x64xf32>
    %388 = math.tanh %387 : vector<8x64xf32>
    %389 = arith.mulf %383, %388 : vector<8x64xf32>
    %390 = vector.extract_strided_slice %389 {offsets = [0, 0], sizes = [8, 32], strides = [1, 1]} : vector<8x64xf32> to vector<8x32xf32>
    %391 = tpu.concatenate %390, %249 in 1 : vector<8x32xf32>, vector<8x32xf32> -> vector<8x64xf32>
    %c0_121 = arith.constant 0 : index
    %c0_122 = arith.constant 0 : index
    %392 = vector.load %arg7[%c0_121, %c0_122] : memref<64x1024xf32, #tpu.memory_space<vmem>>, vector<64x1024xf32>
    %cst_123 = arith.constant dense<0.000000e+00> : vector<8x1024xf32>
    %393 = tpu.matmul %391, %392, %cst_123 {dimension_numbers = #tpu.dot_dimension_numbers<[1], [0], [0], [1], [0, 0, 1, 1], [], []>} : vector<8x64xf32>, vector<64x1024xf32>, vector<8x1024xf32> -> vector<8x1024xf32>
    %c0_124 = arith.constant 0 : index
    %c0_125 = arith.constant 0 : index
    %394 = vector.load %arg8[%c0_124, %c0_125] : memref<1x1024xf32, #tpu.memory_space<vmem>>, vector<1x1024xf32>
    %395 = vector.broadcast %394 : vector<1x1024xf32> to vector<8x1024xf32>
    %396 = arith.addf %393, %395 : vector<8x1024xf32>
    %c0_126 = arith.constant 0 : index
    %c0_127 = arith.constant 0 : index
    %397 = vector.load %arg9[%c0_126, %c0_127] : memref<8x1024xf32, #tpu.memory_space<vmem>>, vector<8x1024xf32>
    tpu.vector_store %arg9[%c0_126, %c0_127], %396 {strides = array<i32>} : memref<8x1024xf32, #tpu.memory_space<vmem>>, vector<8x1024xf32>,
    return
  }
}

</mosaic_0001>

<llo_original>
// kernel: _lambda_.1
$region0: #{_lambda_.1}
  #allocation0 [shape = 'u32[]', space=smem, size = 0x4, offset = 0x4, fixed_abs, tag = 'smem constant byte address 0x4 - core index']
  #allocation1 [shape = 'u32[144,128]{1,0:T(1,128)}', space=vmem, size = 0x12000, scoped, tag = 'internal scratch']
  #allocation2 [shape = 'f32[64,64]{1,0:T(8,128)}', space=vmem, size = 0x8000, scoped, tag = 'scratch operand']
  %s0 = inlined_call_operand.vmem [shape: f32[64,32], index: 0, kind: input, shape index: {}]
  %s1 = inlined_call_operand.vmem [shape: f32[32,256], index: 1, kind: input, shape index: {}]
  %s2 = inlined_call_operand.hbm [shape: f32[64,256], index: 2, kind: input, shape index: {}]
  %s3 = inlined_call_operand.vmem [shape: f32[1,256], index: 3, kind: input, shape index: {}]
  %s4 = inlined_call_operand.hbm [shape: f32[64,256], index: 4, kind: input, shape index: {}]
  %s5 = inlined_call_operand.vmem [shape: f32[64,256], index: 5, kind: input, shape index: {}]
  %s6 = inlined_call_operand.vmem [shape: f32[1,256], index: 6, kind: input, shape index: {}]
  %s7 = inlined_call_operand.hbm [shape: f32[64,1024], index: 7, kind: input, shape index: {}]
  %s8 = inlined_call_operand.vmem [shape: f32[1,1024], index: 8, kind: input, shape index: {}]
  %s9 = inlined_call_operand.vmem [shape: f32[8,1024], index: 9, kind: output, shape index: {}]
  %s10 = sld [smem:[#allocation0]]
  $region58: #{_lambda_.1} parent=0
    _
  %s12 = ssub.s32 1, %s10
  %s13 = scalar_select 0, %s12, %s10
  $region1: #{_lambda_.1} parent=0
    #allocation3 [shape = 'u8[65536]{0}', space=vmem, size = 0x10000, scoped, tag = 'input window, operand 2, single buffered']
    #allocation4 [shape = 's32[1]{0}', space=sflag, size = 0x4, scoped, tag = 'scoped memory for _lambda_.1']
    #allocation5 [shape = 'u8[65536]{0}', space=vmem, size = 0x10000, scoped, tag = 'input window, operand 4, single buffered']
    #allocation6 [shape = 's32[1]{0}', space=sflag, size = 0x4, scoped, tag = 'scoped memory for _lambda_.1']
    #allocation7 [shape = 'u8[262144]{0}', space=vmem, size = 0x40000, scoped, tag = 'input window, operand 7, single buffered']
    %14 = vsyncpa [#allocation4], 0
    %15 = vsyncpa [#allocation6], 0
    // Predicated region
    $region2: #{_lambda_.1} parent=1 // pred_check
      _
    $region3: #{_lambda_.1} parent=1 // pred_check_branch
      %17 = sbr.rel (0) target = $region5
    $region4: #{_lambda_.1} parent=1 // pred_region
      _
    $region5: #{_lambda_.1} parent=1 // pred_fallthru
      _
    // Predicated region
    $region6: #{_lambda_.1} parent=1 // pred_check
      _
    $region7: #{_lambda_.1} parent=1 // pred_check_branch
      %19 = sbr.rel (0) target = $region9
    $region8: #{_lambda_.1} parent=1 // pred_region
      _
    $region9: #{_lambda_.1} parent=1 // pred_fallthru
      _
    // Predicated region
    $region10: #{_lambda_.1} parent=1 // pred_check
      _
    $region11: #{_lambda_.1} parent=1 // pred_check_branch
      %21 = sbr.rel (0) target = $region13
    $region12: #{_lambda_.1} parent=1 // pred_region
      %s23 = ssub.s32 2048, 2048
      %24 = vsyncadd [#allocation4], %s23
      %s25 = sshll.u32 [#allocation3], 4
      %s26 = int_to_ptr.vmem [resolvable:$true] %s25
      %31 = dma.hbm_to_vmem [thread:$0]  %s2, 2048, %s26, [#allocation4], 256, 256, 16
    $region13: #{_lambda_.1} parent=1 // pred_fallthru
      _
    // Predicated region
    $region14: #{_lambda_.1} parent=1 // pred_check
      _
    $region15: #{_lambda_.1} parent=1 // pred_check_branch
      %33 = sbr.rel (0) target = $region17
    $region16: #{_lambda_.1} parent=1 // pred_region
      _
    $region17: #{_lambda_.1} parent=1 // pred_fallthru
      _
    // Predicated region
    $region18: #{_lambda_.1} parent=1 // pred_check
      _
    $region19: #{_lambda_.1} parent=1 // pred_check_branch
      %35 = sbr.rel (0) target = $region21
    $region20: #{_lambda_.1} parent=1 // pred_region
      %s37 = ssub.s32 2048, 2048
      %38 = vsyncadd [#allocation6], %s37
      %s39 = sshll.u32 [#allocation5], 4
      %s40 = int_to_ptr.vmem [resolvable:$true] %s39
      %45 = dma.hbm_to_vmem [thread:$0]  %s4, 2048, %s40, [#allocation6], 256, 256, 16
    $region21: #{_lambda_.1} parent=1 // pred_fallthru
      _
    // Predicated region
    $region22: #{_lambda_.1} parent=1 // pred_check
      _
    $region23: #{_lambda_.1} parent=1 // pred_check_branch
      %47 = sbr.rel (0) target = $region25
    $region24: #{_lambda_.1} parent=1 // pred_region
      _
    $region25: #{_lambda_.1} parent=1 // pred_fallthru
      _
    // Predicated region
    $region26: #{_lambda_.1} parent=1 // pred_check
      _
    $region27: #{_lambda_.1} parent=1 // pred_check_branch
      %49 = sbr.rel (0) target = $region29
    $region28: #{_lambda_.1} parent=1 // pred_region
      _
    $region29: #{_lambda_.1} parent=1 // pred_fallthru
      _
    // Predicated region
    $region30: #{_lambda_.1} parent=1 // pred_check
      _
    $region31: #{_lambda_.1} parent=1 // pred_check_branch
      %51 = sbr.rel (0) target = $region33
    $region32: #{_lambda_.1} parent=1 // pred_region
      %s53 = ssub.s32 8192, 8192
      %54 = vsyncadd [#allocation6], %s53
      %s55 = sshll.u32 [#allocation7], 4
      %s56 = int_to_ptr.vmem [resolvable:$true] %s55
      %61 = dma.hbm_to_vmem [thread:$0]  %s7, 8192, %s56, [#allocation6], 1024, 1024, 64
    $region33: #{_lambda_.1} parent=1 // pred_fallthru
      _
    // Predicated region
    $region34: #{_lambda_.1} parent=1 // pred_check
      _
    $region35: #{_lambda_.1} parent=1 // pred_check_branch
      %63 = sbr.rel (0) target = $region37
    $region36: #{_lambda_.1} parent=1 // pred_region
      _
    $region37: #{_lambda_.1} parent=1 // pred_fallthru
      _
    // Predicated region
    $region38: #{_lambda_.1} parent=1 // pred_check
      _
    $region39: #{_lambda_.1} parent=1 // pred_check_branch
      %65 = sbr.rel (0) target = $region41
    $region40: #{_lambda_.1} parent=1 // pred_region
      %66 = dma.done [#allocation4], 2048
    $region41: #{_lambda_.1} parent=1 // pred_fallthru
      _
    // Predicated region
    $region42: #{_lambda_.1} parent=1 // pred_check
      _
    $region43: #{_lambda_.1} parent=1 // pred_check_branch
      %68 = sbr.rel (0) target = $region45
    $region44: #{_lambda_.1} parent=1 // pred_region
      %69 = dma.done [#allocation6], 2048
    $region45: #{_lambda_.1} parent=1 // pred_fallthru
      _
    // Predicated region
    $region46: #{_lambda_.1} parent=1 // pred_check
      _
    $region47: #{_lambda_.1} parent=1 // pred_check_branch
      %71 = sbr.rel (0) target = $region49
    $region48: #{_lambda_.1} parent=1 // pred_region
      %72 = dma.done [#allocation6], 8192
    $region49: #{_lambda_.1} parent=1 // pred_fallthru
      _
    %v73 = vlaneseq
    %v74 = vand.u32 %v73, 127
    %v75 = vadd.s32 %v74, 128
    %vm76 = vcmp.lt.s32.totalorder %v74, 32
    %vm77 = vcmp.lt.s32.totalorder %v75, 32
    %vm78 = vcmp.ge.s32.totalorder %v74, 64
    %vm79 = vcmp.ge.s32.totalorder %v75, 64
    %vm80 = vcmp.lt.s32.totalorder %v74, 96
    %vm81 = vcmp.lt.s32.totalorder %v75, 96
    %vm82 = vmand %vm78, %vm80
    %vm83 = vmand %vm79, %vm81
    %vm84 = vmor %vm76, %vm82
    %vm85 = vmor %vm77, %vm83
    %vm86 = vcmp.ge.s32.totalorder %v74, 128
    %vm87 = vcmp.ge.s32.totalorder %v75, 128
    %vm88 = vcmp.lt.s32.totalorder %v74, 160
    %vm89 = vcmp.lt.s32.totalorder %v75, 160
    %vm90 = vmand %vm86, %vm88
    %vm91 = vmand %vm87, %vm89
    %vm92 = vmor %vm84, %vm90
    %vm93 = vmor %vm85, %vm91
    %vm94 = vcmp.ge.s32.totalorder %v74, 192
    %vm95 = vcmp.ge.s32.totalorder %v75, 192
    %vm96 = vcmp.lt.s32.totalorder %v74, 224
    %vm97 = vcmp.lt.s32.totalorder %v75, 224
    %vm98 = vmand %vm94, %vm96
    %vm99 = vmand %vm95, %vm97
    %vm100 = vmor %vm92, %vm98
    %vm101 = vmor %vm93, %vm99
    %v102 = vld [vmem:[%s0] sm:$0xff]
    %v103 = vld [vmem:[%s0 + $0x8] sm:$0xff]
    %v104 = vld [vmem:[%s0 + $0x10] sm:$0xff]
    %v105 = vld [vmem:[%s0 + $0x18] sm:$0xff]
    %v106 = vld [vmem:[%s0 + $0x20] sm:$0xff]
    %v107 = vld [vmem:[%s0 + $0x28] sm:$0xff]
    %v108 = vld [vmem:[%s0 + $0x30] sm:$0xff]
    %v109 = vld [vmem:[%s0 + $0x38] sm:$0xff]
    %v110 = vld [vmem:[%s1] sm:$0xff]
    %v111 = vld [vmem:[%s1 + $0x8] sm:$0xff]
    %v112 = vld [vmem:[%s1 + $0x10] sm:$0xff]
    %v113 = vld [vmem:[%s1 + $0x18] sm:$0xff]
    %v114 = vld [vmem:[%s1 + $0x20] sm:$0xff]
    %v115 = vld [vmem:[%s1 + $0x28] sm:$0xff]
    %v116 = vld [vmem:[%s1 + $0x30] sm:$0xff]
    %v117 = vld [vmem:[%s1 + $0x38] sm:$0xff]
    %v118 = vld [vmem:[%s3] sm:$0x3]
    %v120 = vlaneseq
    %v121 = vshrl.u32 %v120, 7
    %v122 = vsub.s32 0, %v121
    %v123 = vrot.slane %v118, %v122
    %v124 = vlaneseq
    %v125 = vshrl.u32 %v124, 7
    %v126 = vsub.s32 1, %v125
    %v127 = vrot.slane %v118, %v126
    %vm130 = vcmask 261120
    %v132 = vsel %vm130, %v102, 0
    %v135 = vsel %vm130, %v103, 0
    %v138 = vsel %vm130, %v104, 0
    %v141 = vsel %vm130, %v105, 0
    %v144 = vsel %vm130, %v106, 0
    %v147 = vsel %vm130, %v107, 0
    %v150 = vsel %vm130, %v108, 0
    %v153 = vsel %vm130, %v109, 0
    %155 = vmatprep.subr.mxu0 0.0
    %156 = vmatpush1.msra.mxu0 0.0
    %157 = vmatprep.subr.mxu0 0.0
    %158 = vmatpush1.msra.mxu0 0.0
    %159 = vmatprep.subr.mxu0 0.0
    %160 = vmatpush1.msra.mxu0 0.0
    %161 = vmatprep.subr.mxu0 0.0
    %162 = vmatpush1.msra.mxu0 0.0
    %163 = vmatprep.subr.mxu0 0.0
    %164 = vmatpush1.msra.mxu0 0.0
    %165 = vmatprep.subr.mxu0 0.0
    %166 = vmatpush1.msra.mxu0 0.0
    %167 = vmatprep.subr.mxu0 0.0
    %168 = vmatpush1.msra.mxu0 0.0
    %169 = vmatprep.subr.mxu0 0.0
    %170 = vmatpush1.msra.mxu0 0.0
    %171 = vmatprep.subr.mxu0 0.0
    %172 = vmatpush1.msra.mxu0 0.0
    %173 = vmatprep.subr.mxu0 0.0
    %174 = vmatpush1.msra.mxu0 0.0
    %175 = vmatprep.subr.mxu0 0.0
    %176 = vmatpush1.msra.mxu0 0.0
    %177 = vmatprep.subr.mxu0 0.0
    %178 = vmatpush1.msra.mxu0 0.0
    %179 = vmatprep.subr.mxu0 %v117
    %180 = vmatpush1.msra.mxu0 %v116
    %181 = vmatprep.subr.mxu0 %v115
    %182 = vmatpush1.msra.mxu0 %v114
    %183 = vmatprep.subr.mxu0 %v113
    %184 = vmatpush1.msra.mxu0 %v112
    %185 = vmatprep.subr.mxu0 %v111
    %186 = vmatpush1.msra.mxu0 %v110
    %187 = vmatprep.subr.mxu0 0.0
    %188 = vmatpush2.msra.mxu0 0.0
    %189 = vmatprep.subr.mxu0 0.0
    %190 = vmatpush2.msra.mxu0 0.0
    %191 = vmatprep.subr.mxu0 0.0
    %192 = vmatpush2.msra.mxu0 0.0
    %193 = vmatprep.subr.mxu0 0.0
    %194 = vmatpush2.msra.mxu0 0.0
    %195 = vmatprep.subr.mxu0 0.0
    %196 = vmatpush2.msra.mxu0 0.0
    %197 = vmatprep.subr.mxu0 0.0
    %198 = vmatpush2.msra.mxu0 0.0
    %199 = vmatprep.subr.mxu0 0.0
    %200 = vmatpush2.msra.mxu0 0.0
    %201 = vmatprep.subr.mxu0 0.0
    %202 = vmatpush2.msra.mxu0 0.0
    %203 = vmatprep.subr.mxu0 0.0
    %204 = vmatpush2.msra.mxu0 0.0
    %205 = vmatprep.subr.mxu0 0.0
    %206 = vmatpush2.msra.mxu0 0.0
    %207 = vmatprep.subr.mxu0 0.0
    %208 = vmatpush2.msra.mxu0 0.0
    %209 = vmatprep.subr.mxu0 0.0
    %210 = vmatpush2.msra.mxu0 0.0
    %211 = vmatprep.subr.mxu0 0.0
    %212 = vmatpush2.msra.mxu0 0.0
    %213 = vmatprep.subr.mxu0 0.0
    %214 = vmatpush2.msra.mxu0 0.0
    %215 = vmatprep.subr.mxu0 0.0
    %216 = vmatpush2.msra.mxu0 0.0
    %217 = vmatprep.subr.mxu0 0.0
    %218 = vmatpush2.msra.mxu0 0.0
    %219 = vmatprep.mubr.f32.mxu0 0.0
    %220 = vmatmul.mubr.f32.gmra.mxu0 %v132
    %v221 = vpop.f32.mrf.mxu0
    %v222 = vadd.f32 %v123, %v221
    %v223 = vpop.f32.mrf.mxu0
    %v224 = vadd.f32 %v127, %v223
    %225 = vmatprep.mubr.f32.mxu0 0.0
    %226 = vmatmul.mubr.f32.gmra.mxu0 %v135
    %v227 = vpop.f32.mrf.mxu0
    %v228 = vadd.f32 %v123, %v227
    %v229 = vpop.f32.mrf.mxu0
    %v230 = vadd.f32 %v127, %v229
    %231 = vmatprep.mubr.f32.mxu0 0.0
    %232 = vmatmul.mubr.f32.gmra.mxu0 %v138
    %v233 = vpop.f32.mrf.mxu0
    %v234 = vadd.f32 %v123, %v233
    %v235 = vpop.f32.mrf.mxu0
    %v236 = vadd.f32 %v127, %v235
    %237 = vmatprep.mubr.f32.mxu0 0.0
    %238 = vmatmul.mubr.f32.gmra.mxu0 %v141
    %v239 = vpop.f32.mrf.mxu0
    %v240 = vadd.f32 %v123, %v239
    %v241 = vpop.f32.mrf.mxu0
    %v242 = vadd.f32 %v127, %v241
    %243 = vmatprep.mubr.f32.mxu0 0.0
    %244 = vmatmul.mubr.f32.gmra.mxu0 %v144
    %v245 = vpop.f32.mrf.mxu0
    %v246 = vadd.f32 %v123, %v245
    %v247 = vpop.f32.mrf.mxu0
    %v248 = vadd.f32 %v127, %v247
    %249 = vmatprep.mubr.f32.mxu0 0.0
    %250 = vmatmul.mubr.f32.gmra.mxu0 %v147
    %v251 = vpop.f32.mrf.mxu0
    %v252 = vadd.f32 %v123, %v251
    %v253 = vpop.f32.mrf.mxu0
    %v254 = vadd.f32 %v127, %v253
    %255 = vmatprep.mubr.f32.mxu0 0.0
    %256 = vmatmul.mubr.f32.gmra.mxu0 %v150
    %v257 = vpop.f32.mrf.mxu0
    %v258 = vadd.f32 %v123, %v257
    %v259 = vpop.f32.mrf.mxu0
    %v260 = vadd.f32 %v127, %v259
    %261 = vmatprep.mubr.f32.mxu0 0.0
    %262 = vmatmul.mubr.f32.gmra.mxu0 %v153
    %v263 = vpop.f32.mrf.mxu0
    %v264 = vadd.f32 %v123, %v263
    %v265 = vpop.f32.mrf.mxu0
    %v266 = vadd.f32 %v127, %v265
    %267 = vdwg.mxu0
    %v268 = vld [vmem:[#allocation3] sm:$0xff]
    %v269 = vld [vmem:[#allocation3 + $0x8] sm:$0xff]
    %v270 = vld [vmem:[#allocation3 + $0x10] sm:$0xff]
    %v271 = vld [vmem:[#allocation3 + $0x18] sm:$0xff]
    %v272 = vld [vmem:[#allocation3 + $0x20] sm:$0xff]
    %v273 = vld [vmem:[#allocation3 + $0x28] sm:$0xff]
    %v274 = vld [vmem:[#allocation3 + $0x30] sm:$0xff]
    %v275 = vld [vmem:[#allocation3 + $0x38] sm:$0xff]
    %v276 = vld [vmem:[#allocation3 + $0x40] sm:$0xff]
    %v277 = vld [vmem:[#allocation3 + $0x48] sm:$0xff]
    %v278 = vld [vmem:[#allocation3 + $0x50] sm:$0xff]
    %v279 = vld [vmem:[#allocation3 + $0x58] sm:$0xff]
    %v280 = vld [vmem:[#allocation3 + $0x60] sm:$0xff]
    %v281 = vld [vmem:[#allocation3 + $0x68] sm:$0xff]
    %v282 = vld [vmem:[#allocation3 + $0x70] sm:$0xff]
    %v283 = vld [vmem:[#allocation3 + $0x78] sm:$0xff]
    %v284 = vsel %vm100, %v222, %v264
    %v285 = vsel %vm101, %v224, %v266
    %vm286 = vcmask 523264
    %v288 = vsel %vm286, 0.0, 0
    %290 = vmatprep.subr.mxu0 0.0
    %291 = vmatpush1.msra.mxu0 0.0
    %292 = vmatprep.subr.mxu0 0.0
    %293 = vmatpush1.msra.mxu0 0.0
    %294 = vmatprep.subr.mxu0 0.0
    %295 = vmatpush1.msra.mxu0 0.0
    %296 = vmatprep.subr.mxu0 0.0
    %297 = vmatpush1.msra.mxu0 0.0
    %298 = vmatprep.subr.mxu0 0.0
    %299 = vmatpush1.msra.mxu0 0.0
    %300 = vmatprep.subr.mxu0 0.0
    %301 = vmatpush1.msra.mxu0 0.0
    %302 = vmatprep.subr.mxu0 0.0
    %303 = vmatpush1.msra.mxu0 0.0
    %304 = vmatprep.subr.mxu0 0.0
    %305 = vmatpush1.msra.mxu0 0.0
    %306 = vmatprep.subr.mxu0 %v283
    %307 = vmatpush1.msra.mxu0 %v282
    %308 = vmatprep.subr.mxu0 %v281
    %309 = vmatpush1.msra.mxu0 %v280
    %310 = vmatprep.subr.mxu0 %v279
    %311 = vmatpush1.msra.mxu0 %v278
    %312 = vmatprep.subr.mxu0 %v277
    %313 = vmatpush1.msra.mxu0 %v276
    %314 = vmatprep.subr.mxu0 %v275
    %315 = vmatpush1.msra.mxu0 %v274
    %316 = vmatprep.subr.mxu0 %v273
    %317 = vmatpush1.msra.mxu0 %v272
    %318 = vmatprep.subr.mxu0 %v271
    %319 = vmatpush1.msra.mxu0 %v270
    %320 = vmatprep.subr.mxu0 %v269
    %321 = vmatpush1.msra.mxu0 %v268
    %322 = vmatprep.subr.mxu0 0.0
    %323 = vmatpush2.msra.mxu0 0.0
    %324 = vmatprep.subr.mxu0 0.0
    %325 = vmatpush2.msra.mxu0 0.0
    %326 = vmatprep.subr.mxu0 0.0
    %327 = vmatpush2.msra.mxu0 0.0
    %328 = vmatprep.subr.mxu0 0.0
    %329 = vmatpush2.msra.mxu0 0.0
    %330 = vmatprep.subr.mxu0 0.0
    %331 = vmatpush2.msra.mxu0 0.0
    %332 = vmatprep.subr.mxu0 0.0
    %333 = vmatpush2.msra.mxu0 0.0
    %334 = vmatprep.subr.mxu0 0.0
    %335 = vmatpush2.msra.mxu0 0.0
    %336 = vmatprep.subr.mxu0 0.0
    %337 = vmatpush2.msra.mxu0 0.0
    %338 = vmatprep.subr.mxu0 0.0
    %339 = vmatpush2.msra.mxu0 0.0
    %340 = vmatprep.subr.mxu0 0.0
    %341 = vmatpush2.msra.mxu0 0.0
    %342 = vmatprep.subr.mxu0 0.0
    %343 = vmatpush2.msra.mxu0 0.0
    %344 = vmatprep.subr.mxu0 0.0
    %345 = vmatpush2.msra.mxu0 0.0
    %346 = vmatprep.subr.mxu0 0.0
    %347 = vmatpush2.msra.mxu0 0.0
    %348 = vmatprep.subr.mxu0 0.0
    %349 = vmatpush2.msra.mxu0 0.0
    %350 = vmatprep.subr.mxu0 0.0
    %351 = vmatpush2.msra.mxu0 0.0
    %352 = vmatprep.subr.mxu0 0.0
    %353 = vmatpush2.msra.mxu0 0.0
    %354 = vmatprep.mubr.f32.mxu0 0.0
    %355 = vmatmul.mubr.f32.gmra.mxu0 %v288
    %v356 = vpop.f32.mrf.mxu0
    %v357 = vadd.f32 %v284, %v356
    %v358 = vpop.f32.mrf.mxu0
    %v359 = vadd.f32 %v285, %v358
    %360 = vdwg.mxu0
    %v361 = vtanh.pop %v357
    %v362 = vtanh.pop %v359
    %v363 = vmul.f32 %v361, 0.5
    %v364 = vmul.f32 %v362, 0.5
    %v365 = vadd.f32 %v363, 0.5
    %v366 = vadd.f32 %v364, 0.5
    %v367 = vmul.f32 %v365, 0.0
    %369 = vrot.lane.b32.xlu0 %v362, 64
    %v370 = vpop.permute.xlu0 %369
    %v372 = vmul.f32 %v365, %v370
    %374 = vrot.lane.b32.xlu0 %v372, 64
    %v375 = vpop.permute.xlu0 %374
    %v377 = vadd.f32 %v367, %v375
    %v378 = vtanh.pop %v377
    %380 = vrot.lane.b32.xlu0 %v378, 64
    %v381 = vpop.permute.xlu0 %380
    %v383 = vmul.f32 %v366, %v381
    %384 = vst.msk [vmem:[#allocation2] sm:$0xff] %vm130, %v383
    %vm385 = vcmask 523520
    %386 = vst.msk [vmem:[#allocation2 + $0x38] sm:$0xff] %vm385, %v383
    %v387 = vld [vmem:[#allocation3] sm:$0xff]
    %v388 = vld [vmem:[#allocation3 + $0x8] sm:$0xff]
    %v389 = vld [vmem:[#allocation3 + $0x10] sm:$0xff]
    %v390 = vld [vmem:[#allocation3 + $0x18] sm:$0xff]
    %v391 = vld [vmem:[#allocation3 + $0x20] sm:$0xff]
    %v392 = vld [vmem:[#allocation3 + $0x28] sm:$0xff]
    %v393 = vld [vmem:[#allocation3 + $0x30] sm:$0xff]
    %v394 = vld [vmem:[#allocation3 + $0x38] sm:$0xff]
    %v395 = vld [vmem:[#allocation3 + $0x40] sm:$0xff]
    %v396 = vld [vmem:[#allocation3 + $0x48] sm:$0xff]
    %v397 = vld [vmem:[#allocation3 + $0x50] sm:$0xff]
    %v398 = vld [vmem:[#allocation3 + $0x58] sm:$0xff]
    %v399 = vld [vmem:[#allocation3 + $0x60] sm:$0xff]
    %v400 = vld [vmem:[#allocation3 + $0x68] sm:$0xff]
    %v401 = vld [vmem:[#allocation3 + $0x70] sm:$0xff]
    %v402 = vld [vmem:[#allocation3 + $0x78] sm:$0xff]
    %v403 = vsel %vm100, %v228, %v258
    %v404 = vsel %vm101, %v230, %v260
    %v406 = vsel %vm286, %v383, 0
    %408 = vmatprep.subr.mxu0 0.0
    %409 = vmatpush1.msra.mxu0 0.0
    %410 = vmatprep.subr.mxu0 0.0
    %411 = vmatpush1.msra.mxu0 0.0
    %412 = vmatprep.subr.mxu0 0.0
    %413 = vmatpush1.msra.mxu0 0.0
    %414 = vmatprep.subr.mxu0 0.0
    %415 = vmatpush1.msra.mxu0 0.0
    %416 = vmatprep.subr.mxu0 0.0
    %417 = vmatpush1.msra.mxu0 0.0
    %418 = vmatprep.subr.mxu0 0.0
    %419 = vmatpush1.msra.mxu0 0.0
    %420 = vmatprep.subr.mxu0 0.0
    %421 = vmatpush1.msra.mxu0 0.0
    %422 = vmatprep.subr.mxu0 0.0
    %423 = vmatpush1.msra.mxu0 0.0
    %424 = vmatprep.subr.mxu0 %v402
    %425 = vmatpush1.msra.mxu0 %v401
    %426 = vmatprep.subr.mxu0 %v400
    %427 = vmatpush1.msra.mxu0 %v399
    %428 = vmatprep.subr.mxu0 %v398
    %429 = vmatpush1.msra.mxu0 %v397
    %430 = vmatprep.subr.mxu0 %v396
    %431 = vmatpush1.msra.mxu0 %v395
    %432 = vmatprep.subr.mxu0 %v394
    %433 = vmatpush1.msra.mxu0 %v393
    %434 = vmatprep.subr.mxu0 %v392
    %435 = vmatpush1.msra.mxu0 %v391
    %436 = vmatprep.subr.mxu0 %v390
    %437 = vmatpush1.msra.mxu0 %v389
    %438 = vmatprep.subr.mxu0 %v388
    %439 = vmatpush1.msra.mxu0 %v387
    %440 = vmatprep.subr.mxu0 0.0
    %441 = vmatpush2.msra.mxu0 0.0
    %442 = vmatprep.subr.mxu0 0.0
    %443 = vmatpush2.msra.mxu0 0.0
    %444 = vmatprep.subr.mxu0 0.0
    %445 = vmatpush2.msra.mxu0 0.0
    %446 = vmatprep.subr.mxu0 0.0
    %447 = vmatpush2.msra.mxu0 0.0
    %448 = vmatprep.subr.mxu0 0.0
    %449 = vmatpush2.msra.mxu0 0.0
    %450 = vmatprep.subr.mxu0 0.0
    %451 = vmatpush2.msra.mxu0 0.0
    %452 = vmatprep.subr.mxu0 0.0
    %453 = vmatpush2.msra.mxu0 0.0
    %454 = vmatprep.subr.mxu0 0.0
    %455 = vmatpush2.msra.mxu0 0.0
    %456 = vmatprep.subr.mxu0 0.0
    %457 = vmatpush2.msra.mxu0 0.0
    %458 = vmatprep.subr.mxu0 0.0
    %459 = vmatpush2.msra.mxu0 0.0
    %460 = vmatprep.subr.mxu0 0.0
    %461 = vmatpush2.msra.mxu0 0.0
    %462 = vmatprep.subr.mxu0 0.0
    %463 = vmatpush2.msra.mxu0 0.0
    %464 = vmatprep.subr.mxu0 0.0
    %465 = vmatpush2.msra.mxu0 0.0
    %466 = vmatprep.subr.mxu0 0.0
    %467 = vmatpush2.msra.mxu0 0.0
    %468 = vmatprep.subr.mxu0 0.0
    %469 = vmatpush2.msra.mxu0 0.0
    %470 = vmatprep.subr.mxu0 0.0
    %471 = vmatpush2.msra.mxu0 0.0
    %472 = vmatprep.mubr.f32.mxu0 0.0
    %473 = vmatmul.mubr.f32.gmra.mxu0 %v406
    %v474 = vpop.f32.mrf.mxu0
    %v475 = vadd.f32 %v403, %v474
    %v476 = vpop.f32.mrf.mxu0
    %v477 = vadd.f32 %v404, %v476
    %478 = vdwg.mxu0
    %v479 = vtanh.pop %v475
    %v480 = vtanh.pop %v477
    %v481 = vmul.f32 %v479, 0.5
    %v482 = vmul.f32 %v480, 0.5
    %v483 = vadd.f32 %v481, 0.5
    %v484 = vadd.f32 %v482, 0.5
    %v485 = vmul.f32 %v483, %v377
    %487 = vrot.lane.b32.xlu0 %v480, 64
    %v488 = vpop.permute.xlu0 %487
    %v490 = vmul.f32 %v483, %v488
    %492 = vrot.lane.b32.xlu0 %v490, 64
    %v493 = vpop.permute.xlu0 %492
    %v495 = vadd.f32 %v485, %v493
    %v496 = vtanh.pop %v495
    %498 = vrot.lane.b32.xlu0 %v496, 64
    %v499 = vpop.permute.xlu0 %498
    %v501 = vmul.f32 %v484, %v499
    %502 = vst.msk [vmem:[#allocation2 + $0x8] sm:$0xff] %vm130, %v501
    %503 = vst.msk [vmem:[#allocation2 + $0x30] sm:$0xff] %vm385, %v501
    %v504 = vld [vmem:[#allocation3] sm:$0xff]
    %v505 = vld [vmem:[#allocation3 + $0x8] sm:$0xff]
    %v506 = vld [vmem:[#allocation3 + $0x10] sm:$0xff]
    %v507 = vld [vmem:[#allocation3 + $0x18] sm:$0xff]
    %v508 = vld [vmem:[#allocation3 + $0x20] sm:$0xff]
    %v509 = vld [vmem:[#allocation3 + $0x28] sm:$0xff]
    %v510 = vld [vmem:[#allocation3 + $0x30] sm:$0xff]
    %v511 = vld [vmem:[#allocation3 + $0x38] sm:$0xff]
    %v512 = vld [vmem:[#allocation3 + $0x40] sm:$0xff]
    %v513 = vld [vmem:[#allocation3 + $0x48] sm:$0xff]
    %v514 = vld [vmem:[#allocation3 + $0x50] sm:$0xff]
    %v515 = vld [vmem:[#allocation3 + $0x58] sm:$0xff]
    %v516 = vld [vmem:[#allocation3 + $0x60] sm:$0xff]
    %v517 = vld [vmem:[#allocation3 + $0x68] sm:$0xff]
    %v518 = vld [vmem:[#allocation3 + $0x70] sm:$0xff]
    %v519 = vld [vmem:[#allocation3 + $0x78] sm:$0xff]
    %v520 = vsel %vm100, %v234, %v252
    %v521 = vsel %vm101, %v236, %v254
    %v523 = vsel %vm286, %v501, 0
    %525 = vmatprep.subr.mxu0 0.0
    %526 = vmatpush1.msra.mxu0 0.0
    %527 = vmatprep.subr.mxu0 0.0
    %528 = vmatpush1.msra.mxu0 0.0
    %529 = vmatprep.subr.mxu0 0.0
    %530 = vmatpush1.msra.mxu0 0.0
    %531 = vmatprep.subr.mxu0 0.0
    %532 = vmatpush1.msra.mxu0 0.0
    %533 = vmatprep.subr.mxu0 0.0
    %534 = vmatpush1.msra.mxu0 0.0
    %535 = vmatprep.subr.mxu0 0.0
    %536 = vmatpush1.msra.mxu0 0.0
    %537 = vmatprep.subr.mxu0 0.0
    %538 = vmatpush1.msra.mxu0 0.0
    %539 = vmatprep.subr.mxu0 0.0
    %540 = vmatpush1.msra.mxu0 0.0
    %541 = vmatprep.subr.mxu0 %v519
    %542 = vmatpush1.msra.mxu0 %v518
    %543 = vmatprep.subr.mxu0 %v517
    %544 = vmatpush1.msra.mxu0 %v516
    %545 = vmatprep.subr.mxu0 %v515
    %546 = vmatpush1.msra.mxu0 %v514
    %547 = vmatprep.subr.mxu0 %v513
    %548 = vmatpush1.msra.mxu0 %v512
    %549 = vmatprep.subr.mxu0 %v511
    %550 = vmatpush1.msra.mxu0 %v510
    %551 = vmatprep.subr.mxu0 %v509
    %552 = vmatpush1.msra.mxu0 %v508
    %553 = vmatprep.subr.mxu0 %v507
    %554 = vmatpush1.msra.mxu0 %v506
    %555 = vmatprep.subr.mxu0 %v505
    %556 = vmatpush1.msra.mxu0 %v504
    %557 = vmatprep.subr.mxu0 0.0
    %558 = vmatpush2.msra.mxu0 0.0
    %559 = vmatprep.subr.mxu0 0.0
    %560 = vmatpush2.msra.mxu0 0.0
    %561 = vmatprep.subr.mxu0 0.0
    %562 = vmatpush2.msra.mxu0 0.0
    %563 = vmatprep.subr.mxu0 0.0
    %564 = vmatpush2.msra.mxu0 0.0
    %565 = vmatprep.subr.mxu0 0.0
    %566 = vmatpush2.msra.mxu0 0.0
    %567 = vmatprep.subr.mxu0 0.0
    %568 = vmatpush2.msra.mxu0 0.0
    %569 = vmatprep.subr.mxu0 0.0
    %570 = vmatpush2.msra.mxu0 0.0
    %571 = vmatprep.subr.mxu0 0.0
    %572 = vmatpush2.msra.mxu0 0.0
    %573 = vmatprep.subr.mxu0 0.0
    %574 = vmatpush2.msra.mxu0 0.0
    %575 = vmatprep.subr.mxu0 0.0
    %576 = vmatpush2.msra.mxu0 0.0
    %577 = vmatprep.subr.mxu0 0.0
    %578 = vmatpush2.msra.mxu0 0.0
    %579 = vmatprep.subr.mxu0 0.0
    %580 = vmatpush2.msra.mxu0 0.0
    %581 = vmatprep.subr.mxu0 0.0
    %582 = vmatpush2.msra.mxu0 0.0
    %583 = vmatprep.subr.mxu0 0.0
    %584 = vmatpush2.msra.mxu0 0.0
    %585 = vmatprep.subr.mxu0 0.0
    %586 = vmatpush2.msra.mxu0 0.0
    %587 = vmatprep.subr.mxu0 0.0
    %588 = vmatpush2.msra.mxu0 0.0
    %589 = vmatprep.mubr.f32.mxu0 0.0
    %590 = vmatmul.mubr.f32.gmra.mxu0 %v523
    %v591 = vpop.f32.mrf.mxu0
    %v592 = vadd.f32 %v520, %v591
    %v593 = vpop.f32.mrf.mxu0
    %v594 = vadd.f32 %v521, %v593
    %595 = vdwg.mxu0
    %v596 = vtanh.pop %v592
    %v597 = vtanh.pop %v594
    %v598 = vmul.f32 %v596, 0.5
    %v599 = vmul.f32 %v597, 0.5
    %v600 = vadd.f32 %v598, 0.5
    %v601 = vadd.f32 %v599, 0.5
    %v602 = vmul.f32 %v600, %v495
    %604 = vrot.lane.b32.xlu0 %v597, 64
    %v605 = vpop.permute.xlu0 %604
    %v607 = vmul.f32 %v600, %v605
    %609 = vrot.lane.b32.xlu0 %v607, 64
    %v610 = vpop.permute.xlu0 %609
    %v612 = vadd.f32 %v602, %v610
    %v613 = vtanh.pop %v612
    %615 = vrot.lane.b32.xlu0 %v613, 64
    %v616 = vpop.permute.xlu0 %615
    %v618 = vmul.f32 %v601, %v616
    %619 = vst.msk [vmem:[#allocation2 + $0x10] sm:$0xff] %vm130, %v618
    %620 = vst.msk [vmem:[#allocation2 + $0x28] sm:$0xff] %vm385, %v618
    %v621 = vld [vmem:[#allocation3] sm:$0xff]
    %v622 = vld [vmem:[#allocation3 + $0x8] sm:$0xff]
    %v623 = vld [vmem:[#allocation3 + $0x10] sm:$0xff]
    %v624 = vld [vmem:[#allocation3 + $0x18] sm:$0xff]
    %v625 = vld [vmem:[#allocation3 + $0x20] sm:$0xff]
    %v626 = vld [vmem:[#allocation3 + $0x28] sm:$0xff]
    %v627 = vld [vmem:[#allocation3 + $0x30] sm:$0xff]
    %v628 = vld [vmem:[#allocation3 + $0x38] sm:$0xff]
    %v629 = vld [vmem:[#allocation3 + $0x40] sm:$0xff]
    %v630 = vld [vmem:[#allocation3 + $0x48] sm:$0xff]
    %v631 = vld [vmem:[#allocation3 + $0x50] sm:$0xff]
    %v632 = vld [vmem:[#allocation3 + $0x58] sm:$0xff]
    %v633 = vld [vmem:[#allocation3 + $0x60] sm:$0xff]
    %v634 = vld [vmem:[#allocation3 + $0x68] sm:$0xff]
    %v635 = vld [vmem:[#allocation3 + $0x70] sm:$0xff]
    %v636 = vld [vmem:[#allocation3 + $0x78] sm:$0xff]
    %v637 = vsel %vm100, %v240, %v246
    %v638 = vsel %vm101, %v242, %v248
    %v640 = vsel %vm286, %v618, 0
    %642 = vmatprep.subr.mxu0 0.0
    %643 = vmatpush1.msra.mxu0 0.0
    %644 = vmatprep.subr.mxu0 0.0
    %645 = vmatpush1.msra.mxu0 0.0
    %646 = vmatprep.subr.mxu0 0.0
    %647 = vmatpush1.msra.mxu0 0.0
    %648 = vmatprep.subr.mxu0 0.0
    %649 = vmatpush1.msra.mxu0 0.0
    %650 = vmatprep.subr.mxu0 0.0
    %651 = vmatpush1.msra.mxu0 0.0
    %652 = vmatprep.subr.mxu0 0.0
    %653 = vmatpush1.msra.mxu0 0.0
    %654 = vmatprep.subr.mxu0 0.0
    %655 = vmatpush1.msra.mxu0 0.0
    %656 = vmatprep.subr.mxu0 0.0
    %657 = vmatpush1.msra.mxu0 0.0
    %658 = vmatprep.subr.mxu0 %v636
    %659 = vmatpush1.msra.mxu0 %v635
    %660 = vmatprep.subr.mxu0 %v634
    %661 = vmatpush1.msra.mxu0 %v633
    %662 = vmatprep.subr.mxu0 %v632
    %663 = vmatpush1.msra.mxu0 %v631
    %664 = vmatprep.subr.mxu0 %v630
    %665 = vmatpush1.msra.mxu0 %v629
    %666 = vmatprep.subr.mxu0 %v628
    %667 = vmatpush1.msra.mxu0 %v627
    %668 = vmatprep.subr.mxu0 %v626
    %669 = vmatpush1.msra.mxu0 %v625
    %670 = vmatprep.subr.mxu0 %v624
    %671 = vmatpush1.msra.mxu0 %v623
    %672 = vmatprep.subr.mxu0 %v622
    %673 = vmatpush1.msra.mxu0 %v621
    %674 = vmatprep.subr.mxu0 0.0
    %675 = vmatpush2.msra.mxu0 0.0
    %676 = vmatprep.subr.mxu0 0.0
    %677 = vmatpush2.msra.mxu0 0.0
    %678 = vmatprep.subr.mxu0 0.0
    %679 = vmatpush2.msra.mxu0 0.0
    %680 = vmatprep.subr.mxu0 0.0
    %681 = vmatpush2.msra.mxu0 0.0
    %682 = vmatprep.subr.mxu0 0.0
    %683 = vmatpush2.msra.mxu0 0.0
    %684 = vmatprep.subr.mxu0 0.0
    %685 = vmatpush2.msra.mxu0 0.0
    %686 = vmatprep.subr.mxu0 0.0
    %687 = vmatpush2.msra.mxu0 0.0
    %688 = vmatprep.subr.mxu0 0.0
    %689 = vmatpush2.msra.mxu0 0.0
    %690 = vmatprep.subr.mxu0 0.0
    %691 = vmatpush2.msra.mxu0 0.0
    %692 = vmatprep.subr.mxu0 0.0
    %693 = vmatpush2.msra.mxu0 0.0
    %694 = vmatprep.subr.mxu0 0.0
    %695 = vmatpush2.msra.mxu0 0.0
    %696 = vmatprep.subr.mxu0 0.0
    %697 = vmatpush2.msra.mxu0 0.0
    %698 = vmatprep.subr.mxu0 0.0
    %699 = vmatpush2.msra.mxu0 0.0
    %700 = vmatprep.subr.mxu0 0.0
    %701 = vmatpush2.msra.mxu0 0.0
    %702 = vmatprep.subr.mxu0 0.0
    %703 = vmatpush2.msra.mxu0 0.0
    %704 = vmatprep.subr.mxu0 0.0
    %705 = vmatpush2.msra.mxu0 0.0
    %706 = vmatprep.mubr.f32.mxu0 0.0
    %707 = vmatmul.mubr.f32.gmra.mxu0 %v640
    %v708 = vpop.f32.mrf.mxu0
    %v709 = vadd.f32 %v637, %v708
    %v710 = vpop.f32.mrf.mxu0
    %v711 = vadd.f32 %v638, %v710
    %712 = vdwg.mxu0
    %v713 = vtanh.pop %v709
    %v714 = vtanh.pop %v711
    %v715 = vmul.f32 %v713, 0.5
    %v716 = vmul.f32 %v714, 0.5
    %v717 = vadd.f32 %v715, 0.5
    %v718 = vadd.f32 %v716, 0.5
    %v719 = vmul.f32 %v717, %v612
    %721 = vrot.lane.b32.xlu0 %v714, 64
    %v722 = vpop.permute.xlu0 %721
    %v724 = vmul.f32 %v717, %v722
    %726 = vrot.lane.b32.xlu0 %v724, 64
    %v727 = vpop.permute.xlu0 %726
    %v729 = vadd.f32 %v719, %v727
    %v730 = vtanh.pop %v729
    %732 = vrot.lane.b32.xlu0 %v730, 64
    %v733 = vpop.permute.xlu0 %732
    %v735 = vmul.f32 %v718, %v733
    %736 = vst.msk [vmem:[#allocation2 + $0x18] sm:$0xff] %vm130, %v735
    %737 = vst.msk [vmem:[#allocation2 + $0x20] sm:$0xff] %vm385, %v735
    %v738 = vld [vmem:[#allocation3] sm:$0xff]
    %v739 = vld [vmem:[#allocation3 + $0x8] sm:$0xff]
    %v740 = vld [vmem:[#allocation3 + $0x10] sm:$0xff]
    %v741 = vld [vmem:[#allocation3 + $0x18] sm:$0xff]
    %v742 = vld [vmem:[#allocation3 + $0x20] sm:$0xff]
    %v743 = vld [vmem:[#allocation3 + $0x28] sm:$0xff]
    %v744 = vld [vmem:[#allocation3 + $0x30] sm:$0xff]
    %v745 = vld [vmem:[#allocation3 + $0x38] sm:$0xff]
    %v746 = vld [vmem:[#allocation3 + $0x40] sm:$0xff]
    %v747 = vld [vmem:[#allocation3 + $0x48] sm:$0xff]
    %v748 = vld [vmem:[#allocation3 + $0x50] sm:$0xff]
    %v749 = vld [vmem:[#allocation3 + $0x58] sm:$0xff]
    %v750 = vld [vmem:[#allocation3 + $0x60] sm:$0xff]
    %v751 = vld [vmem:[#allocation3 + $0x68] sm:$0xff]
    %v752 = vld [vmem:[#allocation3 + $0x70] sm:$0xff]
    %v753 = vld [vmem:[#allocation3 + $0x78] sm:$0xff]
    %v754 = vsel %vm100, %v246, %v240
    %v755 = vsel %vm101, %v248, %v242
    %v757 = vsel %vm286, %v735, 0
    %759 = vmatprep.subr.mxu0 0.0
    %760 = vmatpush1.msra.mxu0 0.0
    %761 = vmatprep.subr.mxu0 0.0
    %762 = vmatpush1.msra.mxu0 0.0
    %763 = vmatprep.subr.mxu0 0.0
    %764 = vmatpush1.msra.mxu0 0.0
    %765 = vmatprep.subr.mxu0 0.0
    %766 = vmatpush1.msra.mxu0 0.0
    %767 = vmatprep.subr.mxu0 0.0
    %768 = vmatpush1.msra.mxu0 0.0
    %769 = vmatprep.subr.mxu0 0.0
    %770 = vmatpush1.msra.mxu0 0.0
    %771 = vmatprep.subr.mxu0 0.0
    %772 = vmatpush1.msra.mxu0 0.0
    %773 = vmatprep.subr.mxu0 0.0
    %774 = vmatpush1.msra.mxu0 0.0
    %775 = vmatprep.subr.mxu0 %v753
    %776 = vmatpush1.msra.mxu0 %v752
    %777 = vmatprep.subr.mxu0 %v751
    %778 = vmatpush1.msra.mxu0 %v750
    %779 = vmatprep.subr.mxu0 %v749
    %780 = vmatpush1.msra.mxu0 %v748
    %781 = vmatprep.subr.mxu0 %v747
    %782 = vmatpush1.msra.mxu0 %v746
    %783 = vmatprep.subr.mxu0 %v745
    %784 = vmatpush1.msra.mxu0 %v744
    %785 = vmatprep.subr.mxu0 %v743
    %786 = vmatpush1.msra.mxu0 %v742
    %787 = vmatprep.subr.mxu0 %v741
    %788 = vmatpush1.msra.mxu0 %v740
    %789 = vmatprep.subr.mxu0 %v739
    %790 = vmatpush1.msra.mxu0 %v738
    %791 = vmatprep.subr.mxu0 0.0
    %792 = vmatpush2.msra.mxu0 0.0
    %793 = vmatprep.subr.mxu0 0.0
    %794 = vmatpush2.msra.mxu0 0.0
    %795 = vmatprep.subr.mxu0 0.0
    %796 = vmatpush2.msra.mxu0 0.0
    %797 = vmatprep.subr.mxu0 0.0
    %798 = vmatpush2.msra.mxu0 0.0
    %799 = vmatprep.subr.mxu0 0.0
    %800 = vmatpush2.msra.mxu0 0.0
    %801 = vmatprep.subr.mxu0 0.0
    %802 = vmatpush2.msra.mxu0 0.0
    %803 = vmatprep.subr.mxu0 0.0
    %804 = vmatpush2.msra.mxu0 0.0
    %805 = vmatprep.subr.mxu0 0.0
    %806 = vmatpush2.msra.mxu0 0.0
    %807 = vmatprep.subr.mxu0 0.0
    %808 = vmatpush2.msra.mxu0 0.0
    %809 = vmatprep.subr.mxu0 0.0
    %810 = vmatpush2.msra.mxu0 0.0
    %811 = vmatprep.subr.mxu0 0.0
    %812 = vmatpush2.msra.mxu0 0.0
    %813 = vmatprep.subr.mxu0 0.0
    %814 = vmatpush2.msra.mxu0 0.0
    %815 = vmatprep.subr.mxu0 0.0
    %816 = vmatpush2.msra.mxu0 0.0
    %817 = vmatprep.subr.mxu0 0.0
    %818 = vmatpush2.msra.mxu0 0.0
    %819 = vmatprep.subr.mxu0 0.0
    %820 = vmatpush2.msra.mxu0 0.0
    %821 = vmatprep.subr.mxu0 0.0
    %822 = vmatpush2.msra.mxu0 0.0
    %823 = vmatprep.mubr.f32.mxu0 0.0
    %824 = vmatmul.mubr.f32.gmra.mxu0 %v757
    %v825 = vpop.f32.mrf.mxu0
    %v826 = vadd.f32 %v754, %v825
    %v827 = vpop.f32.mrf.mxu0
    %v828 = vadd.f32 %v755, %v827
    %829 = vdwg.mxu0
    %v830 = vtanh.pop %v826
    %v831 = vtanh.pop %v828
    %v832 = vmul.f32 %v830, 0.5
    %v833 = vmul.f32 %v831, 0.5
    %v834 = vadd.f32 %v832, 0.5
    %v835 = vadd.f32 %v833, 0.5
    %v836 = vmul.f32 %v834, %v729
    %838 = vrot.lane.b32.xlu0 %v831, 64
    %v839 = vpop.permute.xlu0 %838
    %v841 = vmul.f32 %v834, %v839
    %843 = vrot.lane.b32.xlu0 %v841, 64
    %v844 = vpop.permute.xlu0 %843
    %v846 = vadd.f32 %v836, %v844
    %v847 = vtanh.pop %v846
    %849 = vrot.lane.b32.xlu0 %v847, 64
    %v850 = vpop.permute.xlu0 %849
    %v852 = vmul.f32 %v835, %v850
    %853 = vst.msk [vmem:[#allocation2 + $0x20] sm:$0xff] %vm130, %v852
    %854 = vst.msk [vmem:[#allocation2 + $0x18] sm:$0xff] %vm385, %v852
    %v855 = vld [vmem:[#allocation3] sm:$0xff]
    %v856 = vld [vmem:[#allocation3 + $0x8] sm:$0xff]
    %v857 = vld [vmem:[#allocation3 + $0x10] sm:$0xff]
    %v858 = vld [vmem:[#allocation3 + $0x18] sm:$0xff]
    %v859 = vld [vmem:[#allocation3 + $0x20] sm:$0xff]
    %v860 = vld [vmem:[#allocation3 + $0x28] sm:$0xff]
    %v861 = vld [vmem:[#allocation3 + $0x30] sm:$0xff]
    %v862 = vld [vmem:[#allocation3 + $0x38] sm:$0xff]
    %v863 = vld [vmem:[#allocation3 + $0x40] sm:$0xff]
    %v864 = vld [vmem:[#allocation3 + $0x48] sm:$0xff]
    %v865 = vld [vmem:[#allocation3 + $0x50] sm:$0xff]
    %v866 = vld [vmem:[#allocation3 + $0x58] sm:$0xff]
    %v867 = vld [vmem:[#allocation3 + $0x60] sm:$0xff]
    %v868 = vld [vmem:[#allocation3 + $0x68] sm:$0xff]
    %v869 = vld [vmem:[#allocation3 + $0x70] sm:$0xff]
    %v870 = vld [vmem:[#allocation3 + $0x78] sm:$0xff]
    %v871 = vsel %vm100, %v252, %v234
    %v872 = vsel %vm101, %v254, %v236
    %v874 = vsel %vm286, %v852, 0
    %876 = vmatprep.subr.mxu0 0.0
    %877 = vmatpush1.msra.mxu0 0.0
    %878 = vmatprep.subr.mxu0 0.0
    %879 = vmatpush1.msra.mxu0 0.0
    %880 = vmatprep.subr.mxu0 0.0
    %881 = vmatpush1.msra.mxu0 0.0
    %882 = vmatprep.subr.mxu0 0.0
    %883 = vmatpush1.msra.mxu0 0.0
    %884 = vmatprep.subr.mxu0 0.0
    %885 = vmatpush1.msra.mxu0 0.0
    %886 = vmatprep.subr.mxu0 0.0
    %887 = vmatpush1.msra.mxu0 0.0
    %888 = vmatprep.subr.mxu0 0.0
    %889 = vmatpush1.msra.mxu0 0.0
    %890 = vmatprep.subr.mxu0 0.0
    %891 = vmatpush1.msra.mxu0 0.0
    %892 = vmatprep.subr.mxu0 %v870
    %893 = vmatpush1.msra.mxu0 %v869
    %894 = vmatprep.subr.mxu0 %v868
    %895 = vmatpush1.msra.mxu0 %v867
    %896 = vmatprep.subr.mxu0 %v866
    %897 = vmatpush1.msra.mxu0 %v865
    %898 = vmatprep.subr.mxu0 %v864
    %899 = vmatpush1.msra.mxu0 %v863
    %900 = vmatprep.subr.mxu0 %v862
    %901 = vmatpush1.msra.mxu0 %v861
    %902 = vmatprep.subr.mxu0 %v860
    %903 = vmatpush1.msra.mxu0 %v859
    %904 = vmatprep.subr.mxu0 %v858
    %905 = vmatpush1.msra.mxu0 %v857
    %906 = vmatprep.subr.mxu0 %v856
    %907 = vmatpush1.msra.mxu0 %v855
    %908 = vmatprep.subr.mxu0 0.0
    %909 = vmatpush2.msra.mxu0 0.0
    %910 = vmatprep.subr.mxu0 0.0
    %911 = vmatpush2.msra.mxu0 0.0
    %912 = vmatprep.subr.mxu0 0.0
    %913 = vmatpush2.msra.mxu0 0.0
    %914 = vmatprep.subr.mxu0 0.0
    %915 = vmatpush2.msra.mxu0 0.0
    %916 = vmatprep.subr.mxu0 0.0
    %917 = vmatpush2.msra.mxu0 0.0
    %918 = vmatprep.subr.mxu0 0.0
    %919 = vmatpush2.msra.mxu0 0.0
    %920 = vmatprep.subr.mxu0 0.0
    %921 = vmatpush2.msra.mxu0 0.0
    %922 = vmatprep.subr.mxu0 0.0
    %923 = vmatpush2.msra.mxu0 0.0
    %924 = vmatprep.subr.mxu0 0.0
    %925 = vmatpush2.msra.mxu0 0.0
    %926 = vmatprep.subr.mxu0 0.0
    %927 = vmatpush2.msra.mxu0 0.0
    %928 = vmatprep.subr.mxu0 0.0
    %929 = vmatpush2.msra.mxu0 0.0
    %930 = vmatprep.subr.mxu0 0.0
    %931 = vmatpush2.msra.mxu0 0.0
    %932 = vmatprep.subr.mxu0 0.0
    %933 = vmatpush2.msra.mxu0 0.0
    %934 = vmatprep.subr.mxu0 0.0
    %935 = vmatpush2.msra.mxu0 0.0
    %936 = vmatprep.subr.mxu0 0.0
    %937 = vmatpush2.msra.mxu0 0.0
    %938 = vmatprep.subr.mxu0 0.0
    %939 = vmatpush2.msra.mxu0 0.0
    %940 = vmatprep.mubr.f32.mxu0 0.0
    %941 = vmatmul.mubr.f32.gmra.mxu0 %v874
    %v942 = vpop.f32.mrf.mxu0
    %v943 = vadd.f32 %v871, %v942
    %v944 = vpop.f32.mrf.mxu0
    %v945 = vadd.f32 %v872, %v944
    %946 = vdwg.mxu0
    %v947 = vtanh.pop %v943
    %v948 = vtanh.pop %v945
    %v949 = vmul.f32 %v947, 0.5
    %v950 = vmul.f32 %v948, 0.5
    %v951 = vadd.f32 %v949, 0.5
    %v952 = vadd.f32 %v950, 0.5
    %v953 = vmul.f32 %v951, %v846
    %955 = vrot.lane.b32.xlu0 %v948, 64
    %v956 = vpop.permute.xlu0 %955
    %v958 = vmul.f32 %v951, %v956
    %960 = vrot.lane.b32.xlu0 %v958, 64
    %v961 = vpop.permute.xlu0 %960
    %v963 = vadd.f32 %v953, %v961
    %v964 = vtanh.pop %v963
    %966 = vrot.lane.b32.xlu0 %v964, 64
    %v967 = vpop.permute.xlu0 %966
    %v969 = vmul.f32 %v952, %v967
    %970 = vst.msk [vmem:[#allocation2 + $0x28] sm:$0xff] %vm130, %v969
    %971 = vst.msk [vmem:[#allocation2 + $0x10] sm:$0xff] %vm385, %v969
    %v972 = vld [vmem:[#allocation3] sm:$0xff]
    %v973 = vld [vmem:[#allocation3 + $0x8] sm:$0xff]
    %v974 = vld [vmem:[#allocation3 + $0x10] sm:$0xff]
    %v975 = vld [vmem:[#allocation3 + $0x18] sm:$0xff]
    %v976 = vld [vmem:[#allocation3 + $0x20] sm:$0xff]
    %v977 = vld [vmem:[#allocation3 + $0x28] sm:$0xff]
    %v978 = vld [vmem:[#allocation3 + $0x30] sm:$0xff]
    %v979 = vld [vmem:[#allocation3 + $0x38] sm:$0xff]
    %v980 = vld [vmem:[#allocation3 + $0x40] sm:$0xff]
    %v981 = vld [vmem:[#allocation3 + $0x48] sm:$0xff]
    %v982 = vld [vmem:[#allocation3 + $0x50] sm:$0xff]
    %v983 = vld [vmem:[#allocation3 + $0x58] sm:$0xff]
    %v984 = vld [vmem:[#allocation3 + $0x60] sm:$0xff]
    %v985 = vld [vmem:[#allocation3 + $0x68] sm:$0xff]
    %v986 = vld [vmem:[#allocation3 + $0x70] sm:$0xff]
    %v987 = vld [vmem:[#allocation3 + $0x78] sm:$0xff]
    %v988 = vsel %vm100, %v258, %v228
    %v989 = vsel %vm101, %v260, %v230
    %v991 = vsel %vm286, %v969, 0
    %993 = vmatprep.subr.mxu0 0.0
    %994 = vmatpush1.msra.mxu0 0.0
    %995 = vmatprep.subr.mxu0 0.0
    %996 = vmatpush1.msra.mxu0 0.0
    %997 = vmatprep.subr.mxu0 0.0
    %998 = vmatpush1.msra.mxu0 0.0
    %999 = vmatprep.subr.mxu0 0.0
    %1000 = vmatpush1.msra.mxu0 0.0
    %1001 = vmatprep.subr.mxu0 0.0
    %1002 = vmatpush1.msra.mxu0 0.0
    %1003 = vmatprep.subr.mxu0 0.0
    %1004 = vmatpush1.msra.mxu0 0.0
    %1005 = vmatprep.subr.mxu0 0.0
    %1006 = vmatpush1.msra.mxu0 0.0
    %1007 = vmatprep.subr.mxu0 0.0
    %1008 = vmatpush1.msra.mxu0 0.0
    %1009 = vmatprep.subr.mxu0 %v987
    %1010 = vmatpush1.msra.mxu0 %v986
    %1011 = vmatprep.subr.mxu0 %v985
    %1012 = vmatpush1.msra.mxu0 %v984
    %1013 = vmatprep.subr.mxu0 %v983
    %1014 = vmatpush1.msra.mxu0 %v982
    %1015 = vmatprep.subr.mxu0 %v981
    %1016 = vmatpush1.msra.mxu0 %v980
    %1017 = vmatprep.subr.mxu0 %v979
    %1018 = vmatpush1.msra.mxu0 %v978
    %1019 = vmatprep.subr.mxu0 %v977
    %1020 = vmatpush1.msra.mxu0 %v976
    %1021 = vmatprep.subr.mxu0 %v975
    %1022 = vmatpush1.msra.mxu0 %v974
    %1023 = vmatprep.subr.mxu0 %v973
    %1024 = vmatpush1.msra.mxu0 %v972
    %1025 = vmatprep.subr.mxu0 0.0
    %1026 = vmatpush2.msra.mxu0 0.0
    %1027 = vmatprep.subr.mxu0 0.0
    %1028 = vmatpush2.msra.mxu0 0.0
    %1029 = vmatprep.subr.mxu0 0.0
    %1030 = vmatpush2.msra.mxu0 0.0
    %1031 = vmatprep.subr.mxu0 0.0
    %1032 = vmatpush2.msra.mxu0 0.0
    %1033 = vmatprep.subr.mxu0 0.0
    %1034 = vmatpush2.msra.mxu0 0.0
    %1035 = vmatprep.subr.mxu0 0.0
    %1036 = vmatpush2.msra.mxu0 0.0
    %1037 = vmatprep.subr.mxu0 0.0
    %1038 = vmatpush2.msra.mxu0 0.0
    %1039 = vmatprep.subr.mxu0 0.0
    %1040 = vmatpush2.msra.mxu0 0.0
    %1041 = vmatprep.subr.mxu0 0.0
    %1042 = vmatpush2.msra.mxu0 0.0
    %1043 = vmatprep.subr.mxu0 0.0
    %1044 = vmatpush2.msra.mxu0 0.0
    %1045 = vmatprep.subr.mxu0 0.0
    %1046 = vmatpush2.msra.mxu0 0.0
    %1047 = vmatprep.subr.mxu0 0.0
    %1048 = vmatpush2.msra.mxu0 0.0
    %1049 = vmatprep.subr.mxu0 0.0
    %1050 = vmatpush2.msra.mxu0 0.0
    %1051 = vmatprep.subr.mxu0 0.0
    %1052 = vmatpush2.msra.mxu0 0.0
    %1053 = vmatprep.subr.mxu0 0.0
    %1054 = vmatpush2.msra.mxu0 0.0
    %1055 = vmatprep.subr.mxu0 0.0
    %1056 = vmatpush2.msra.mxu0 0.0
    %1057 = vmatprep.mubr.f32.mxu0 0.0
    %1058 = vmatmul.mubr.f32.gmra.mxu0 %v991
    %v1059 = vpop.f32.mrf.mxu0
    %v1060 = vadd.f32 %v988, %v1059
    %v1061 = vpop.f32.mrf.mxu0
    %v1062 = vadd.f32 %v989, %v1061
    %1063 = vdwg.mxu0
    %v1064 = vtanh.pop %v1060
    %v1065 = vtanh.pop %v1062
    %v1066 = vmul.f32 %v1064, 0.5
    %v1067 = vmul.f32 %v1065, 0.5
    %v1068 = vadd.f32 %v1066, 0.5
    %v1069 = vadd.f32 %v1067, 0.5
    %v1070 = vmul.f32 %v1068, %v963
    %1072 = vrot.lane.b32.xlu0 %v1065, 64
    %v1073 = vpop.permute.xlu0 %1072
    %v1075 = vmul.f32 %v1068, %v1073
    %1077 = vrot.lane.b32.xlu0 %v1075, 64
    %v1078 = vpop.permute.xlu0 %1077
    %v1080 = vadd.f32 %v1070, %v1078
    %v1081 = vtanh.pop %v1080
    %1083 = vrot.lane.b32.xlu0 %v1081, 64
    %v1084 = vpop.permute.xlu0 %1083
    %v1086 = vmul.f32 %v1069, %v1084
    %1087 = vst.msk [vmem:[#allocation2 + $0x30] sm:$0xff] %vm130, %v1086
    %1088 = vst.msk [vmem:[#allocation2 + $0x8] sm:$0xff] %vm385, %v1086
    %v1089 = vld [vmem:[#allocation3] sm:$0xff]
    %v1090 = vld [vmem:[#allocation3 + $0x8] sm:$0xff]
    %v1091 = vld [vmem:[#allocation3 + $0x10] sm:$0xff]
    %v1092 = vld [vmem:[#allocation3 + $0x18] sm:$0xff]
    %v1093 = vld [vmem:[#allocation3 + $0x20] sm:$0xff]
    %v1094 = vld [vmem:[#allocation3 + $0x28] sm:$0xff]
    %v1095 = vld [vmem:[#allocation3 + $0x30] sm:$0xff]
    %v1096 = vld [vmem:[#allocation3 + $0x38] sm:$0xff]
    %v1097 = vld [vmem:[#allocation3 + $0x40] sm:$0xff]
    %v1098 = vld [vmem:[#allocation3 + $0x48] sm:$0xff]
    %v1099 = vld [vmem:[#allocation3 + $0x50] sm:$0xff]
    %v1100 = vld [vmem:[#allocation3 + $0x58] sm:$0xff]
    %v1101 = vld [vmem:[#allocation3 + $0x60] sm:$0xff]
    %v1102 = vld [vmem:[#allocation3 + $0x68] sm:$0xff]
    %v1103 = vld [vmem:[#allocation3 + $0x70] sm:$0xff]
    %v1104 = vld [vmem:[#allocation3 + $0x78] sm:$0xff]
    %v1105 = vsel %vm100, %v264, %v222
    %v1106 = vsel %vm101, %v266, %v224
    %v1108 = vsel %vm286, %v1086, 0
    %1110 = vmatprep.subr.mxu0 0.0
    %1111 = vmatpush1.msra.mxu0 0.0
    %1112 = vmatprep.subr.mxu0 0.0
    %1113 = vmatpush1.msra.mxu0 0.0
    %1114 = vmatprep.subr.mxu0 0.0
    %1115 = vmatpush1.msra.mxu0 0.0
    %1116 = vmatprep.subr.mxu0 0.0
    %1117 = vmatpush1.msra.mxu0 0.0
    %1118 = vmatprep.subr.mxu0 0.0
    %1119 = vmatpush1.msra.mxu0 0.0
    %1120 = vmatprep.subr.mxu0 0.0
    %1121 = vmatpush1.msra.mxu0 0.0
    %1122 = vmatprep.subr.mxu0 0.0
    %1123 = vmatpush1.msra.mxu0 0.0
    %1124 = vmatprep.subr.mxu0 0.0
    %1125 = vmatpush1.msra.mxu0 0.0
    %1126 = vmatprep.subr.mxu0 %v1104
    %1127 = vmatpush1.msra.mxu0 %v1103
    %1128 = vmatprep.subr.mxu0 %v1102
    %1129 = vmatpush1.msra.mxu0 %v1101
    %1130 = vmatprep.subr.mxu0 %v1100
    %1131 = vmatpush1.msra.mxu0 %v1099
    %1132 = vmatprep.subr.mxu0 %v1098
    %1133 = vmatpush1.msra.mxu0 %v1097
    %1134 = vmatprep.subr.mxu0 %v1096
    %1135 = vmatpush1.msra.mxu0 %v1095
    %1136 = vmatprep.subr.mxu0 %v1094
    %1137 = vmatpush1.msra.mxu0 %v1093
    %1138 = vmatprep.subr.mxu0 %v1092
    %1139 = vmatpush1.msra.mxu0 %v1091
    %1140 = vmatprep.subr.mxu0 %v1090
    %1141 = vmatpush1.msra.mxu0 %v1089
    %1142 = vmatprep.subr.mxu0 0.0
    %1143 = vmatpush2.msra.mxu0 0.0
    %1144 = vmatprep.subr.mxu0 0.0
    %1145 = vmatpush2.msra.mxu0 0.0
    %1146 = vmatprep.subr.mxu0 0.0
    %1147 = vmatpush2.msra.mxu0 0.0
    %1148 = vmatprep.subr.mxu0 0.0
    %1149 = vmatpush2.msra.mxu0 0.0
    %1150 = vmatprep.subr.mxu0 0.0
    %1151 = vmatpush2.msra.mxu0 0.0
    %1152 = vmatprep.subr.mxu0 0.0
    %1153 = vmatpush2.msra.mxu0 0.0
    %1154 = vmatprep.subr.mxu0 0.0
    %1155 = vmatpush2.msra.mxu0 0.0
    %1156 = vmatprep.subr.mxu0 0.0
    %1157 = vmatpush2.msra.mxu0 0.0
    %1158 = vmatprep.subr.mxu0 0.0
    %1159 = vmatpush2.msra.mxu0 0.0
    %1160 = vmatprep.subr.mxu0 0.0
    %1161 = vmatpush2.msra.mxu0 0.0
    %1162 = vmatprep.subr.mxu0 0.0
    %1163 = vmatpush2.msra.mxu0 0.0
    %1164 = vmatprep.subr.mxu0 0.0
    %1165 = vmatpush2.msra.mxu0 0.0
    %1166 = vmatprep.subr.mxu0 0.0
    %1167 = vmatpush2.msra.mxu0 0.0
    %1168 = vmatprep.subr.mxu0 0.0
    %1169 = vmatpush2.msra.mxu0 0.0
    %1170 = vmatprep.subr.mxu0 0.0
    %1171 = vmatpush2.msra.mxu0 0.0
    %1172 = vmatprep.subr.mxu0 0.0
    %1173 = vmatpush2.msra.mxu0 0.0
    %1174 = vmatprep.mubr.f32.mxu0 0.0
    %1175 = vmatmul.mubr.f32.gmra.mxu0 %v1108
    %v1176 = vpop.f32.mrf.mxu0
    %v1177 = vadd.f32 %v1105, %v1176
    %v1178 = vpop.f32.mrf.mxu0
    %v1179 = vadd.f32 %v1106, %v1178
    %1180 = vdwg.mxu0
    %v1181 = vtanh.pop %v1177
    %v1182 = vtanh.pop %v1179
    %v1183 = vmul.f32 %v1181, 0.5
    %v1184 = vmul.f32 %v1182, 0.5
    %v1185 = vadd.f32 %v1183, 0.5
    %v1186 = vadd.f32 %v1184, 0.5
    %v1187 = vmul.f32 %v1185, %v1080
    %1189 = vrot.lane.b32.xlu0 %v1182, 64
    %v1190 = vpop.permute.xlu0 %1189
    %v1192 = vmul.f32 %v1185, %v1190
    %1194 = vrot.lane.b32.xlu0 %v1192, 64
    %v1195 = vpop.permute.xlu0 %1194
    %v1197 = vadd.f32 %v1187, %v1195
    %v1198 = vtanh.pop %v1197
    %1200 = vrot.lane.b32.xlu0 %v1198, 64
    %v1201 = vpop.permute.xlu0 %1200
    %v1203 = vmul.f32 %v1186, %v1201
    %1204 = vst.msk [vmem:[#allocation2 + $0x38] sm:$0xff] %vm130, %v1203
    %1205 = vst.msk [vmem:[#allocation2] sm:$0xff] %vm385, %v1203
    %v1206 = vld [vmem:[#allocation2] sm:$0xff]
    %v1207 = vld [vmem:[#allocation2 + $0x8] sm:$0xff]
    %v1208 = vld [vmem:[#allocation2 + $0x10] sm:$0xff]
    %v1209 = vld [vmem:[#allocation2 + $0x18] sm:$0xff]
    %v1210 = vld [vmem:[#allocation2 + $0x20] sm:$0xff]
    %v1211 = vld [vmem:[#allocation2 + $0x28] sm:$0xff]
    %v1212 = vld [vmem:[#allocation2 + $0x30] sm:$0xff]
    %v1213 = vld [vmem:[#allocation2 + $0x38] sm:$0xff]
    %v1214 = vld [vmem:[#allocation5] sm:$0xff]
    %v1215 = vld [vmem:[#allocation5 + $0x8] sm:$0xff]
    %v1216 = vld [vmem:[#allocation5 + $0x10] sm:$0xff]
    %v1217 = vld [vmem:[#allocation5 + $0x18] sm:$0xff]
    %v1218 = vld [vmem:[#allocation5 + $0x20] sm:$0xff]
    %v1219 = vld [vmem:[#allocation5 + $0x28] sm:$0xff]
    %v1220 = vld [vmem:[#allocation5 + $0x30] sm:$0xff]
    %v1221 = vld [vmem:[#allocation5 + $0x38] sm:$0xff]
    %v1222 = vld [vmem:[#allocation5 + $0x40] sm:$0xff]
    %v1223 = vld [vmem:[#allocation5 + $0x48] sm:$0xff]
    %v1224 = vld [vmem:[#allocation5 + $0x50] sm:$0xff]
    %v1225 = vld [vmem:[#allocation5 + $0x58] sm:$0xff]
    %v1226 = vld [vmem:[#allocation5 + $0x60] sm:$0xff]
    %v1227 = vld [vmem:[#allocation5 + $0x68] sm:$0xff]
    %v1228 = vld [vmem:[#allocation5 + $0x70] sm:$0xff]
    %v1229 = vld [vmem:[#allocation5 + $0x78] sm:$0xff]
    %v1230 = vld [vmem:[%s6] sm:$0x3]
    %v1232 = vlaneseq
    %v1233 = vshrl.u32 %v1232, 7
    %v1234 = vsub.s32 0, %v1233
    %v1235 = vrot.slane %v1230, %v1234
    %v1236 = vlaneseq
    %v1237 = vshrl.u32 %v1236, 7
    %v1238 = vsub.s32 1, %v1237
    %v1239 = vrot.slane %v1230, %v1238
    %v1243 = vsel %vm286, %v1206, 0
    %v1246 = vsel %vm286, %v1207, 0
    %v1249 = vsel %vm286, %v1208, 0
    %v1252 = vsel %vm286, %v1209, 0
    %v1255 = vsel %vm286, %v1210, 0
    %v1258 = vsel %vm286, %v1211, 0
    %v1261 = vsel %vm286, %v1212, 0
    %v1264 = vsel %vm286, %v1213, 0
    %1266 = vmatprep.subr.mxu0 0.0
    %1267 = vmatpush1.msra.mxu0 0.0
    %1268 = vmatprep.subr.mxu0 0.0
    %1269 = vmatpush1.msra.mxu0 0.0
    %1270 = vmatprep.subr.mxu0 0.0
    %1271 = vmatpush1.msra.mxu0 0.0
    %1272 = vmatprep.subr.mxu0 0.0
    %1273 = vmatpush1.msra.mxu0 0.0
    %1274 = vmatprep.subr.mxu0 0.0
    %1275 = vmatpush1.msra.mxu0 0.0
    %1276 = vmatprep.subr.mxu0 0.0
    %1277 = vmatpush1.msra.mxu0 0.0
    %1278 = vmatprep.subr.mxu0 0.0
    %1279 = vmatpush1.msra.mxu0 0.0
    %1280 = vmatprep.subr.mxu0 0.0
    %1281 = vmatpush1.msra.mxu0 0.0
    %1282 = vmatprep.subr.mxu0 %v1229
    %1283 = vmatpush1.msra.mxu0 %v1228
    %1284 = vmatprep.subr.mxu0 %v1227
    %1285 = vmatpush1.msra.mxu0 %v1226
    %1286 = vmatprep.subr.mxu0 %v1225
    %1287 = vmatpush1.msra.mxu0 %v1224
    %1288 = vmatprep.subr.mxu0 %v1223
    %1289 = vmatpush1.msra.mxu0 %v1222
    %1290 = vmatprep.subr.mxu0 %v1221
    %1291 = vmatpush1.msra.mxu0 %v1220
    %1292 = vmatprep.subr.mxu0 %v1219
    %1293 = vmatpush1.msra.mxu0 %v1218
    %1294 = vmatprep.subr.mxu0 %v1217
    %1295 = vmatpush1.msra.mxu0 %v1216
    %1296 = vmatprep.subr.mxu0 %v1215
    %1297 = vmatpush1.msra.mxu0 %v1214
    %1298 = vmatprep.subr.mxu0 0.0
    %1299 = vmatpush2.msra.mxu0 0.0
    %1300 = vmatprep.subr.mxu0 0.0
    %1301 = vmatpush2.msra.mxu0 0.0
    %1302 = vmatprep.subr.mxu0 0.0
    %1303 = vmatpush2.msra.mxu0 0.0
    %1304 = vmatprep.subr.mxu0 0.0
    %1305 = vmatpush2.msra.mxu0 0.0
    %1306 = vmatprep.subr.mxu0 0.0
    %1307 = vmatpush2.msra.mxu0 0.0
    %1308 = vmatprep.subr.mxu0 0.0
    %1309 = vmatpush2.msra.mxu0 0.0
    %1310 = vmatprep.subr.mxu0 0.0
    %1311 = vmatpush2.msra.mxu0 0.0
    %1312 = vmatprep.subr.mxu0 0.0
    %1313 = vmatpush2.msra.mxu0 0.0
    %1314 = vmatprep.subr.mxu0 0.0
    %1315 = vmatpush2.msra.mxu0 0.0
    %1316 = vmatprep.subr.mxu0 0.0
    %1317 = vmatpush2.msra.mxu0 0.0
    %1318 = vmatprep.subr.mxu0 0.0
    %1319 = vmatpush2.msra.mxu0 0.0
    %1320 = vmatprep.subr.mxu0 0.0
    %1321 = vmatpush2.msra.mxu0 0.0
    %1322 = vmatprep.subr.mxu0 0.0
    %1323 = vmatpush2.msra.mxu0 0.0
    %1324 = vmatprep.subr.mxu0 0.0
    %1325 = vmatpush2.msra.mxu0 0.0
    %1326 = vmatprep.subr.mxu0 0.0
    %1327 = vmatpush2.msra.mxu0 0.0
    %1328 = vmatprep.subr.mxu0 0.0
    %1329 = vmatpush2.msra.mxu0 0.0
    %1330 = vmatprep.mubr.f32.mxu0 0.0
    %1331 = vmatmul.mubr.f32.gmra.mxu0 %v1243
    %v1332 = vpop.f32.mrf.mxu0
    %v1333 = vadd.f32 %v1235, %v1332
    %v1334 = vpop.f32.mrf.mxu0
    %v1335 = vadd.f32 %v1239, %v1334
    %1336 = vmatprep.mubr.f32.mxu0 0.0
    %1337 = vmatmul.mubr.f32.gmra.mxu0 %v1246
    %v1338 = vpop.f32.mrf.mxu0
    %v1339 = vadd.f32 %v1235, %v1338
    %v1340 = vpop.f32.mrf.mxu0
    %v1341 = vadd.f32 %v1239, %v1340
    %1342 = vmatprep.mubr.f32.mxu0 0.0
    %1343 = vmatmul.mubr.f32.gmra.mxu0 %v1249
    %v1344 = vpop.f32.mrf.mxu0
    %v1345 = vadd.f32 %v1235, %v1344
    %v1346 = vpop.f32.mrf.mxu0
    %v1347 = vadd.f32 %v1239, %v1346
    %1348 = vmatprep.mubr.f32.mxu0 0.0
    %1349 = vmatmul.mubr.f32.gmra.mxu0 %v1252
    %v1350 = vpop.f32.mrf.mxu0
    %v1351 = vadd.f32 %v1235, %v1350
    %v1352 = vpop.f32.mrf.mxu0
    %v1353 = vadd.f32 %v1239, %v1352
    %1354 = vmatprep.mubr.f32.mxu0 0.0
    %1355 = vmatmul.mubr.f32.gmra.mxu0 %v1255
    %v1356 = vpop.f32.mrf.mxu0
    %v1357 = vadd.f32 %v1235, %v1356
    %v1358 = vpop.f32.mrf.mxu0
    %v1359 = vadd.f32 %v1239, %v1358
    %1360 = vmatprep.mubr.f32.mxu0 0.0
    %1361 = vmatmul.mubr.f32.gmra.mxu0 %v1258
    %v1362 = vpop.f32.mrf.mxu0
    %v1363 = vadd.f32 %v1235, %v1362
    %v1364 = vpop.f32.mrf.mxu0
    %v1365 = vadd.f32 %v1239, %v1364
    %1366 = vmatprep.mubr.f32.mxu0 0.0
    %1367 = vmatmul.mubr.f32.gmra.mxu0 %v1261
    %v1368 = vpop.f32.mrf.mxu0
    %v1369 = vadd.f32 %v1235, %v1368
    %v1370 = vpop.f32.mrf.mxu0
    %v1371 = vadd.f32 %v1239, %v1370
    %1372 = vmatprep.mubr.f32.mxu0 0.0
    %1373 = vmatmul.mubr.f32.gmra.mxu0 %v1264
    %v1374 = vpop.f32.mrf.mxu0
    %v1375 = vadd.f32 %v1235, %v1374
    %v1376 = vpop.f32.mrf.mxu0
    %v1377 = vadd.f32 %v1239, %v1376
    %1378 = vdwg.mxu0
    %v1379 = vld [vmem:[%s5] sm:$0xff]
    %v1380 = vld [vmem:[%s5 + $0x8] sm:$0xff]
    %v1381 = vld [vmem:[%s5 + $0x10] sm:$0xff]
    %v1382 = vld [vmem:[%s5 + $0x18] sm:$0xff]
    %v1383 = vld [vmem:[%s5 + $0x20] sm:$0xff]
    %v1384 = vld [vmem:[%s5 + $0x28] sm:$0xff]
    %v1385 = vld [vmem:[%s5 + $0x30] sm:$0xff]
    %v1386 = vld [vmem:[%s5 + $0x38] sm:$0xff]
    %v1387 = vld [vmem:[%s5 + $0x40] sm:$0xff]
    %v1388 = vld [vmem:[%s5 + $0x48] sm:$0xff]
    %v1389 = vld [vmem:[%s5 + $0x50] sm:$0xff]
    %v1390 = vld [vmem:[%s5 + $0x58] sm:$0xff]
    %v1391 = vld [vmem:[%s5 + $0x60] sm:$0xff]
    %v1392 = vld [vmem:[%s5 + $0x68] sm:$0xff]
    %v1393 = vld [vmem:[%s5 + $0x70] sm:$0xff]
    %v1394 = vld [vmem:[%s5 + $0x78] sm:$0xff]
    %v1395 = vsel %vm100, %v1333, %v1375
    %v1396 = vsel %vm101, %v1335, %v1377
    %1397 = vmatprep.subr.mxu0 0.0
    %1398 = vmatpush1.msra.mxu0 0.0
    %1399 = vmatprep.subr.mxu0 0.0
    %1400 = vmatpush1.msra.mxu0 0.0
    %1401 = vmatprep.subr.mxu0 0.0
    %1402 = vmatpush1.msra.mxu0 0.0
    %1403 = vmatprep.subr.mxu0 0.0
    %1404 = vmatpush1.msra.mxu0 0.0
    %1405 = vmatprep.subr.mxu0 0.0
    %1406 = vmatpush1.msra.mxu0 0.0
    %1407 = vmatprep.subr.mxu0 0.0
    %1408 = vmatpush1.msra.mxu0 0.0
    %1409 = vmatprep.subr.mxu0 0.0
    %1410 = vmatpush1.msra.mxu0 0.0
    %1411 = vmatprep.subr.mxu0 0.0
    %1412 = vmatpush1.msra.mxu0 0.0
    %1413 = vmatprep.subr.mxu0 %v1394
    %1414 = vmatpush1.msra.mxu0 %v1393
    %1415 = vmatprep.subr.mxu0 %v1392
    %1416 = vmatpush1.msra.mxu0 %v1391
    %1417 = vmatprep.subr.mxu0 %v1390
    %1418 = vmatpush1.msra.mxu0 %v1389
    %1419 = vmatprep.subr.mxu0 %v1388
    %1420 = vmatpush1.msra.mxu0 %v1387
    %1421 = vmatprep.subr.mxu0 %v1386
    %1422 = vmatpush1.msra.mxu0 %v1385
    %1423 = vmatprep.subr.mxu0 %v1384
    %1424 = vmatpush1.msra.mxu0 %v1383
    %1425 = vmatprep.subr.mxu0 %v1382
    %1426 = vmatpush1.msra.mxu0 %v1381
    %1427 = vmatprep.subr.mxu0 %v1380
    %1428 = vmatpush1.msra.mxu0 %v1379
    %1429 = vmatprep.subr.mxu0 0.0
    %1430 = vmatpush2.msra.mxu0 0.0
    %1431 = vmatprep.subr.mxu0 0.0
    %1432 = vmatpush2.msra.mxu0 0.0
    %1433 = vmatprep.subr.mxu0 0.0
    %1434 = vmatpush2.msra.mxu0 0.0
    %1435 = vmatprep.subr.mxu0 0.0
    %1436 = vmatpush2.msra.mxu0 0.0
    %1437 = vmatprep.subr.mxu0 0.0
    %1438 = vmatpush2.msra.mxu0 0.0
    %1439 = vmatprep.subr.mxu0 0.0
    %1440 = vmatpush2.msra.mxu0 0.0
    %1441 = vmatprep.subr.mxu0 0.0
    %1442 = vmatpush2.msra.mxu0 0.0
    %1443 = vmatprep.subr.mxu0 0.0
    %1444 = vmatpush2.msra.mxu0 0.0
    %1445 = vmatprep.subr.mxu0 0.0
    %1446 = vmatpush2.msra.mxu0 0.0
    %1447 = vmatprep.subr.mxu0 0.0
    %1448 = vmatpush2.msra.mxu0 0.0
    %1449 = vmatprep.subr.mxu0 0.0
    %1450 = vmatpush2.msra.mxu0 0.0
    %1451 = vmatprep.subr.mxu0 0.0
    %1452 = vmatpush2.msra.mxu0 0.0
    %1453 = vmatprep.subr.mxu0 0.0
    %1454 = vmatpush2.msra.mxu0 0.0
    %1455 = vmatprep.subr.mxu0 0.0
    %1456 = vmatpush2.msra.mxu0 0.0
    %1457 = vmatprep.subr.mxu0 0.0
    %1458 = vmatpush2.msra.mxu0 0.0
    %1459 = vmatprep.subr.mxu0 0.0
    %1460 = vmatpush2.msra.mxu0 0.0
    %1461 = vmatprep.mubr.f32.mxu0 0.0
    %1462 = vmatmul.mubr.f32.gmra.mxu0 %v288
    %v1463 = vpop.f32.mrf.mxu0
    %v1464 = vadd.f32 %v1395, %v1463
    %v1465 = vpop.f32.mrf.mxu0
    %v1466 = vadd.f32 %v1396, %v1465
    %1467 = vdwg.mxu0
    %v1468 = vtanh.pop %v1464
    %v1469 = vtanh.pop %v1466
    %v1470 = vmul.f32 %v1468, 0.5
    %v1471 = vmul.f32 %v1469, 0.5
    %v1472 = vadd.f32 %v1470, 0.5
    %v1473 = vadd.f32 %v1471, 0.5
    %v1474 = vmul.f32 %v1472, 0.0
    %1476 = vrot.lane.b32.xlu0 %v1469, 64
    %v1477 = vpop.permute.xlu0 %1476
    %v1479 = vmul.f32 %v1472, %v1477
    %1481 = vrot.lane.b32.xlu0 %v1479, 64
    %v1482 = vpop.permute.xlu0 %1481
    %v1484 = vadd.f32 %v1474, %v1482
    %v1485 = vtanh.pop %v1484
    %1487 = vrot.lane.b32.xlu0 %v1485, 64
    %v1488 = vpop.permute.xlu0 %1487
    %v1490 = vmul.f32 %v1473, %v1488
    %v1491 = vsel %vm100, %v1339, %v1369
    %v1492 = vsel %vm101, %v1341, %v1371
    %v1494 = vsel %vm286, %v1490, 0
    %1496 = vmatprep.subr.mxu0 0.0
    %1497 = vmatpush1.msra.mxu0 0.0
    %1498 = vmatprep.subr.mxu0 0.0
    %1499 = vmatpush1.msra.mxu0 0.0
    %1500 = vmatprep.subr.mxu0 0.0
    %1501 = vmatpush1.msra.mxu0 0.0
    %1502 = vmatprep.subr.mxu0 0.0
    %1503 = vmatpush1.msra.mxu0 0.0
    %1504 = vmatprep.subr.mxu0 0.0
    %1505 = vmatpush1.msra.mxu0 0.0
    %1506 = vmatprep.subr.mxu0 0.0
    %1507 = vmatpush1.msra.mxu0 0.0
    %1508 = vmatprep.subr.mxu0 0.0
    %1509 = vmatpush1.msra.mxu0 0.0
    %1510 = vmatprep.subr.mxu0 0.0
    %1511 = vmatpush1.msra.mxu0 0.0
    %1512 = vmatprep.subr.mxu0 %v1394
    %1513 = vmatpush1.msra.mxu0 %v1393
    %1514 = vmatprep.subr.mxu0 %v1392
    %1515 = vmatpush1.msra.mxu0 %v1391
    %1516 = vmatprep.subr.mxu0 %v1390
    %1517 = vmatpush1.msra.mxu0 %v1389
    %1518 = vmatprep.subr.mxu0 %v1388
    %1519 = vmatpush1.msra.mxu0 %v1387
    %1520 = vmatprep.subr.mxu0 %v1386
    %1521 = vmatpush1.msra.mxu0 %v1385
    %1522 = vmatprep.subr.mxu0 %v1384
    %1523 = vmatpush1.msra.mxu0 %v1383
    %1524 = vmatprep.subr.mxu0 %v1382
    %1525 = vmatpush1.msra.mxu0 %v1381
    %1526 = vmatprep.subr.mxu0 %v1380
    %1527 = vmatpush1.msra.mxu0 %v1379
    %1528 = vmatprep.subr.mxu0 0.0
    %1529 = vmatpush2.msra.mxu0 0.0
    %1530 = vmatprep.subr.mxu0 0.0
    %1531 = vmatpush2.msra.mxu0 0.0
    %1532 = vmatprep.subr.mxu0 0.0
    %1533 = vmatpush2.msra.mxu0 0.0
    %1534 = vmatprep.subr.mxu0 0.0
    %1535 = vmatpush2.msra.mxu0 0.0
    %1536 = vmatprep.subr.mxu0 0.0
    %1537 = vmatpush2.msra.mxu0 0.0
    %1538 = vmatprep.subr.mxu0 0.0
    %1539 = vmatpush2.msra.mxu0 0.0
    %1540 = vmatprep.subr.mxu0 0.0
    %1541 = vmatpush2.msra.mxu0 0.0
    %1542 = vmatprep.subr.mxu0 0.0
    %1543 = vmatpush2.msra.mxu0 0.0
    %1544 = vmatprep.subr.mxu0 0.0
    %1545 = vmatpush2.msra.mxu0 0.0
    %1546 = vmatprep.subr.mxu0 0.0
    %1547 = vmatpush2.msra.mxu0 0.0
    %1548 = vmatprep.subr.mxu0 0.0
    %1549 = vmatpush2.msra.mxu0 0.0
    %1550 = vmatprep.subr.mxu0 0.0
    %1551 = vmatpush2.msra.mxu0 0.0
    %1552 = vmatprep.subr.mxu0 0.0
    %1553 = vmatpush2.msra.mxu0 0.0
    %1554 = vmatprep.subr.mxu0 0.0
    %1555 = vmatpush2.msra.mxu0 0.0
    %1556 = vmatprep.subr.mxu0 0.0
    %1557 = vmatpush2.msra.mxu0 0.0
    %1558 = vmatprep.subr.mxu0 0.0
    %1559 = vmatpush2.msra.mxu0 0.0
    %1560 = vmatprep.mubr.f32.mxu0 0.0
    %1561 = vmatmul.mubr.f32.gmra.mxu0 %v1494
    %v1562 = vpop.f32.mrf.mxu0
    %v1563 = vadd.f32 %v1491, %v1562
    %v1564 = vpop.f32.mrf.mxu0
    %v1565 = vadd.f32 %v1492, %v1564
    %1566 = vdwg.mxu0
    %v1567 = vtanh.pop %v1563
    %v1568 = vtanh.pop %v1565
    %v1569 = vmul.f32 %v1567, 0.5
    %v1570 = vmul.f32 %v1568, 0.5
    %v1571 = vadd.f32 %v1569, 0.5
    %v1572 = vadd.f32 %v1570, 0.5
    %v1573 = vmul.f32 %v1571, %v1484
    %1575 = vrot.lane.b32.xlu0 %v1568, 64
    %v1576 = vpop.permute.xlu0 %1575
    %v1578 = vmul.f32 %v1571, %v1576
    %1580 = vrot.lane.b32.xlu0 %v1578, 64
    %v1581 = vpop.permute.xlu0 %1580
    %v1583 = vadd.f32 %v1573, %v1581
    %v1584 = vtanh.pop %v1583
    %1586 = vrot.lane.b32.xlu0 %v1584, 64
    %v1587 = vpop.permute.xlu0 %1586
    %v1589 = vmul.f32 %v1572, %v1587
    %v1590 = vsel %vm100, %v1345, %v1363
    %v1591 = vsel %vm101, %v1347, %v1365
    %v1593 = vsel %vm286, %v1589, 0
    %1595 = vmatprep.subr.mxu0 0.0
    %1596 = vmatpush1.msra.mxu0 0.0
    %1597 = vmatprep.subr.mxu0 0.0
    %1598 = vmatpush1.msra.mxu0 0.0
    %1599 = vmatprep.subr.mxu0 0.0
    %1600 = vmatpush1.msra.mxu0 0.0
    %1601 = vmatprep.subr.mxu0 0.0
    %1602 = vmatpush1.msra.mxu0 0.0
    %1603 = vmatprep.subr.mxu0 0.0
    %1604 = vmatpush1.msra.mxu0 0.0
    %1605 = vmatprep.subr.mxu0 0.0
    %1606 = vmatpush1.msra.mxu0 0.0
    %1607 = vmatprep.subr.mxu0 0.0
    %1608 = vmatpush1.msra.mxu0 0.0
    %1609 = vmatprep.subr.mxu0 0.0
    %1610 = vmatpush1.msra.mxu0 0.0
    %1611 = vmatprep.subr.mxu0 %v1394
    %1612 = vmatpush1.msra.mxu0 %v1393
    %1613 = vmatprep.subr.mxu0 %v1392
    %1614 = vmatpush1.msra.mxu0 %v1391
    %1615 = vmatprep.subr.mxu0 %v1390
    %1616 = vmatpush1.msra.mxu0 %v1389
    %1617 = vmatprep.subr.mxu0 %v1388
    %1618 = vmatpush1.msra.mxu0 %v1387
    %1619 = vmatprep.subr.mxu0 %v1386
    %1620 = vmatpush1.msra.mxu0 %v1385
    %1621 = vmatprep.subr.mxu0 %v1384
    %1622 = vmatpush1.msra.mxu0 %v1383
    %1623 = vmatprep.subr.mxu0 %v1382
    %1624 = vmatpush1.msra.mxu0 %v1381
    %1625 = vmatprep.subr.mxu0 %v1380
    %1626 = vmatpush1.msra.mxu0 %v1379
    %1627 = vmatprep.subr.mxu0 0.0
    %1628 = vmatpush2.msra.mxu0 0.0
    %1629 = vmatprep.subr.mxu0 0.0
    %1630 = vmatpush2.msra.mxu0 0.0
    %1631 = vmatprep.subr.mxu0 0.0
    %1632 = vmatpush2.msra.mxu0 0.0
    %1633 = vmatprep.subr.mxu0 0.0
    %1634 = vmatpush2.msra.mxu0 0.0
    %1635 = vmatprep.subr.mxu0 0.0
    %1636 = vmatpush2.msra.mxu0 0.0
    %1637 = vmatprep.subr.mxu0 0.0
    %1638 = vmatpush2.msra.mxu0 0.0
    %1639 = vmatprep.subr.mxu0 0.0
    %1640 = vmatpush2.msra.mxu0 0.0
    %1641 = vmatprep.subr.mxu0 0.0
    %1642 = vmatpush2.msra.mxu0 0.0
    %1643 = vmatprep.subr.mxu0 0.0
    %1644 = vmatpush2.msra.mxu0 0.0
    %1645 = vmatprep.subr.mxu0 0.0
    %1646 = vmatpush2.msra.mxu0 0.0
    %1647 = vmatprep.subr.mxu0 0.0
    %1648 = vmatpush2.msra.mxu0 0.0
    %1649 = vmatprep.subr.mxu0 0.0
    %1650 = vmatpush2.msra.mxu0 0.0
    %1651 = vmatprep.subr.mxu0 0.0
    %1652 = vmatpush2.msra.mxu0 0.0
    %1653 = vmatprep.subr.mxu0 0.0
    %1654 = vmatpush2.msra.mxu0 0.0
    %1655 = vmatprep.subr.mxu0 0.0
    %1656 = vmatpush2.msra.mxu0 0.0
    %1657 = vmatprep.subr.mxu0 0.0
    %1658 = vmatpush2.msra.mxu0 0.0
    %1659 = vmatprep.mubr.f32.mxu0 0.0
    %1660 = vmatmul.mubr.f32.gmra.mxu0 %v1593
    %v1661 = vpop.f32.mrf.mxu0
    %v1662 = vadd.f32 %v1590, %v1661
    %v1663 = vpop.f32.mrf.mxu0
    %v1664 = vadd.f32 %v1591, %v1663
    %1665 = vdwg.mxu0
    %v1666 = vtanh.pop %v1662
    %v1667 = vtanh.pop %v1664
    %v1668 = vmul.f32 %v1666, 0.5
    %v1669 = vmul.f32 %v1667, 0.5
    %v1670 = vadd.f32 %v1668, 0.5
    %v1671 = vadd.f32 %v1669, 0.5
    %v1672 = vmul.f32 %v1670, %v1583
    %1674 = vrot.lane.b32.xlu0 %v1667, 64
    %v1675 = vpop.permute.xlu0 %1674
    %v1677 = vmul.f32 %v1670, %v1675
    %1679 = vrot.lane.b32.xlu0 %v1677, 64
    %v1680 = vpop.permute.xlu0 %1679
    %v1682 = vadd.f32 %v1672, %v1680
    %v1683 = vtanh.pop %v1682
    %1685 = vrot.lane.b32.xlu0 %v1683, 64
    %v1686 = vpop.permute.xlu0 %1685
    %v1688 = vmul.f32 %v1671, %v1686
    %v1689 = vsel %vm100, %v1351, %v1357
    %v1690 = vsel %vm101, %v1353, %v1359
    %v1692 = vsel %vm286, %v1688, 0
    %1694 = vmatprep.subr.mxu0 0.0
    %1695 = vmatpush1.msra.mxu0 0.0
    %1696 = vmatprep.subr.mxu0 0.0
    %1697 = vmatpush1.msra.mxu0 0.0
    %1698 = vmatprep.subr.mxu0 0.0
    %1699 = vmatpush1.msra.mxu0 0.0
    %1700 = vmatprep.subr.mxu0 0.0
    %1701 = vmatpush1.msra.mxu0 0.0
    %1702 = vmatprep.subr.mxu0 0.0
    %1703 = vmatpush1.msra.mxu0 0.0
    %1704 = vmatprep.subr.mxu0 0.0
    %1705 = vmatpush1.msra.mxu0 0.0
    %1706 = vmatprep.subr.mxu0 0.0
    %1707 = vmatpush1.msra.mxu0 0.0
    %1708 = vmatprep.subr.mxu0 0.0
    %1709 = vmatpush1.msra.mxu0 0.0
    %1710 = vmatprep.subr.mxu0 %v1394
    %1711 = vmatpush1.msra.mxu0 %v1393
    %1712 = vmatprep.subr.mxu0 %v1392
    %1713 = vmatpush1.msra.mxu0 %v1391
    %1714 = vmatprep.subr.mxu0 %v1390
    %1715 = vmatpush1.msra.mxu0 %v1389
    %1716 = vmatprep.subr.mxu0 %v1388
    %1717 = vmatpush1.msra.mxu0 %v1387
    %1718 = vmatprep.subr.mxu0 %v1386
    %1719 = vmatpush1.msra.mxu0 %v1385
    %1720 = vmatprep.subr.mxu0 %v1384
    %1721 = vmatpush1.msra.mxu0 %v1383
    %1722 = vmatprep.subr.mxu0 %v1382
    %1723 = vmatpush1.msra.mxu0 %v1381
    %1724 = vmatprep.subr.mxu0 %v1380
    %1725 = vmatpush1.msra.mxu0 %v1379
    %1726 = vmatprep.subr.mxu0 0.0
    %1727 = vmatpush2.msra.mxu0 0.0
    %1728 = vmatprep.subr.mxu0 0.0
    %1729 = vmatpush2.msra.mxu0 0.0
    %1730 = vmatprep.subr.mxu0 0.0
    %1731 = vmatpush2.msra.mxu0 0.0
    %1732 = vmatprep.subr.mxu0 0.0
    %1733 = vmatpush2.msra.mxu0 0.0
    %1734 = vmatprep.subr.mxu0 0.0
    %1735 = vmatpush2.msra.mxu0 0.0
    %1736 = vmatprep.subr.mxu0 0.0
    %1737 = vmatpush2.msra.mxu0 0.0
    %1738 = vmatprep.subr.mxu0 0.0
    %1739 = vmatpush2.msra.mxu0 0.0
    %1740 = vmatprep.subr.mxu0 0.0
    %1741 = vmatpush2.msra.mxu0 0.0
    %1742 = vmatprep.subr.mxu0 0.0
    %1743 = vmatpush2.msra.mxu0 0.0
    %1744 = vmatprep.subr.mxu0 0.0
    %1745 = vmatpush2.msra.mxu0 0.0
    %1746 = vmatprep.subr.mxu0 0.0
    %1747 = vmatpush2.msra.mxu0 0.0
    %1748 = vmatprep.subr.mxu0 0.0
    %1749 = vmatpush2.msra.mxu0 0.0
    %1750 = vmatprep.subr.mxu0 0.0
    %1751 = vmatpush2.msra.mxu0 0.0
    %1752 = vmatprep.subr.mxu0 0.0
    %1753 = vmatpush2.msra.mxu0 0.0
    %1754 = vmatprep.subr.mxu0 0.0
    %1755 = vmatpush2.msra.mxu0 0.0
    %1756 = vmatprep.subr.mxu0 0.0
    %1757 = vmatpush2.msra.mxu0 0.0
    %1758 = vmatprep.mubr.f32.mxu0 0.0
    %1759 = vmatmul.mubr.f32.gmra.mxu0 %v1692
    %v1760 = vpop.f32.mrf.mxu0
    %v1761 = vadd.f32 %v1689, %v1760
    %v1762 = vpop.f32.mrf.mxu0
    %v1763 = vadd.f32 %v1690, %v1762
    %1764 = vdwg.mxu0
    %v1765 = vtanh.pop %v1761
    %v1766 = vtanh.pop %v1763
    %v1767 = vmul.f32 %v1765, 0.5
    %v1768 = vmul.f32 %v1766, 0.5
    %v1769 = vadd.f32 %v1767, 0.5
    %v1770 = vadd.f32 %v1768, 0.5
    %v1771 = vmul.f32 %v1769, %v1682
    %1773 = vrot.lane.b32.xlu0 %v1766, 64
    %v1774 = vpop.permute.xlu0 %1773
    %v1776 = vmul.f32 %v1769, %v1774
    %1778 = vrot.lane.b32.xlu0 %v1776, 64
    %v1779 = vpop.permute.xlu0 %1778
    %v1781 = vadd.f32 %v1771, %v1779
    %v1782 = vtanh.pop %v1781
    %1784 = vrot.lane.b32.xlu0 %v1782, 64
    %v1785 = vpop.permute.xlu0 %1784
    %v1787 = vmul.f32 %v1770, %v1785
    %v1788 = vsel %vm100, %v1357, %v1351
    %v1789 = vsel %vm101, %v1359, %v1353
    %v1791 = vsel %vm286, %v1787, 0
    %1793 = vmatprep.subr.mxu0 0.0
    %1794 = vmatpush1.msra.mxu0 0.0
    %1795 = vmatprep.subr.mxu0 0.0
    %1796 = vmatpush1.msra.mxu0 0.0
    %1797 = vmatprep.subr.mxu0 0.0
    %1798 = vmatpush1.msra.mxu0 0.0
    %1799 = vmatprep.subr.mxu0 0.0
    %1800 = vmatpush1.msra.mxu0 0.0
    %1801 = vmatprep.subr.mxu0 0.0
    %1802 = vmatpush1.msra.mxu0 0.0
    %1803 = vmatprep.subr.mxu0 0.0
    %1804 = vmatpush1.msra.mxu0 0.0
    %1805 = vmatprep.subr.mxu0 0.0
    %1806 = vmatpush1.msra.mxu0 0.0
    %1807 = vmatprep.subr.mxu0 0.0
    %1808 = vmatpush1.msra.mxu0 0.0
    %1809 = vmatprep.subr.mxu0 %v1394
    %1810 = vmatpush1.msra.mxu0 %v1393
    %1811 = vmatprep.subr.mxu0 %v1392
    %1812 = vmatpush1.msra.mxu0 %v1391
    %1813 = vmatprep.subr.mxu0 %v1390
    %1814 = vmatpush1.msra.mxu0 %v1389
    %1815 = vmatprep.subr.mxu0 %v1388
    %1816 = vmatpush1.msra.mxu0 %v1387
    %1817 = vmatprep.subr.mxu0 %v1386
    %1818 = vmatpush1.msra.mxu0 %v1385
    %1819 = vmatprep.subr.mxu0 %v1384
    %1820 = vmatpush1.msra.mxu0 %v1383
    %1821 = vmatprep.subr.mxu0 %v1382
    %1822 = vmatpush1.msra.mxu0 %v1381
    %1823 = vmatprep.subr.mxu0 %v1380
    %1824 = vmatpush1.msra.mxu0 %v1379
    %1825 = vmatprep.subr.mxu0 0.0
    %1826 = vmatpush2.msra.mxu0 0.0
    %1827 = vmatprep.subr.mxu0 0.0
    %1828 = vmatpush2.msra.mxu0 0.0
    %1829 = vmatprep.subr.mxu0 0.0
    %1830 = vmatpush2.msra.mxu0 0.0
    %1831 = vmatprep.subr.mxu0 0.0
    %1832 = vmatpush2.msra.mxu0 0.0
    %1833 = vmatprep.subr.mxu0 0.0
    %1834 = vmatpush2.msra.mxu0 0.0
    %1835 = vmatprep.subr.mxu0 0.0
    %1836 = vmatpush2.msra.mxu0 0.0
    %1837 = vmatprep.subr.mxu0 0.0
    %1838 = vmatpush2.msra.mxu0 0.0
    %1839 = vmatprep.subr.mxu0 0.0
    %1840 = vmatpush2.msra.mxu0 0.0
    %1841 = vmatprep.subr.mxu0 0.0
    %1842 = vmatpush2.msra.mxu0 0.0
    %1843 = vmatprep.subr.mxu0 0.0
    %1844 = vmatpush2.msra.mxu0 0.0
    %1845 = vmatprep.subr.mxu0 0.0
    %1846 = vmatpush2.msra.mxu0 0.0
    %1847 = vmatprep.subr.mxu0 0.0
    %1848 = vmatpush2.msra.mxu0 0.0
    %1849 = vmatprep.subr.mxu0 0.0
    %1850 = vmatpush2.msra.mxu0 0.0
    %1851 = vmatprep.subr.mxu0 0.0
    %1852 = vmatpush2.msra.mxu0 0.0
    %1853 = vmatprep.subr.mxu0 0.0
    %1854 = vmatpush2.msra.mxu0 0.0
    %1855 = vmatprep.subr.mxu0 0.0
    %1856 = vmatpush2.msra.mxu0 0.0
    %1857 = vmatprep.mubr.f32.mxu0 0.0
    %1858 = vmatmul.mubr.f32.gmra.mxu0 %v1791
    %v1859 = vpop.f32.mrf.mxu0
    %v1860 = vadd.f32 %v1788, %v1859
    %v1861 = vpop.f32.mrf.mxu0
    %v1862 = vadd.f32 %v1789, %v1861
    %1863 = vdwg.mxu0
    %v1864 = vtanh.pop %v1860
    %v1865 = vtanh.pop %v1862
    %v1866 = vmul.f32 %v1864, 0.5
    %v1867 = vmul.f32 %v1865, 0.5
    %v1868 = vadd.f32 %v1866, 0.5
    %v1869 = vadd.f32 %v1867, 0.5
    %v1870 = vmul.f32 %v1868, %v1781
    %1872 = vrot.lane.b32.xlu0 %v1865, 64
    %v1873 = vpop.permute.xlu0 %1872
    %v1875 = vmul.f32 %v1868, %v1873
    %1877 = vrot.lane.b32.xlu0 %v1875, 64
    %v1878 = vpop.permute.xlu0 %1877
    %v1880 = vadd.f32 %v1870, %v1878
    %v1881 = vtanh.pop %v1880
    %1883 = vrot.lane.b32.xlu0 %v1881, 64
    %v1884 = vpop.permute.xlu0 %1883
    %v1886 = vmul.f32 %v1869, %v1884
    %v1887 = vsel %vm100, %v1363, %v1345
    %v1888 = vsel %vm101, %v1365, %v1347
    %v1890 = vsel %vm286, %v1886, 0
    %1892 = vmatprep.subr.mxu0 0.0
    %1893 = vmatpush1.msra.mxu0 0.0
    %1894 = vmatprep.subr.mxu0 0.0
    %1895 = vmatpush1.msra.mxu0 0.0
    %1896 = vmatprep.subr.mxu0 0.0
    %1897 = vmatpush1.msra.mxu0 0.0
    %1898 = vmatprep.subr.mxu0 0.0
    %1899 = vmatpush1.msra.mxu0 0.0
    %1900 = vmatprep.subr.mxu0 0.0
    %1901 = vmatpush1.msra.mxu0 0.0
    %1902 = vmatprep.subr.mxu0 0.0
    %1903 = vmatpush1.msra.mxu0 0.0
    %1904 = vmatprep.subr.mxu0 0.0
    %1905 = vmatpush1.msra.mxu0 0.0
    %1906 = vmatprep.subr.mxu0 0.0
    %1907 = vmatpush1.msra.mxu0 0.0
    %1908 = vmatprep.subr.mxu0 %v1394
    %1909 = vmatpush1.msra.mxu0 %v1393
    %1910 = vmatprep.subr.mxu0 %v1392
    %1911 = vmatpush1.msra.mxu0 %v1391
    %1912 = vmatprep.subr.mxu0 %v1390
    %1913 = vmatpush1.msra.mxu0 %v1389
    %1914 = vmatprep.subr.mxu0 %v1388
    %1915 = vmatpush1.msra.mxu0 %v1387
    %1916 = vmatprep.subr.mxu0 %v1386
    %1917 = vmatpush1.msra.mxu0 %v1385
    %1918 = vmatprep.subr.mxu0 %v1384
    %1919 = vmatpush1.msra.mxu0 %v1383
    %1920 = vmatprep.subr.mxu0 %v1382
    %1921 = vmatpush1.msra.mxu0 %v1381
    %1922 = vmatprep.subr.mxu0 %v1380
    %1923 = vmatpush1.msra.mxu0 %v1379
    %1924 = vmatprep.subr.mxu0 0.0
    %1925 = vmatpush2.msra.mxu0 0.0
    %1926 = vmatprep.subr.mxu0 0.0
    %1927 = vmatpush2.msra.mxu0 0.0
    %1928 = vmatprep.subr.mxu0 0.0
    %1929 = vmatpush2.msra.mxu0 0.0
    %1930 = vmatprep.subr.mxu0 0.0
    %1931 = vmatpush2.msra.mxu0 0.0
    %1932 = vmatprep.subr.mxu0 0.0
    %1933 = vmatpush2.msra.mxu0 0.0
    %1934 = vmatprep.subr.mxu0 0.0
    %1935 = vmatpush2.msra.mxu0 0.0
    %1936 = vmatprep.subr.mxu0 0.0
    %1937 = vmatpush2.msra.mxu0 0.0
    %1938 = vmatprep.subr.mxu0 0.0
    %1939 = vmatpush2.msra.mxu0 0.0
    %1940 = vmatprep.subr.mxu0 0.0
    %1941 = vmatpush2.msra.mxu0 0.0
    %1942 = vmatprep.subr.mxu0 0.0
    %1943 = vmatpush2.msra.mxu0 0.0
    %1944 = vmatprep.subr.mxu0 0.0
    %1945 = vmatpush2.msra.mxu0 0.0
    %1946 = vmatprep.subr.mxu0 0.0
    %1947 = vmatpush2.msra.mxu0 0.0
    %1948 = vmatprep.subr.mxu0 0.0
    %1949 = vmatpush2.msra.mxu0 0.0
    %1950 = vmatprep.subr.mxu0 0.0
    %1951 = vmatpush2.msra.mxu0 0.0
    %1952 = vmatprep.subr.mxu0 0.0
    %1953 = vmatpush2.msra.mxu0 0.0
    %1954 = vmatprep.subr.mxu0 0.0
    %1955 = vmatpush2.msra.mxu0 0.0
    %1956 = vmatprep.mubr.f32.mxu0 0.0
    %1957 = vmatmul.mubr.f32.gmra.mxu0 %v1890
    %v1958 = vpop.f32.mrf.mxu0
    %v1959 = vadd.f32 %v1887, %v1958
    %v1960 = vpop.f32.mrf.mxu0
    %v1961 = vadd.f32 %v1888, %v1960
    %1962 = vdwg.mxu0
    %v1963 = vtanh.pop %v1959
    %v1964 = vtanh.pop %v1961
    %v1965 = vmul.f32 %v1963, 0.5
    %v1966 = vmul.f32 %v1964, 0.5
    %v1967 = vadd.f32 %v1965, 0.5
    %v1968 = vadd.f32 %v1966, 0.5
    %v1969 = vmul.f32 %v1967, %v1880
    %1971 = vrot.lane.b32.xlu0 %v1964, 64
    %v1972 = vpop.permute.xlu0 %1971
    %v1974 = vmul.f32 %v1967, %v1972
    %1976 = vrot.lane.b32.xlu0 %v1974, 64
    %v1977 = vpop.permute.xlu0 %1976
    %v1979 = vadd.f32 %v1969, %v1977
    %v1980 = vtanh.pop %v1979
    %1982 = vrot.lane.b32.xlu0 %v1980, 64
    %v1983 = vpop.permute.xlu0 %1982
    %v1985 = vmul.f32 %v1968, %v1983
    %v1986 = vsel %vm100, %v1369, %v1339
    %v1987 = vsel %vm101, %v1371, %v1341
    %v1989 = vsel %vm286, %v1985, 0
    %1991 = vmatprep.subr.mxu0 0.0
    %1992 = vmatpush1.msra.mxu0 0.0
    %1993 = vmatprep.subr.mxu0 0.0
    %1994 = vmatpush1.msra.mxu0 0.0
    %1995 = vmatprep.subr.mxu0 0.0
    %1996 = vmatpush1.msra.mxu0 0.0
    %1997 = vmatprep.subr.mxu0 0.0
    %1998 = vmatpush1.msra.mxu0 0.0
    %1999 = vmatprep.subr.mxu0 0.0
    %2000 = vmatpush1.msra.mxu0 0.0
    %2001 = vmatprep.subr.mxu0 0.0
    %2002 = vmatpush1.msra.mxu0 0.0
    %2003 = vmatprep.subr.mxu0 0.0
    %2004 = vmatpush1.msra.mxu0 0.0
    %2005 = vmatprep.subr.mxu0 0.0
    %2006 = vmatpush1.msra.mxu0 0.0
    %2007 = vmatprep.subr.mxu0 %v1394
    %2008 = vmatpush1.msra.mxu0 %v1393
    %2009 = vmatprep.subr.mxu0 %v1392
    %2010 = vmatpush1.msra.mxu0 %v1391
    %2011 = vmatprep.subr.mxu0 %v1390
    %2012 = vmatpush1.msra.mxu0 %v1389
    %2013 = vmatprep.subr.mxu0 %v1388
    %2014 = vmatpush1.msra.mxu0 %v1387
    %2015 = vmatprep.subr.mxu0 %v1386
    %2016 = vmatpush1.msra.mxu0 %v1385
    %2017 = vmatprep.subr.mxu0 %v1384
    %2018 = vmatpush1.msra.mxu0 %v1383
    %2019 = vmatprep.subr.mxu0 %v1382
    %2020 = vmatpush1.msra.mxu0 %v1381
    %2021 = vmatprep.subr.mxu0 %v1380
    %2022 = vmatpush1.msra.mxu0 %v1379
    %2023 = vmatprep.subr.mxu0 0.0
    %2024 = vmatpush2.msra.mxu0 0.0
    %2025 = vmatprep.subr.mxu0 0.0
    %2026 = vmatpush2.msra.mxu0 0.0
    %2027 = vmatprep.subr.mxu0 0.0
    %2028 = vmatpush2.msra.mxu0 0.0
    %2029 = vmatprep.subr.mxu0 0.0
    %2030 = vmatpush2.msra.mxu0 0.0
    %2031 = vmatprep.subr.mxu0 0.0
    %2032 = vmatpush2.msra.mxu0 0.0
    %2033 = vmatprep.subr.mxu0 0.0
    %2034 = vmatpush2.msra.mxu0 0.0
    %2035 = vmatprep.subr.mxu0 0.0
    %2036 = vmatpush2.msra.mxu0 0.0
    %2037 = vmatprep.subr.mxu0 0.0
    %2038 = vmatpush2.msra.mxu0 0.0
    %2039 = vmatprep.subr.mxu0 0.0
    %2040 = vmatpush2.msra.mxu0 0.0
    %2041 = vmatprep.subr.mxu0 0.0
    %2042 = vmatpush2.msra.mxu0 0.0
    %2043 = vmatprep.subr.mxu0 0.0
    %2044 = vmatpush2.msra.mxu0 0.0
    %2045 = vmatprep.subr.mxu0 0.0
    %2046 = vmatpush2.msra.mxu0 0.0
    %2047 = vmatprep.subr.mxu0 0.0
    %2048 = vmatpush2.msra.mxu0 0.0
    %2049 = vmatprep.subr.mxu0 0.0
    %2050 = vmatpush2.msra.mxu0 0.0
    %2051 = vmatprep.subr.mxu0 0.0
    %2052 = vmatpush2.msra.mxu0 0.0
    %2053 = vmatprep.subr.mxu0 0.0
    %2054 = vmatpush2.msra.mxu0 0.0
    %2055 = vmatprep.mubr.f32.mxu0 0.0
    %2056 = vmatmul.mubr.f32.gmra.mxu0 %v1989
    %v2057 = vpop.f32.mrf.mxu0
    %v2058 = vadd.f32 %v1986, %v2057
    %v2059 = vpop.f32.mrf.mxu0
    %v2060 = vadd.f32 %v1987, %v2059
    %2061 = vdwg.mxu0
    %v2062 = vtanh.pop %v2058
    %v2063 = vtanh.pop %v2060
    %v2064 = vmul.f32 %v2062, 0.5
    %v2065 = vmul.f32 %v2063, 0.5
    %v2066 = vadd.f32 %v2064, 0.5
    %v2067 = vadd.f32 %v2065, 0.5
    %v2068 = vmul.f32 %v2066, %v1979
    %2070 = vrot.lane.b32.xlu0 %v2063, 64
    %v2071 = vpop.permute.xlu0 %2070
    %v2073 = vmul.f32 %v2066, %v2071
    %2075 = vrot.lane.b32.xlu0 %v2073, 64
    %v2076 = vpop.permute.xlu0 %2075
    %v2078 = vadd.f32 %v2068, %v2076
    %v2079 = vtanh.pop %v2078
    %2081 = vrot.lane.b32.xlu0 %v2079, 64
    %v2082 = vpop.permute.xlu0 %2081
    %v2084 = vmul.f32 %v2067, %v2082
    %v2085 = vsel %vm100, %v1375, %v1333
    %v2086 = vsel %vm101, %v1377, %v1335
    %v2088 = vsel %vm286, %v2084, 0
    %2090 = vmatprep.subr.mxu0 0.0
    %2091 = vmatpush1.msra.mxu0 0.0
    %2092 = vmatprep.subr.mxu0 0.0
    %2093 = vmatpush1.msra.mxu0 0.0
    %2094 = vmatprep.subr.mxu0 0.0
    %2095 = vmatpush1.msra.mxu0 0.0
    %2096 = vmatprep.subr.mxu0 0.0
    %2097 = vmatpush1.msra.mxu0 0.0
    %2098 = vmatprep.subr.mxu0 0.0
    %2099 = vmatpush1.msra.mxu0 0.0
    %2100 = vmatprep.subr.mxu0 0.0
    %2101 = vmatpush1.msra.mxu0 0.0
    %2102 = vmatprep.subr.mxu0 0.0
    %2103 = vmatpush1.msra.mxu0 0.0
    %2104 = vmatprep.subr.mxu0 0.0
    %2105 = vmatpush1.msra.mxu0 0.0
    %2106 = vmatprep.subr.mxu0 %v1394
    %2107 = vmatpush1.msra.mxu0 %v1393
    %2108 = vmatprep.subr.mxu0 %v1392
    %2109 = vmatpush1.msra.mxu0 %v1391
    %2110 = vmatprep.subr.mxu0 %v1390
    %2111 = vmatpush1.msra.mxu0 %v1389
    %2112 = vmatprep.subr.mxu0 %v1388
    %2113 = vmatpush1.msra.mxu0 %v1387
    %2114 = vmatprep.subr.mxu0 %v1386
    %2115 = vmatpush1.msra.mxu0 %v1385
    %2116 = vmatprep.subr.mxu0 %v1384
    %2117 = vmatpush1.msra.mxu0 %v1383
    %2118 = vmatprep.subr.mxu0 %v1382
    %2119 = vmatpush1.msra.mxu0 %v1381
    %2120 = vmatprep.subr.mxu0 %v1380
    %2121 = vmatpush1.msra.mxu0 %v1379
    %2122 = vmatprep.subr.mxu0 0.0
    %2123 = vmatpush2.msra.mxu0 0.0
    %2124 = vmatprep.subr.mxu0 0.0
    %2125 = vmatpush2.msra.mxu0 0.0
    %2126 = vmatprep.subr.mxu0 0.0
    %2127 = vmatpush2.msra.mxu0 0.0
    %2128 = vmatprep.subr.mxu0 0.0
    %2129 = vmatpush2.msra.mxu0 0.0
    %2130 = vmatprep.subr.mxu0 0.0
    %2131 = vmatpush2.msra.mxu0 0.0
    %2132 = vmatprep.subr.mxu0 0.0
    %2133 = vmatpush2.msra.mxu0 0.0
    %2134 = vmatprep.subr.mxu0 0.0
    %2135 = vmatpush2.msra.mxu0 0.0
    %2136 = vmatprep.subr.mxu0 0.0
    %2137 = vmatpush2.msra.mxu0 0.0
    %2138 = vmatprep.subr.mxu0 0.0
    %2139 = vmatpush2.msra.mxu0 0.0
    %2140 = vmatprep.subr.mxu0 0.0
    %2141 = vmatpush2.msra.mxu0 0.0
    %2142 = vmatprep.subr.mxu0 0.0
    %2143 = vmatpush2.msra.mxu0 0.0
    %2144 = vmatprep.subr.mxu0 0.0
    %2145 = vmatpush2.msra.mxu0 0.0
    %2146 = vmatprep.subr.mxu0 0.0
    %2147 = vmatpush2.msra.mxu0 0.0
    %2148 = vmatprep.subr.mxu0 0.0
    %2149 = vmatpush2.msra.mxu0 0.0
    %2150 = vmatprep.subr.mxu0 0.0
    %2151 = vmatpush2.msra.mxu0 0.0
    %2152 = vmatprep.subr.mxu0 0.0
    %2153 = vmatpush2.msra.mxu0 0.0
    %2154 = vmatprep.mubr.f32.mxu0 0.0
    %2155 = vmatmul.mubr.f32.gmra.mxu0 %v2088
    %v2156 = vpop.f32.mrf.mxu0
    %v2157 = vadd.f32 %v2085, %v2156
    %v2158 = vpop.f32.mrf.mxu0
    %v2159 = vadd.f32 %v2086, %v2158
    %2160 = vdwg.mxu0
    %v2161 = vtanh.pop %v2157
    %v2162 = vtanh.pop %v2159
    %v2163 = vmul.f32 %v2161, 0.5
    %v2164 = vmul.f32 %v2162, 0.5
    %v2165 = vadd.f32 %v2163, 0.5
    %v2166 = vadd.f32 %v2164, 0.5
    %v2167 = vmul.f32 %v2165, %v2078
    %2169 = vrot.lane.b32.xlu0 %v2162, 64
    %v2170 = vpop.permute.xlu0 %2169
    %v2172 = vmul.f32 %v2165, %v2170
    %2174 = vrot.lane.b32.xlu0 %v2172, 64
    %v2175 = vpop.permute.xlu0 %2174
    %v2177 = vadd.f32 %v2167, %v2175
    %v2178 = vtanh.pop %v2177
    %2180 = vrot.lane.b32.xlu0 %v2178, 64
    %v2181 = vpop.permute.xlu0 %2180
    %v2183 = vmul.f32 %v2166, %v2181
    %v2184 = vsel %vm130, %v2183, %v1490
    %v2185 = vld [vmem:[#allocation7] sm:$0xff]
    %v2186 = vld [vmem:[#allocation7 + $0x8] sm:$0xff]
    %v2187 = vld [vmem:[#allocation7 + $0x10] sm:$0xff]
    %v2188 = vld [vmem:[#allocation7 + $0x18] sm:$0xff]
    %v2189 = vld [vmem:[#allocation7 + $0x20] sm:$0xff]
    %v2190 = vld [vmem:[#allocation7 + $0x28] sm:$0xff]
    %v2191 = vld [vmem:[#allocation7 + $0x30] sm:$0xff]
    %v2192 = vld [vmem:[#allocation7 + $0x38] sm:$0xff]
    %v2193 = vld [vmem:[#allocation7 + $0x40] sm:$0xff]
    %v2194 = vld [vmem:[#allocation7 + $0x48] sm:$0xff]
    %v2195 = vld [vmem:[#allocation7 + $0x50] sm:$0xff]
    %v2196 = vld [vmem:[#allocation7 + $0x58] sm:$0xff]
    %v2197 = vld [vmem:[#allocation7 + $0x60] sm:$0xff]
    %v2198 = vld [vmem:[#allocation7 + $0x68] sm:$0xff]
    %v2199 = vld [vmem:[#allocation7 + $0x70] sm:$0xff]
    %v2200 = vld [vmem:[#allocation7 + $0x78] sm:$0xff]
    %v2201 = vld [vmem:[#allocation7 + $0x80] sm:$0xff]
    %v2202 = vld [vmem:[#allocation7 + $0x88] sm:$0xff]
    %v2203 = vld [vmem:[#allocation7 + $0x90] sm:$0xff]
    %v2204 = vld [vmem:[#allocation7 + $0x98] sm:$0xff]
    %v2205 = vld [vmem:[#allocation7 + $0xa0] sm:$0xff]
    %v2206 = vld [vmem:[#allocation7 + $0xa8] sm:$0xff]
    %v2207 = vld [vmem:[#allocation7 + $0xb0] sm:$0xff]
    %v2208 = vld [vmem:[#allocation7 + $0xb8] sm:$0xff]
    %v2209 = vld [vmem:[#allocation7 + $0xc0] sm:$0xff]
    %v2210 = vld [vmem:[#allocation7 + $0xc8] sm:$0xff]
    %v2211 = vld [vmem:[#allocation7 + $0xd0] sm:$0xff]
    %v2212 = vld [vmem:[#allocation7 + $0xd8] sm:$0xff]
    %v2213 = vld [vmem:[#allocation7 + $0xe0] sm:$0xff]
    %v2214 = vld [vmem:[#allocation7 + $0xe8] sm:$0xff]
    %v2215 = vld [vmem:[#allocation7 + $0xf0] sm:$0xff]
    %v2216 = vld [vmem:[#allocation7 + $0xf8] sm:$0xff]
    %v2217 = vld [vmem:[#allocation7 + $0x100] sm:$0xff]
    %v2218 = vld [vmem:[#allocation7 + $0x108] sm:$0xff]
    %v2219 = vld [vmem:[#allocation7 + $0x110] sm:$0xff]
    %v2220 = vld [vmem:[#allocation7 + $0x118] sm:$0xff]
    %v2221 = vld [vmem:[#allocation7 + $0x120] sm:$0xff]
    %v2222 = vld [vmem:[#allocation7 + $0x128] sm:$0xff]
    %v2223 = vld [vmem:[#allocation7 + $0x130] sm:$0xff]
    %v2224 = vld [vmem:[#allocation7 + $0x138] sm:$0xff]
    %v2225 = vld [vmem:[#allocation7 + $0x140] sm:$0xff]
    %v2226 = vld [vmem:[#allocation7 + $0x148] sm:$0xff]
    %v2227 = vld [vmem:[#allocation7 + $0x150] sm:$0xff]
    %v2228 = vld [vmem:[#allocation7 + $0x158] sm:$0xff]
    %v2229 = vld [vmem:[#allocation7 + $0x160] sm:$0xff]
    %v2230 = vld [vmem:[#allocation7 + $0x168] sm:$0xff]
    %v2231 = vld [vmem:[#allocation7 + $0x170] sm:$0xff]
    %v2232 = vld [vmem:[#allocation7 + $0x178] sm:$0xff]
    %v2233 = vld [vmem:[#allocation7 + $0x180] sm:$0xff]
    %v2234 = vld [vmem:[#allocation7 + $0x188] sm:$0xff]
    %v2235 = vld [vmem:[#allocation7 + $0x190] sm:$0xff]
    %v2236 = vld [vmem:[#allocation7 + $0x198] sm:$0xff]
    %v2237 = vld [vmem:[#allocation7 + $0x1a0] sm:$0xff]
    %v2238 = vld [vmem:[#allocation7 + $0x1a8] sm:$0xff]
    %v2239 = vld [vmem:[#allocation7 + $0x1b0] sm:$0xff]
    %v2240 = vld [vmem:[#allocation7 + $0x1b8] sm:$0xff]
    %v2241 = vld [vmem:[#allocation7 + $0x1c0] sm:$0xff]
    %v2242 = vld [vmem:[#allocation7 + $0x1c8] sm:$0xff]
    %v2243 = vld [vmem:[#allocation7 + $0x1d0] sm:$0xff]
    %v2244 = vld [vmem:[#allocation7 + $0x1d8] sm:$0xff]
    %v2245 = vld [vmem:[#allocation7 + $0x1e0] sm:$0xff]
    %v2246 = vld [vmem:[#allocation7 + $0x1e8] sm:$0xff]
    %v2247 = vld [vmem:[#allocation7 + $0x1f0] sm:$0xff]
    %v2248 = vld [vmem:[#allocation7 + $0x1f8] sm:$0xff]
    %v2249 = vld [vmem:[%s8] sm:$0xff]
    %v2251 = vlaneseq
    %v2252 = vshrl.u32 %v2251, 7
    %v2253 = vsub.s32 0, %v2252
    %v2254 = vrot.slane %v2249, %v2253
    %v2255 = vlaneseq
    %v2256 = vshrl.u32 %v2255, 7
    %v2257 = vsub.s32 1, %v2256
    %v2258 = vrot.slane %v2249, %v2257
    %v2259 = vlaneseq
    %v2260 = vshrl.u32 %v2259, 7
    %v2261 = vsub.s32 2, %v2260
    %v2262 = vrot.slane %v2249, %v2261
    %v2263 = vlaneseq
    %v2264 = vshrl.u32 %v2263, 7
    %v2265 = vsub.s32 3, %v2264
    %v2266 = vrot.slane %v2249, %v2265
    %v2267 = vlaneseq
    %v2268 = vshrl.u32 %v2267, 7
    %v2269 = vsub.s32 4, %v2268
    %v2270 = vrot.slane %v2249, %v2269
    %v2271 = vlaneseq
    %v2272 = vshrl.u32 %v2271, 7
    %v2273 = vsub.s32 5, %v2272
    %v2274 = vrot.slane %v2249, %v2273
    %v2275 = vlaneseq
    %v2276 = vshrl.u32 %v2275, 7
    %v2277 = vsub.s32 6, %v2276
    %v2278 = vrot.slane %v2249, %v2277
    %v2279 = vlaneseq
    %v2280 = vshrl.u32 %v2279, 7
    %v2281 = vsub.s32 7, %v2280
    %v2282 = vrot.slane %v2249, %v2281
    %v2292 = vsel %vm286, %v2184, 0
    %2294 = vmatprep.subr.mxu0 0.0
    %2295 = vmatpush1.msra.mxu0 0.0
    %2296 = vmatprep.subr.mxu0 0.0
    %2297 = vmatpush1.msra.mxu0 0.0
    %2298 = vmatprep.subr.mxu0 0.0
    %2299 = vmatpush1.msra.mxu0 0.0
    %2300 = vmatprep.subr.mxu0 0.0
    %2301 = vmatpush1.msra.mxu0 0.0
    %2302 = vmatprep.subr.mxu0 0.0
    %2303 = vmatpush1.msra.mxu0 0.0
    %2304 = vmatprep.subr.mxu0 0.0
    %2305 = vmatpush1.msra.mxu0 0.0
    %2306 = vmatprep.subr.mxu0 0.0
    %2307 = vmatpush1.msra.mxu0 0.0
    %2308 = vmatprep.subr.mxu0 0.0
    %2309 = vmatpush1.msra.mxu0 0.0
    %2310 = vmatprep.subr.mxu0 %v2242
    %2311 = vmatpush1.msra.mxu0 %v2241
    %2312 = vmatprep.subr.mxu0 %v2234
    %2313 = vmatpush1.msra.mxu0 %v2233
    %2314 = vmatprep.subr.mxu0 %v2226
    %2315 = vmatpush1.msra.mxu0 %v2225
    %2316 = vmatprep.subr.mxu0 %v2218
    %2317 = vmatpush1.msra.mxu0 %v2217
    %2318 = vmatprep.subr.mxu0 %v2210
    %2319 = vmatpush1.msra.mxu0 %v2209
    %2320 = vmatprep.subr.mxu0 %v2202
    %2321 = vmatpush1.msra.mxu0 %v2201
    %2322 = vmatprep.subr.mxu0 %v2194
    %2323 = vmatpush1.msra.mxu0 %v2193
    %2324 = vmatprep.subr.mxu0 %v2186
    %2325 = vmatpush1.msra.mxu0 %v2185
    %2326 = vmatprep.subr.mxu0 0.0
    %2327 = vmatpush2.msra.mxu0 0.0
    %2328 = vmatprep.subr.mxu0 0.0
    %2329 = vmatpush2.msra.mxu0 0.0
    %2330 = vmatprep.subr.mxu0 0.0
    %2331 = vmatpush2.msra.mxu0 0.0
    %2332 = vmatprep.subr.mxu0 0.0
    %2333 = vmatpush2.msra.mxu0 0.0
    %2334 = vmatprep.subr.mxu0 0.0
    %2335 = vmatpush2.msra.mxu0 0.0
    %2336 = vmatprep.subr.mxu0 0.0
    %2337 = vmatpush2.msra.mxu0 0.0
    %2338 = vmatprep.subr.mxu0 0.0
    %2339 = vmatpush2.msra.mxu0 0.0
    %2340 = vmatprep.subr.mxu0 0.0
    %2341 = vmatpush2.msra.mxu0 0.0
    %2342 = vmatprep.subr.mxu0 0.0
    %2343 = vmatpush2.msra.mxu0 0.0
    %2344 = vmatprep.subr.mxu0 0.0
    %2345 = vmatpush2.msra.mxu0 0.0
    %2346 = vmatprep.subr.mxu0 0.0
    %2347 = vmatpush2.msra.mxu0 0.0
    %2348 = vmatprep.subr.mxu0 0.0
    %2349 = vmatpush2.msra.mxu0 0.0
    %2350 = vmatprep.subr.mxu0 0.0
    %2351 = vmatpush2.msra.mxu0 0.0
    %2352 = vmatprep.subr.mxu0 0.0
    %2353 = vmatpush2.msra.mxu0 0.0
    %2354 = vmatprep.subr.mxu0 0.0
    %2355 = vmatpush2.msra.mxu0 0.0
    %2356 = vmatprep.subr.mxu0 0.0
    %2357 = vmatpush2.msra.mxu0 0.0
    %2358 = vmatprep.mubr.f32.mxu0 0.0
    %2359 = vmatmul.mubr.f32.gmra.mxu0 %v2292
    %v2360 = vpop.f32.mrf.mxu0
    %v2361 = vadd.f32 %v2254, %v2360
    %v2362 = vpop.f32.mrf.mxu0
    %v2363 = vadd.f32 %v2258, %v2362
    %2364 = vdwg.mxu0
    %2365 = vmatprep.subr.mxu0 0.0
    %2366 = vmatpush1.msra.mxu0 0.0
    %2367 = vmatprep.subr.mxu0 0.0
    %2368 = vmatpush1.msra.mxu0 0.0
    %2369 = vmatprep.subr.mxu0 0.0
    %2370 = vmatpush1.msra.mxu0 0.0
    %2371 = vmatprep.subr.mxu0 0.0
    %2372 = vmatpush1.msra.mxu0 0.0
    %2373 = vmatprep.subr.mxu0 0.0
    %2374 = vmatpush1.msra.mxu0 0.0
    %2375 = vmatprep.subr.mxu0 0.0
    %2376 = vmatpush1.msra.mxu0 0.0
    %2377 = vmatprep.subr.mxu0 0.0
    %2378 = vmatpush1.msra.mxu0 0.0
    %2379 = vmatprep.subr.mxu0 0.0
    %2380 = vmatpush1.msra.mxu0 0.0
    %2381 = vmatprep.subr.mxu0 %v2244
    %2382 = vmatpush1.msra.mxu0 %v2243
    %2383 = vmatprep.subr.mxu0 %v2236
    %2384 = vmatpush1.msra.mxu0 %v2235
    %2385 = vmatprep.subr.mxu0 %v2228
    %2386 = vmatpush1.msra.mxu0 %v2227
    %2387 = vmatprep.subr.mxu0 %v2220
    %2388 = vmatpush1.msra.mxu0 %v2219
    %2389 = vmatprep.subr.mxu0 %v2212
    %2390 = vmatpush1.msra.mxu0 %v2211
    %2391 = vmatprep.subr.mxu0 %v2204
    %2392 = vmatpush1.msra.mxu0 %v2203
    %2393 = vmatprep.subr.mxu0 %v2196
    %2394 = vmatpush1.msra.mxu0 %v2195
    %2395 = vmatprep.subr.mxu0 %v2188
    %2396 = vmatpush1.msra.mxu0 %v2187
    %2397 = vmatprep.subr.mxu0 0.0
    %2398 = vmatpush2.msra.mxu0 0.0
    %2399 = vmatprep.subr.mxu0 0.0
    %2400 = vmatpush2.msra.mxu0 0.0
    %2401 = vmatprep.subr.mxu0 0.0
    %2402 = vmatpush2.msra.mxu0 0.0
    %2403 = vmatprep.subr.mxu0 0.0
    %2404 = vmatpush2.msra.mxu0 0.0
    %2405 = vmatprep.subr.mxu0 0.0
    %2406 = vmatpush2.msra.mxu0 0.0
    %2407 = vmatprep.subr.mxu0 0.0
    %2408 = vmatpush2.msra.mxu0 0.0
    %2409 = vmatprep.subr.mxu0 0.0
    %2410 = vmatpush2.msra.mxu0 0.0
    %2411 = vmatprep.subr.mxu0 0.0
    %2412 = vmatpush2.msra.mxu0 0.0
    %2413 = vmatprep.subr.mxu0 0.0
    %2414 = vmatpush2.msra.mxu0 0.0
    %2415 = vmatprep.subr.mxu0 0.0
    %2416 = vmatpush2.msra.mxu0 0.0
    %2417 = vmatprep.subr.mxu0 0.0
    %2418 = vmatpush2.msra.mxu0 0.0
    %2419 = vmatprep.subr.mxu0 0.0
    %2420 = vmatpush2.msra.mxu0 0.0
    %2421 = vmatprep.subr.mxu0 0.0
    %2422 = vmatpush2.msra.mxu0 0.0
    %2423 = vmatprep.subr.mxu0 0.0
    %2424 = vmatpush2.msra.mxu0 0.0
    %2425 = vmatprep.subr.mxu0 0.0
    %2426 = vmatpush2.msra.mxu0 0.0
    %2427 = vmatprep.subr.mxu0 0.0
    %2428 = vmatpush2.msra.mxu0 0.0
    %2429 = vmatprep.mubr.f32.mxu0 0.0
    %2430 = vmatmul.mubr.f32.gmra.mxu0 %v2292
    %v2431 = vpop.f32.mrf.mxu0
    %v2432 = vadd.f32 %v2262, %v2431
    %v2433 = vpop.f32.mrf.mxu0
    %v2434 = vadd.f32 %v2266, %v2433
    %2435 = vdwg.mxu0
    %2436 = vmatprep.subr.mxu0 0.0
    %2437 = vmatpush1.msra.mxu0 0.0
    %2438 = vmatprep.subr.mxu0 0.0
    %2439 = vmatpush1.msra.mxu0 0.0
    %2440 = vmatprep.subr.mxu0 0.0
    %2441 = vmatpush1.msra.mxu0 0.0
    %2442 = vmatprep.subr.mxu0 0.0
    %2443 = vmatpush1.msra.mxu0 0.0
    %2444 = vmatprep.subr.mxu0 0.0
    %2445 = vmatpush1.msra.mxu0 0.0
    %2446 = vmatprep.subr.mxu0 0.0
    %2447 = vmatpush1.msra.mxu0 0.0
    %2448 = vmatprep.subr.mxu0 0.0
    %2449 = vmatpush1.msra.mxu0 0.0
    %2450 = vmatprep.subr.mxu0 0.0
    %2451 = vmatpush1.msra.mxu0 0.0
    %2452 = vmatprep.subr.mxu0 %v2246
    %2453 = vmatpush1.msra.mxu0 %v2245
    %2454 = vmatprep.subr.mxu0 %v2238
    %2455 = vmatpush1.msra.mxu0 %v2237
    %2456 = vmatprep.subr.mxu0 %v2230
    %2457 = vmatpush1.msra.mxu0 %v2229
    %2458 = vmatprep.subr.mxu0 %v2222
    %2459 = vmatpush1.msra.mxu0 %v2221
    %2460 = vmatprep.subr.mxu0 %v2214
    %2461 = vmatpush1.msra.mxu0 %v2213
    %2462 = vmatprep.subr.mxu0 %v2206
    %2463 = vmatpush1.msra.mxu0 %v2205
    %2464 = vmatprep.subr.mxu0 %v2198
    %2465 = vmatpush1.msra.mxu0 %v2197
    %2466 = vmatprep.subr.mxu0 %v2190
    %2467 = vmatpush1.msra.mxu0 %v2189
    %2468 = vmatprep.subr.mxu0 0.0
    %2469 = vmatpush2.msra.mxu0 0.0
    %2470 = vmatprep.subr.mxu0 0.0
    %2471 = vmatpush2.msra.mxu0 0.0
    %2472 = vmatprep.subr.mxu0 0.0
    %2473 = vmatpush2.msra.mxu0 0.0
    %2474 = vmatprep.subr.mxu0 0.0
    %2475 = vmatpush2.msra.mxu0 0.0
    %2476 = vmatprep.subr.mxu0 0.0
    %2477 = vmatpush2.msra.mxu0 0.0
    %2478 = vmatprep.subr.mxu0 0.0
    %2479 = vmatpush2.msra.mxu0 0.0
    %2480 = vmatprep.subr.mxu0 0.0
    %2481 = vmatpush2.msra.mxu0 0.0
    %2482 = vmatprep.subr.mxu0 0.0
    %2483 = vmatpush2.msra.mxu0 0.0
    %2484 = vmatprep.subr.mxu0 0.0
    %2485 = vmatpush2.msra.mxu0 0.0
    %2486 = vmatprep.subr.mxu0 0.0
    %2487 = vmatpush2.msra.mxu0 0.0
    %2488 = vmatprep.subr.mxu0 0.0
    %2489 = vmatpush2.msra.mxu0 0.0
    %2490 = vmatprep.subr.mxu0 0.0
    %2491 = vmatpush2.msra.mxu0 0.0
    %2492 = vmatprep.subr.mxu0 0.0
    %2493 = vmatpush2.msra.mxu0 0.0
    %2494 = vmatprep.subr.mxu0 0.0
    %2495 = vmatpush2.msra.mxu0 0.0
    %2496 = vmatprep.subr.mxu0 0.0
    %2497 = vmatpush2.msra.mxu0 0.0
    %2498 = vmatprep.subr.mxu0 0.0
    %2499 = vmatpush2.msra.mxu0 0.0
    %2500 = vmatprep.mubr.f32.mxu0 0.0
    %2501 = vmatmul.mubr.f32.gmra.mxu0 %v2292
    %v2502 = vpop.f32.mrf.mxu0
    %v2503 = vadd.f32 %v2270, %v2502
    %v2504 = vpop.f32.mrf.mxu0
    %v2505 = vadd.f32 %v2274, %v2504
    %2506 = vdwg.mxu0
    %2507 = vmatprep.subr.mxu0 0.0
    %2508 = vmatpush1.msra.mxu0 0.0
    %2509 = vmatprep.subr.mxu0 0.0
    %2510 = vmatpush1.msra.mxu0 0.0
    %2511 = vmatprep.subr.mxu0 0.0
    %2512 = vmatpush1.msra.mxu0 0.0
    %2513 = vmatprep.subr.mxu0 0.0
    %2514 = vmatpush1.msra.mxu0 0.0
    %2515 = vmatprep.subr.mxu0 0.0
    %2516 = vmatpush1.msra.mxu0 0.0
    %2517 = vmatprep.subr.mxu0 0.0
    %2518 = vmatpush1.msra.mxu0 0.0
    %2519 = vmatprep.subr.mxu0 0.0
    %2520 = vmatpush1.msra.mxu0 0.0
    %2521 = vmatprep.subr.mxu0 0.0
    %2522 = vmatpush1.msra.mxu0 0.0
    %2523 = vmatprep.subr.mxu0 %v2248
    %2524 = vmatpush1.msra.mxu0 %v2247
    %2525 = vmatprep.subr.mxu0 %v2240
    %2526 = vmatpush1.msra.mxu0 %v2239
    %2527 = vmatprep.subr.mxu0 %v2232
    %2528 = vmatpush1.msra.mxu0 %v2231
    %2529 = vmatprep.subr.mxu0 %v2224
    %2530 = vmatpush1.msra.mxu0 %v2223
    %2531 = vmatprep.subr.mxu0 %v2216
    %2532 = vmatpush1.msra.mxu0 %v2215
    %2533 = vmatprep.subr.mxu0 %v2208
    %2534 = vmatpush1.msra.mxu0 %v2207
    %2535 = vmatprep.subr.mxu0 %v2200
    %2536 = vmatpush1.msra.mxu0 %v2199
    %2537 = vmatprep.subr.mxu0 %v2192
    %2538 = vmatpush1.msra.mxu0 %v2191
    %2539 = vmatprep.subr.mxu0 0.0
    %2540 = vmatpush2.msra.mxu0 0.0
    %2541 = vmatprep.subr.mxu0 0.0
    %2542 = vmatpush2.msra.mxu0 0.0
    %2543 = vmatprep.subr.mxu0 0.0
    %2544 = vmatpush2.msra.mxu0 0.0
    %2545 = vmatprep.subr.mxu0 0.0
    %2546 = vmatpush2.msra.mxu0 0.0
    %2547 = vmatprep.subr.mxu0 0.0
    %2548 = vmatpush2.msra.mxu0 0.0
    %2549 = vmatprep.subr.mxu0 0.0
    %2550 = vmatpush2.msra.mxu0 0.0
    %2551 = vmatprep.subr.mxu0 0.0
    %2552 = vmatpush2.msra.mxu0 0.0
    %2553 = vmatprep.subr.mxu0 0.0
    %2554 = vmatpush2.msra.mxu0 0.0
    %2555 = vmatprep.subr.mxu0 0.0
    %2556 = vmatpush2.msra.mxu0 0.0
    %2557 = vmatprep.subr.mxu0 0.0
    %2558 = vmatpush2.msra.mxu0 0.0
    %2559 = vmatprep.subr.mxu0 0.0
    %2560 = vmatpush2.msra.mxu0 0.0
    %2561 = vmatprep.subr.mxu0 0.0
    %2562 = vmatpush2.msra.mxu0 0.0
    %2563 = vmatprep.subr.mxu0 0.0
    %2564 = vmatpush2.msra.mxu0 0.0
    %2565 = vmatprep.subr.mxu0 0.0
    %2566 = vmatpush2.msra.mxu0 0.0
    %2567 = vmatprep.subr.mxu0 0.0
    %2568 = vmatpush2.msra.mxu0 0.0
    %2569 = vmatprep.subr.mxu0 0.0
    %2570 = vmatpush2.msra.mxu0 0.0
    %2571 = vmatprep.mubr.f32.mxu0 0.0
    %2572 = vmatmul.mubr.f32.gmra.mxu0 %v2292
    %v2573 = vpop.f32.mrf.mxu0
    %v2574 = vadd.f32 %v2278, %v2573
    %v2575 = vpop.f32.mrf.mxu0
    %v2576 = vadd.f32 %v2282, %v2575
    %2577 = vdwg.mxu0
    %2578 = vst [vmem:[%s9] sm:$0xff] %v2361
    %2579 = vst [vmem:[%s9 + $0x8] sm:$0xff] %v2363
    %2580 = vst [vmem:[%s9 + $0x10] sm:$0xff] %v2432
    %2581 = vst [vmem:[%s9 + $0x18] sm:$0xff] %v2434
    %2582 = vst [vmem:[%s9 + $0x20] sm:$0xff] %v2503
    %2583 = vst [vmem:[%s9 + $0x28] sm:$0xff] %v2505
    %2584 = vst [vmem:[%s9 + $0x30] sm:$0xff] %v2574
    %2585 = vst [vmem:[%s9 + $0x38] sm:$0xff] %v2576
    // Predicated region
    $region50: #{_lambda_.1} parent=1 // pred_check
      _
    $region51: #{_lambda_.1} parent=1 // pred_check_branch
      %2587 = sbr.rel (0) target = $region53
    $region52: #{_lambda_.1} parent=1 // pred_region
      _
    $region53: #{_lambda_.1} parent=1 // pred_fallthru
      _
    // Predicated region
    $region54: #{_lambda_.1} parent=1 // pred_check
      _
    $region55: #{_lambda_.1} parent=1 // pred_check_branch
      %2589 = sbr.rel (0) target = $region57
    $region56: #{_lambda_.1} parent=1 // pred_region
      _
    $region57: #{_lambda_.1} parent=1 // pred_fallthru
      _
    %2590 = vsyncpa [#allocation4], 1
    %2591 = vsyncpa [#allocation6], 1

</llo_original>
